<compile_context>
chip_gen: v6e
topology: v6e:2x2x1
jax: 0.10.0
libtpu: 0.0.40
codegen_flags: <defaults>
</compile_context>

<pallas_src>
import math
from functools import partial

import jax
import jax.numpy as jnp
from jax import lax
from jax.experimental import pallas as pl
from jax.experimental.pallas import tpu as pltpu


# ----------------------------------------------------------------------------- kernel helpers

def _dilated_conv_relu(x, w_ref, b_ref, *, dilation, row_ids, compute_dtype):
    """MultichannelBlock body on one (S, D) channels-last slab (dropout = eval mode).

    Dilated Conv1d (cross-correlation) + ReLU, tail zero-padded back to S rows.
    Tap k needs rows [k*dilation, k*dilation + l_out); the shifted read is realised as
    a pltpu.roll sublane rotate (XLU — near free, the MXU is busy with the matmuls) and
    the wrapped tail rows are zeroed by the shared iota row mask.
    """
    S = x.shape[0]
    ksize, _, dout = w_ref.shape
    l_out = S - dilation * (ksize - 1)

    acc = jnp.zeros((S, dout), jnp.float32) + b_ref[...]          # bias broadcast
    for kk in range(ksize):                                       # static unrolled taps
        off = kk * dilation
        xs = x if off == 0 else pltpu.roll(x, shift=(S - off) % S, axis=0)
        acc = acc + jnp.dot(xs.astype(compute_dtype), w_ref[kk],
                            preferred_element_type=jnp.float32)
    y = jnp.maximum(acc, 0.0)
    return jnp.where(row_ids < l_out, y, 0.0)                     # zero-pad tail back to S


def _fused_mcc_kernel(*refs, n_heads, head_dim, scale, dilation,
                      use_day, use_time, batch_block, compute_dtype, emit_attn):
    it = iter(refs)
    q_in = next(it)
    k_in = next(it)
    v_in = next(it)
    dtw_ref = next(it) if (use_day or use_time) else None          # merged day/time weights
    w_qkv_ref = next(it)
    b_qkv_ref = next(it)
    w_day_ref = b_day_ref = w_time_ref = b_time_ref = None
    if use_day:
        w_day_ref = next(it); b_day_ref = next(it)
    if use_time:
        w_time_ref = next(it); b_time_ref = next(it)
    w_out_ref = next(it)
    b_out_ref = next(it)
    out_ref = next(it)
    attn_ref = next(it) if emit_attn else None
    comb_ref = next(it)                                            # VMEM scratch (L, H*E) f32

    L = q_in.shape[1]
    S = k_in.shape[1]
    E = head_dim
    H = n_heads

    # hoisted once, shared by both conv blocks and all batch elements in this step
    row_ids = lax.broadcasted_iota(jnp.int32, (S, 1), 0)

    for bb in range(batch_block):                                  # static unrolled batch block
        xq = q_in[bb].astype(compute_dtype)                        # (L, D)
        xk = k_in[bb].astype(compute_dtype)                        # (S, D)
        xv_f32 = v_in[bb]                                          # (S, D) f32 (conv weighting)
        xv = xv_f32.astype(compute_dtype)

        # --- multi-head FullAttention; per-head weight slices read from the refs ---
        for h in range(H):
            lo = h * E
            qh = (jnp.dot(xq, w_qkv_ref[0, :, lo:lo + E], preferred_element_type=jnp.float32)
                  + b_qkv_ref[0, :, lo:lo + E])                    # (L, E)
            kh = (jnp.dot(xk, w_qkv_ref[1, :, lo:lo + E], preferred_element_type=jnp.float32)
                  + b_qkv_ref[1, :, lo:lo + E])                    # (S, E)
            vh = (jnp.dot(xv, w_qkv_ref[2, :, lo:lo + E], preferred_element_type=jnp.float32)
                  + b_qkv_ref[2, :, lo:lo + E])                    # (S, E)
            # contract last axes of q and k directly (no explicit transpose)
            s = lax.dot_general(qh.astype(compute_dtype), kh.astype(compute_dtype),
                                (((1,), (1,)), ((), ())),
                                preferred_element_type=jnp.float32) * scale   # (L, S)
            m = jnp.max(s, axis=-1, keepdims=True)
            e = jnp.exp(s - m)
            # exact softmax normalization: the returned attention map must sum to 1
            p = e / jnp.sum(e, axis=-1, keepdims=True)
            if emit_attn:
                attn_ref[bb, h * L:(h + 1) * L, :] = p.astype(attn_ref.dtype)  # lane-dense
            oh = jnp.dot(p.astype(compute_dtype), vh.astype(compute_dtype),
                         preferred_element_type=jnp.float32)       # (L, E)
            comb_ref[:, lo:lo + E] = oh                            # scratch slab, no concat

        combined = comb_ref[...]                                   # (L, H*E) f32

        # --- fused day/time MultichannelBlocks (input weighting + conv + residual add) ---
        col = 0
        if use_day:
            combined = combined + _dilated_conv_relu(
                xv_f32 * dtw_ref[bb, :, col:col + 1], w_day_ref, b_day_ref,
                dilation=dilation, row_ids=row_ids, compute_dtype=compute_dtype)
            col += 1
        if use_time:
            combined = combined + _dilated_conv_relu(
                xv_f32 * dtw_ref[bb, :, col:col + 1], w_time_ref, b_time_ref,
                dilation=dilation, row_ids=row_ids, compute_dtype=compute_dtype)

        # --- fused output projection ---
        out = (jnp.dot(combined.astype(compute_dtype), w_out_ref[...],
                       preferred_element_type=jnp.float32) + b_out_ref[...])
        out_ref[bb] = out.astype(out_ref.dtype)


# ----------------------------------------------------------------------------- module wrapper

def init_params(key, d_model, n_heads, d_keys=None, d_values=None, dtype=jnp.float32):
    d_keys = d_keys or d_model // n_heads
    d_values = d_values or d_model // n_heads
    ks = jax.random.split(key, 12)

    def lin(kw, kb, dout, din):
        bound = 1.0 / math.sqrt(din)
        return (jax.random.uniform(kw, (dout, din), dtype, -bound, bound),
                jax.random.uniform(kb, (dout,), dtype, -bound, bound))

    def conv(kw, kb, cout, cin, ksz):
        bound = 1.0 / math.sqrt(cin * ksz)
        return (jax.random.uniform(kw, (cout, cin, ksz), dtype, -bound, bound),
                jax.random.uniform(kb, (cout,), dtype, -bound, bound))

    return {
        "day_conv": conv(ks[0], ks[1], d_model, d_model, 3),
        "time_conv": conv(ks[2], ks[3], d_model, d_model, 3),
        "q_proj": lin(ks[4], ks[5], d_keys * n_heads, d_model),
        "k_proj": lin(ks[6], ks[7], d_keys * n_heads, d_model),
        "v_proj": lin(ks[8], ks[9], d_values * n_heads, d_model),
        "out_proj": lin(ks[10], ks[11], d_model, d_values * n_heads),
        "n_heads": n_heads,
    }


def multichannel_correlation_forward(params, queries, keys, values, attn_mask=None,
                                     tau=None, delta=None,
                                     batch_day_weights=None, batch_time_weights=None,
                                     *, compute_dtype=jnp.bfloat16, batch_block=1,
                                     return_attn=True, dilation=3):
    # TODO(synk): attn_mask / tau / delta paths of the injected inner_correlation are
    # not implemented (only the standard unmasked FullAttention path).
    if attn_mask is not None:
        raise NotImplementedError("attn_mask path not implemented")

    B, L, D = queries.shape
    _, S, _ = keys.shape
    H = params["n_heads"]
    use_day = batch_day_weights is not None
    use_time = batch_time_weights is not None
    nw = int(use_day) + int(use_time)

    wq, bq = params["q_proj"]
    wk, bk = params["k_proj"]
    wv, bv = params["v_proj"]
    wo, bo = params["out_proj"]
    HE = wq.shape[0]
    assert wk.shape[0] == HE and wv.shape[0] == HE, "packed qkv weights need d_keys == d_values"
    E = HE // H
    Dout = wo.shape[0]
    assert B % batch_block == 0, "B must be divisible by batch_block"
    if use_day or use_time:
        # residual add of the conv blocks onto the attention output requires these
        assert L == S and HE == D, "MultichannelBlock residual needs L==S and H*d_values==d_model"

    cdt = compute_dtype
    itemsz = jnp.dtype(cdt).itemsize
    # Pack weights: torch Linear stores (out, in) -> (in, out); MXU operands in compute_dtype.
    w_qkv = jnp.stack([jnp.asarray(wq).T, jnp.asarray(wk).T, jnp.asarray(wv).T]).astype(cdt)
    b_qkv = jnp.stack([jnp.asarray(bq), jnp.asarray(bk),
                       jnp.asarray(bv)]).reshape(3, 1, HE).astype(jnp.float32)
    w_out = jnp.asarray(wo).T.astype(cdt)                          # (HE, Dout)
    b_out = jnp.asarray(bo).reshape(1, Dout).astype(jnp.float32)

    Bblk = batch_block
    inputs = [queries, keys, values]
    in_specs = [
        pl.BlockSpec((Bblk, L, D), lambda i: (i, 0, 0)),
        pl.BlockSpec((Bblk, S, D), lambda i: (i, 0, 0)),
        pl.BlockSpec((Bblk, S, D), lambda i: (i, 0, 0)),
    ]
    if nw:
        cols = []
        if use_day:
            cols.append(jnp.asarray(batch_day_weights, jnp.float32))
        if use_time:
            cols.append(jnp.asarray(batch_time_weights, jnp.float32))
        dtw = jnp.stack(cols, axis=-1)                             # merged (B, S, nw) input
        inputs.append(dtw)
        in_specs.append(pl.BlockSpec((Bblk, S, nw), lambda i: (i, 0, 0)))

    inputs += [w_qkv, b_qkv]
    in_specs += [pl.BlockSpec((3, D, HE), lambda i: (0, 0, 0)),
                 pl.BlockSpec((3, 1, HE), lambda i: (0, 0, 0))]

    ksz = None
    for name, enabled in (("day_conv", use_day), ("time_conv", use_time)):
        if not enabled:
            continue
        cw, cb = params[name]
        ksz = cw.shape[2]
        assert S - dilation * (ksz - 1) > 0
        inputs += [jnp.transpose(jnp.asarray(cw), (2, 1, 0)).astype(cdt),
                   jnp.asarray(cb, jnp.float32).reshape(1, -1)]
        in_specs += [pl.BlockSpec((ksz, D, D), lambda i: (0, 0, 0)),
                     pl.BlockSpec((1, D), lambda i: (0, 0))]

    inputs += [w_out, b_out]
    in_specs += [pl.BlockSpec((HE, Dout), lambda i: (0, 0)),
                 pl.BlockSpec((1, Dout), lambda i: (0, 0))]

    out_shapes = [jax.ShapeDtypeStruct((B, L, Dout), queries.dtype)]
    out_specs = [pl.BlockSpec((Bblk, L, Dout), lambda i: (i, 0, 0))]
    if return_attn:
        # lane-dense attention map layout: (B, H*L, S) slab per grid step, S last
        out_shapes.append(jax.ShapeDtypeStruct((B, H * L, S), jnp.float32))
        out_specs.append(pl.BlockSpec((Bblk, H * L, S), lambda i: (i, 0, 0)))

    kernel = partial(_fused_mcc_kernel, n_heads=H, head_dim=E, scale=1.0 / math.sqrt(E),
                     dilation=dilation, use_day=use_day, use_time=use_time,
                     batch_block=Bblk, compute_dtype=cdt, emit_attn=return_attn)

    # advisory cost estimate so XLA can schedule/overlap the custom call
    flops_per_b = 6 * L * D * HE + 4 * L * S * HE + 2 * L * HE * Dout
    if nw and ksz:
        flops_per_b += nw * ksz * 2 * S * D * D
    weight_bytes = (w_qkv.size * itemsz + b_qkv.size * 4 + w_out.size * itemsz + b_out.size * 4
                    + (nw * ((ksz or 3) * D * D * itemsz + D * 4) if nw else 0))
    bytes_accessed = (B * (L + 2 * S) * D * 4 + B * S * nw * 4 + weight_bytes
                      + B * L * Dout * 4 + (B * H * L * S * 4 if return_attn else 0))
    cost = pl.CostEstimate(flops=int(B * flops_per_b), transcendentals=int(B * H * L * S),
                           bytes_accessed=int(bytes_accessed))

    # VMEM budget: double-buffered in/out blocks + weights + scratch (headroom for v7x 64 MiB)
    blk_bytes = (Bblk * (L + 2 * S) * D * 4 + Bblk * S * max(nw, 1) * 4 + Bblk * L * Dout * 4
                 + (Bblk * H * L * S * 4 if return_attn else 0))
    vmem_bytes = int(min(100 * 2**20,
                         max(2 * (blk_bytes + weight_bytes) + L * HE * 4 + (4 << 20),
                             32 * 2**20)))

    results = pl.pallas_call(
        kernel,
        out_shape=tuple(out_shapes),
        grid=(B // Bblk,),
        in_specs=in_specs,
        out_specs=tuple(out_specs),
        scratch_shapes=[pltpu.VMEM((L, HE), jnp.float32)],
        compiler_params=pltpu.CompilerParams(dimension_semantics=("parallel",),
                                             vmem_limit_bytes=vmem_bytes),
        cost_estimate=cost,
    )(*inputs)

    if return_attn:
        out, attn = results
        return out, attn.reshape(B, H, L, S)
    (out,) = results
    return out, None


# ----------------------------------------------------------------------------- pure-JAX reference

def _reference_forward(params, queries, keys, values,
                       batch_day_weights=None, batch_time_weights=None):
    B, L, D = queries.shape
    _, S, _ = keys.shape
    H = params["n_heads"]

    def lin(x, w, b):
        return jnp.einsum("bld,od->blo", x, w) + b

    def block(x, w, b, dilation=3):
        ksz = w.shape[2]
        l_out = x.shape[1] - dilation * (ksz - 1)
        y = jnp.zeros((x.shape[0], l_out, w.shape[0]), jnp.float32) + b
        for kk in range(ksz):
            y = y + jnp.einsum("bld,od->blo",
                               x[:, kk * dilation:kk * dilation + l_out, :], w[:, :, kk])
        y = jnp.maximum(y, 0.0)
        return jnp.pad(y, ((0, 0), (0, x.shape[1] - l_out), (0, 0)))

    q = lin(queries, *params["q_proj"]).reshape(B, L, H, -1)
    k = lin(keys, *params["k_proj"]).reshape(B, S, H, -1)
    v = lin(values, *params["v_proj"]).reshape(B, S, H, -1)
    E = q.shape[-1]
    s = jnp.einsum("blhe,bshe->bhls", q, k) / math.sqrt(E)
    p = jax.nn.softmax(s, axis=-1)
    o = jnp.einsum("bhls,bshe->blhe", p, v).reshape(B, L, H * E)
    if batch_day_weights is not None:
        o = o + block(values * batch_day_weights[:, :, None], *params["day_conv"])
    if batch_time_weights is not None:
        o = o + block(values * batch_time_weights[:, :, None], *params["time_conv"])
    return lin(o, *params["out_proj"]), p


# ----------------------------------------------------------------------------- main

if __name__ == "__main__":
    B, L, S, D, H = 2, 16, 16, 32, 4
    key = jax.random.PRNGKey(0)
    kq, kk, kv, kd, kt, kp = jax.random.split(key, 6)

    queries = jax.random.normal(kq, (B, L, D), jnp.float32)
    keys = jax.random.normal(kk, (B, S, D), jnp.float32)
    values = jax.random.normal(kv, (B, S, D), jnp.float32)
    batch_day_weights = jax.random.uniform(kd, (B, S), jnp.float32)
    batch_time_weights = jax.random.uniform(kt, (B, S), jnp.float32)

    params = init_params(kp, d_model=D, n_heads=H)
    ref_out, ref_attn = _reference_forward(params, queries, keys, values,
                                           batch_day_weights, batch_time_weights)

    # default path: bf16 MXU operands, one batch element per grid step (2 steps -> both v7x TCs)
    out, attn = multichannel_correlation_forward(
        params, queries, keys, values, attn_mask=None,
        batch_day_weights=batch_day_weights, batch_time_weights=batch_time_weights)
    out = jax.block_until_ready(out)
    attn = jax.block_until_ready(attn)
    assert out.shape == (B, L, D), out.shape
    assert attn.shape == (B, H, L, S), attn.shape
    assert bool(jnp.all(jnp.isfinite(out))) and bool(jnp.all(jnp.isfinite(attn)))
    assert float(jnp.max(jnp.abs(out - ref_out))) < 1e-1
    assert float(jnp.max(jnp.abs(attn - ref_attn))) < 5e-2

    # batch-blocked path (amortizes per-grid-step overhead on single-TC v5e/v6e), f32 MXU ops
    out2, attn2 = multichannel_correlation_forward(
        params, queries, keys, values, attn_mask=None,
        batch_day_weights=batch_day_weights, batch_time_weights=batch_time_weights,
        compute_dtype=jnp.float32, batch_block=2)
    out2 = jax.block_until_ready(out2)
    assert float(jnp.max(jnp.abs(out2 - ref_out))) < 1e-1
    assert float(jnp.max(jnp.abs(attn2 - ref_attn))) < 5e-2

    # attention-map output elided (lighter store path)
    out3, attn3 = multichannel_correlation_forward(
        params, queries, keys, values, attn_mask=None,
        batch_day_weights=batch_day_weights, batch_time_weights=batch_time_weights,
        return_attn=False)
    out3 = jax.block_until_ready(out3)
    assert attn3 is None and out3.shape == (B, L, D)
    assert float(jnp.max(jnp.abs(out3 - ref_out))) < 1e-1

    print("KERNEL_OK")
</pallas_src>

<mosaic_0001>
module attributes {stable_mosaic.version = 11 : i64} {
  func.func @_fused_mcc_kernel(%arg0: i32, %arg1: memref<1x16x32xf32, #tpu.memory_space<vmem>>, %arg2: memref<1x16x32xf32, #tpu.memory_space<vmem>>, %arg3: memref<1x16x32xf32, #tpu.memory_space<vmem>>, %arg4: memref<1x16x2xf32, #tpu.memory_space<vmem>>, %arg5: memref<3x32x32xbf16, #tpu.memory_space<vmem>>, %arg6: memref<3x1x32xf32, #tpu.memory_space<vmem>>, %arg7: memref<3x32x32xbf16, #tpu.memory_space<vmem>>, %arg8: memref<1x32xf32, #tpu.memory_space<vmem>>, %arg9: memref<3x32x32xbf16, #tpu.memory_space<vmem>>, %arg10: memref<1x32xf32, #tpu.memory_space<vmem>>, %arg11: memref<32x32xbf16, #tpu.memory_space<vmem>>, %arg12: memref<1x32xf32, #tpu.memory_space<vmem>>, %arg13: memref<1x16x32xf32, #tpu.memory_space<vmem>>, %arg14: memref<1x64x16xf32, #tpu.memory_space<vmem>>, %arg15: memref<16x32xf32, #tpu.memory_space<vmem>>) attributes {dimension_semantics = [#tpu.dimension_semantics<parallel>], iteration_bounds = array<i64: 2>, scalar_prefetch = 0 : i64, scratch_operands = 1 : i64, tpu.core_type = #tpu.core_type<tc>, window_params = [{transform_indices = @transform_0, window_bounds = array<i64: 1, 16, 32>}, {transform_indices = @transform_1, window_bounds = array<i64: 1, 16, 32>}, {transform_indices = @transform_2, window_bounds = array<i64: 1, 16, 32>}, {transform_indices = @transform_3, window_bounds = array<i64: 1, 16, 2>}, {pipeline_mode = #tpu.pipeline_mode<synchronous>, transform_indices = @transform_4, window_bounds = array<i64: 3, 32, 32>}, {pipeline_mode = #tpu.pipeline_mode<synchronous>, transform_indices = @transform_5, window_bounds = array<i64: 3, 1, 32>}, {pipeline_mode = #tpu.pipeline_mode<synchronous>, transform_indices = @transform_6, window_bounds = array<i64: 3, 32, 32>}, {pipeline_mode = #tpu.pipeline_mode<synchronous>, transform_indices = @transform_7, window_bounds = array<i64: 1, 32>}, {pipeline_mode = #tpu.pipeline_mode<synchronous>, transform_indices = @transform_8, window_bounds = array<i64: 3, 32, 32>}, {pipeline_mode = #tpu.pipeline_mode<synchronous>, transform_indices = @transform_9, window_bounds = array<i64: 1, 32>}, {pipeline_mode = #tpu.pipeline_mode<synchronous>, transform_indices = @transform_10, window_bounds = array<i64: 32, 32>}, {pipeline_mode = #tpu.pipeline_mode<synchronous>, transform_indices = @transform_11, window_bounds = array<i64: 1, 32>}, {transform_indices = @transform_12, window_bounds = array<i64: 1, 16, 32>}, {transform_indices = @transform_13, window_bounds = array<i64: 1, 64, 16>}]} {
    %0 = tpu.iota {dimensions = array<i32: 0>} : vector<16x1xi32>
    %c0 = arith.constant 0 : index
    %c0_0 = arith.constant 0 : index
    %c0_1 = arith.constant 0 : index
    %1 = vector.load %arg1[%c0, %c0_0, %c0_1] : memref<1x16x32xf32, #tpu.memory_space<vmem>>, vector<1x16x32xf32>
    %2 = vector.shape_cast %1 : vector<1x16x32xf32> to vector<16x32xf32>
    %3 = arith.truncf %2 : vector<16x32xf32> to vector<16x32xbf16>
    %c0_2 = arith.constant 0 : index
    %c0_3 = arith.constant 0 : index
    %c0_4 = arith.constant 0 : index
    %4 = vector.load %arg2[%c0_2, %c0_3, %c0_4] : memref<1x16x32xf32, #tpu.memory_space<vmem>>, vector<1x16x32xf32>
    %5 = vector.shape_cast %4 : vector<1x16x32xf32> to vector<16x32xf32>
    %6 = arith.truncf %5 : vector<16x32xf32> to vector<16x32xbf16>
    %c0_5 = arith.constant 0 : index
    %c0_6 = arith.constant 0 : index
    %c0_7 = arith.constant 0 : index
    %7 = vector.load %arg3[%c0_5, %c0_6, %c0_7] : memref<1x16x32xf32, #tpu.memory_space<vmem>>, vector<1x16x32xf32>
    %8 = vector.shape_cast %7 : vector<1x16x32xf32> to vector<16x32xf32>
    %9 = arith.truncf %8 : vector<16x32xf32> to vector<16x32xbf16>
    %c0_8 = arith.constant 0 : index
    %c0_9 = arith.constant 0 : index
    %c0_10 = arith.constant 0 : index
    %10 = vector.load %arg5[%c0_8, %c0_9, %c0_10] : memref<3x32x32xbf16, #tpu.memory_space<vmem>>, vector<1x32x8xbf16>
    %11 = vector.shape_cast %10 : vector<1x32x8xbf16> to vector<32x8xbf16>
    %cst = arith.constant dense<0.000000e+00> : vector<16x8xf32>
    %12 = tpu.matmul %3, %11, %cst {dimension_numbers = #tpu.dot_dimension_numbers<[1], [0], [0], [1], [0, 0, 1, 1], [], []>} : vector<16x32xbf16>, vector<32x8xbf16>, vector<16x8xf32> -> vector<16x8xf32>
    %c0_11 = arith.constant 0 : index
    %c0_12 = arith.constant 0 : index
    %c0_13 = arith.constant 0 : index
    %13 = vector.load %arg6[%c0_11, %c0_12, %c0_13] : memref<3x1x32xf32, #tpu.memory_space<vmem>>, vector<1x1x8xf32>
    %14 = vector.shape_cast %13 : vector<1x1x8xf32> to vector<1x8xf32>
    %15 = vector.broadcast %14 : vector<1x8xf32> to vector<16x8xf32>
    %16 = arith.addf %12, %15 : vector<16x8xf32>
    %c1 = arith.constant 1 : index
    %c0_14 = arith.constant 0 : index
    %c0_15 = arith.constant 0 : index
    %17 = vector.load %arg5[%c1, %c0_14, %c0_15] : memref<3x32x32xbf16, #tpu.memory_space<vmem>>, vector<1x32x8xbf16>
    %18 = vector.shape_cast %17 : vector<1x32x8xbf16> to vector<32x8xbf16>
    %cst_16 = arith.constant dense<0.000000e+00> : vector<16x8xf32>
    %19 = tpu.matmul %6, %18, %cst_16 {dimension_numbers = #tpu.dot_dimension_numbers<[1], [0], [0], [1], [0, 0, 1, 1], [], []>} : vector<16x32xbf16>, vector<32x8xbf16>, vector<16x8xf32> -> vector<16x8xf32>
    %c1_17 = arith.constant 1 : index
    %c0_18 = arith.constant 0 : index
    %c0_19 = arith.constant 0 : index
    %20 = vector.load %arg6[%c1_17, %c0_18, %c0_19] : memref<3x1x32xf32, #tpu.memory_space<vmem>>, vector<1x1x8xf32>
    %21 = vector.shape_cast %20 : vector<1x1x8xf32> to vector<1x8xf32>
    %22 = vector.broadcast %21 : vector<1x8xf32> to vector<16x8xf32>
    %23 = arith.addf %19, %22 : vector<16x8xf32>
    %c2 = arith.constant 2 : index
    %c0_20 = arith.constant 0 : index
    %c0_21 = arith.constant 0 : index
    %24 = vector.load %arg5[%c2, %c0_20, %c0_21] : memref<3x32x32xbf16, #tpu.memory_space<vmem>>, vector<1x32x8xbf16>
    %25 = vector.shape_cast %24 : vector<1x32x8xbf16> to vector<32x8xbf16>
    %cst_22 = arith.constant dense<0.000000e+00> : vector<16x8xf32>
    %26 = tpu.matmul %9, %25, %cst_22 {dimension_numbers = #tpu.dot_dimension_numbers<[1], [0], [0], [1], [0, 0, 1, 1], [], []>} : vector<16x32xbf16>, vector<32x8xbf16>, vector<16x8xf32> -> vector<16x8xf32>
    %c2_23 = arith.constant 2 : index
    %c0_24 = arith.constant 0 : index
    %c0_25 = arith.constant 0 : index
    %27 = vector.load %arg6[%c2_23, %c0_24, %c0_25] : memref<3x1x32xf32, #tpu.memory_space<vmem>>, vector<1x1x8xf32>
    %28 = vector.shape_cast %27 : vector<1x1x8xf32> to vector<1x8xf32>
    %29 = vector.broadcast %28 : vector<1x8xf32> to vector<16x8xf32>
    %30 = arith.addf %26, %29 : vector<16x8xf32>
    %31 = arith.truncf %16 : vector<16x8xf32> to vector<16x8xbf16>
    %32 = arith.truncf %23 : vector<16x8xf32> to vector<16x8xbf16>
    %cst_26 = arith.constant dense<0.000000e+00> : vector<16x16xf32>
    %33 = tpu.matmul %31, %32, %cst_26 {dimension_numbers = #tpu.dot_dimension_numbers<[1], [1], [0], [0], [0, 0, 1, 0], [], []>} : vector<16x8xbf16>, vector<16x8xbf16>, vector<16x16xf32> -> vector<16x16xf32>
    %cst_27 = arith.constant 0.353553385 : f32
    %34 = vector.broadcast %cst_27 : f32 to vector<16x16xf32>
    %35 = arith.mulf %33, %34 : vector<16x16xf32>
    %cst_28 = arith.constant dense<0xFF800000> : vector<16xf32>
    %36 = vector.multi_reduction <maximumf>, %35, %cst_28 [1] : vector<16x16xf32> to vector<16xf32>
    %37 = vector.shape_cast %36 : vector<16xf32> to vector<16x1xf32>
    %38 = vector.broadcast %37 : vector<16x1xf32> to vector<16x16xf32>
    %39 = arith.subf %35, %38 : vector<16x16xf32>
    %40 = math.exp %39 : vector<16x16xf32>
    %cst_29 = arith.constant dense<0.000000e+00> : vector<16xf32>
    %41 = vector.multi_reduction <add>, %40, %cst_29 [1] : vector<16x16xf32> to vector<16xf32>
    %42 = vector.shape_cast %41 : vector<16xf32> to vector<16x1xf32>
    %43 = vector.broadcast %42 : vector<16x1xf32> to vector<16x16xf32>
    %44 = arith.divf %40, %43 : vector<16x16xf32>
    %c0_30 = arith.constant 0 : index
    %c0_31 = arith.constant 0 : index
    %c0_32 = arith.constant 0 : index
    %45 = vector.load %arg14[%c0_30, %c0_31, %c0_32] : memref<1x64x16xf32, #tpu.memory_space<vmem>>, vector<1x16x16xf32>
    %46 = vector.shape_cast %45 : vector<1x16x16xf32> to vector<16x16xf32>
    %47 = vector.shape_cast %44 : vector<16x16xf32> to vector<1x16x16xf32>
    tpu.vector_store %arg14[%c0_30, %c0_31, %c0_32], %47 {strides = array<i32>} : memref<1x64x16xf32, #tpu.memory_space<vmem>>, vector<1x16x16xf32>,
    %48 = arith.truncf %44 : vector<16x16xf32> to vector<16x16xbf16>
    %49 = arith.truncf %30 : vector<16x8xf32> to vector<16x8xbf16>
    %cst_33 = arith.constant dense<0.000000e+00> : vector<16x8xf32>
    %50 = tpu.matmul %48, %49, %cst_33 {dimension_numbers = #tpu.dot_dimension_numbers<[1], [0], [0], [1], [0, 0, 1, 1], [], []>} : vector<16x16xbf16>, vector<16x8xbf16>, vector<16x8xf32> -> vector<16x8xf32>
    %c0_34 = arith.constant 0 : index
    %c0_35 = arith.constant 0 : index
    %51 = vector.load %arg15[%c0_34, %c0_35] : memref<16x32xf32, #tpu.memory_space<vmem>>, vector<16x8xf32>
    tpu.vector_store %arg15[%c0_34, %c0_35], %50 {strides = array<i32>} : memref<16x32xf32, #tpu.memory_space<vmem>>, vector<16x8xf32>,
    %c0_36 = arith.constant 0 : index
    %c0_37 = arith.constant 0 : index
    %c8 = arith.constant 8 : index
    %52 = vector.load %arg5[%c0_36, %c0_37, %c8] : memref<3x32x32xbf16, #tpu.memory_space<vmem>>, vector<1x32x8xbf16>
    %53 = vector.shape_cast %52 : vector<1x32x8xbf16> to vector<32x8xbf16>
    %cst_38 = arith.constant dense<0.000000e+00> : vector<16x8xf32>
    %54 = tpu.matmul %3, %53, %cst_38 {dimension_numbers = #tpu.dot_dimension_numbers<[1], [0], [0], [1], [0, 0, 1, 1], [], []>} : vector<16x32xbf16>, vector<32x8xbf16>, vector<16x8xf32> -> vector<16x8xf32>
    %c0_39 = arith.constant 0 : index
    %c0_40 = arith.constant 0 : index
    %c8_41 = arith.constant 8 : index
    %55 = vector.load %arg6[%c0_39, %c0_40, %c8_41] : memref<3x1x32xf32, #tpu.memory_space<vmem>>, vector<1x1x8xf32>
    %56 = vector.shape_cast %55 : vector<1x1x8xf32> to vector<1x8xf32>
    %57 = vector.broadcast %56 : vector<1x8xf32> to vector<16x8xf32>
    %58 = arith.addf %54, %57 : vector<16x8xf32>
    %c1_42 = arith.constant 1 : index
    %c0_43 = arith.constant 0 : index
    %c8_44 = arith.constant 8 : index
    %59 = vector.load %arg5[%c1_42, %c0_43, %c8_44] : memref<3x32x32xbf16, #tpu.memory_space<vmem>>, vector<1x32x8xbf16>
    %60 = vector.shape_cast %59 : vector<1x32x8xbf16> to vector<32x8xbf16>
    %cst_45 = arith.constant dense<0.000000e+00> : vector<16x8xf32>
    %61 = tpu.matmul %6, %60, %cst_45 {dimension_numbers = #tpu.dot_dimension_numbers<[1], [0], [0], [1], [0, 0, 1, 1], [], []>} : vector<16x32xbf16>, vector<32x8xbf16>, vector<16x8xf32> -> vector<16x8xf32>
    %c1_46 = arith.constant 1 : index
    %c0_47 = arith.constant 0 : index
    %c8_48 = arith.constant 8 : index
    %62 = vector.load %arg6[%c1_46, %c0_47, %c8_48] : memref<3x1x32xf32, #tpu.memory_space<vmem>>, vector<1x1x8xf32>
    %63 = vector.shape_cast %62 : vector<1x1x8xf32> to vector<1x8xf32>
    %64 = vector.broadcast %63 : vector<1x8xf32> to vector<16x8xf32>
    %65 = arith.addf %61, %64 : vector<16x8xf32>
    %c2_49 = arith.constant 2 : index
    %c0_50 = arith.constant 0 : index
    %c8_51 = arith.constant 8 : index
    %66 = vector.load %arg5[%c2_49, %c0_50, %c8_51] : memref<3x32x32xbf16, #tpu.memory_space<vmem>>, vector<1x32x8xbf16>
    %67 = vector.shape_cast %66 : vector<1x32x8xbf16> to vector<32x8xbf16>
    %cst_52 = arith.constant dense<0.000000e+00> : vector<16x8xf32>
    %68 = tpu.matmul %9, %67, %cst_52 {dimension_numbers = #tpu.dot_dimension_numbers<[1], [0], [0], [1], [0, 0, 1, 1], [], []>} : vector<16x32xbf16>, vector<32x8xbf16>, vector<16x8xf32> -> vector<16x8xf32>
    %c2_53 = arith.constant 2 : index
    %c0_54 = arith.constant 0 : index
    %c8_55 = arith.constant 8 : index
    %69 = vector.load %arg6[%c2_53, %c0_54, %c8_55] : memref<3x1x32xf32, #tpu.memory_space<vmem>>, vector<1x1x8xf32>
    %70 = vector.shape_cast %69 : vector<1x1x8xf32> to vector<1x8xf32>
    %71 = vector.broadcast %70 : vector<1x8xf32> to vector<16x8xf32>
    %72 = arith.addf %68, %71 : vector<16x8xf32>
    %73 = arith.truncf %58 : vector<16x8xf32> to vector<16x8xbf16>
    %74 = arith.truncf %65 : vector<16x8xf32> to vector<16x8xbf16>
    %cst_56 = arith.constant dense<0.000000e+00> : vector<16x16xf32>
    %75 = tpu.matmul %73, %74, %cst_56 {dimension_numbers = #tpu.dot_dimension_numbers<[1], [1], [0], [0], [0, 0, 1, 0], [], []>} : vector<16x8xbf16>, vector<16x8xbf16>, vector<16x16xf32> -> vector<16x16xf32>
    %cst_57 = arith.constant 0.353553385 : f32
    %76 = vector.broadcast %cst_57 : f32 to vector<16x16xf32>
    %77 = arith.mulf %75, %76 : vector<16x16xf32>
    %cst_58 = arith.constant dense<0xFF800000> : vector<16xf32>
    %78 = vector.multi_reduction <maximumf>, %77, %cst_58 [1] : vector<16x16xf32> to vector<16xf32>
    %79 = vector.shape_cast %78 : vector<16xf32> to vector<16x1xf32>
    %80 = vector.broadcast %79 : vector<16x1xf32> to vector<16x16xf32>
    %81 = arith.subf %77, %80 : vector<16x16xf32>
    %82 = math.exp %81 : vector<16x16xf32>
    %cst_59 = arith.constant dense<0.000000e+00> : vector<16xf32>
    %83 = vector.multi_reduction <add>, %82, %cst_59 [1] : vector<16x16xf32> to vector<16xf32>
    %84 = vector.shape_cast %83 : vector<16xf32> to vector<16x1xf32>
    %85 = vector.broadcast %84 : vector<16x1xf32> to vector<16x16xf32>
    %86 = arith.divf %82, %85 : vector<16x16xf32>
    %c0_60 = arith.constant 0 : index
    %c16 = arith.constant 16 : index
    %c0_61 = arith.constant 0 : index
    %87 = vector.load %arg14[%c0_60, %c16, %c0_61] : memref<1x64x16xf32, #tpu.memory_space<vmem>>, vector<1x16x16xf32>
    %88 = vector.shape_cast %87 : vector<1x16x16xf32> to vector<16x16xf32>
    %89 = vector.shape_cast %86 : vector<16x16xf32> to vector<1x16x16xf32>
    tpu.vector_store %arg14[%c0_60, %c16, %c0_61], %89 {strides = array<i32>} : memref<1x64x16xf32, #tpu.memory_space<vmem>>, vector<1x16x16xf32>,
    %90 = arith.truncf %86 : vector<16x16xf32> to vector<16x16xbf16>
    %91 = arith.truncf %72 : vector<16x8xf32> to vector<16x8xbf16>
    %cst_62 = arith.constant dense<0.000000e+00> : vector<16x8xf32>
    %92 = tpu.matmul %90, %91, %cst_62 {dimension_numbers = #tpu.dot_dimension_numbers<[1], [0], [0], [1], [0, 0, 1, 1], [], []>} : vector<16x16xbf16>, vector<16x8xbf16>, vector<16x8xf32> -> vector<16x8xf32>
    %c0_63 = arith.constant 0 : index
    %c8_64 = arith.constant 8 : index
    %93 = vector.load %arg15[%c0_63, %c8_64] : memref<16x32xf32, #tpu.memory_space<vmem>>, vector<16x8xf32>
    tpu.vector_store %arg15[%c0_63, %c8_64], %92 {strides = array<i32>} : memref<16x32xf32, #tpu.memory_space<vmem>>, vector<16x8xf32>,
    %c0_65 = arith.constant 0 : index
    %c0_66 = arith.constant 0 : index
    %c16_67 = arith.constant 16 : index
    %94 = vector.load %arg5[%c0_65, %c0_66, %c16_67] : memref<3x32x32xbf16, #tpu.memory_space<vmem>>, vector<1x32x8xbf16>
    %95 = vector.shape_cast %94 : vector<1x32x8xbf16> to vector<32x8xbf16>
    %cst_68 = arith.constant dense<0.000000e+00> : vector<16x8xf32>
    %96 = tpu.matmul %3, %95, %cst_68 {dimension_numbers = #tpu.dot_dimension_numbers<[1], [0], [0], [1], [0, 0, 1, 1], [], []>} : vector<16x32xbf16>, vector<32x8xbf16>, vector<16x8xf32> -> vector<16x8xf32>
    %c0_69 = arith.constant 0 : index
    %c0_70 = arith.constant 0 : index
    %c16_71 = arith.constant 16 : index
    %97 = vector.load %arg6[%c0_69, %c0_70, %c16_71] : memref<3x1x32xf32, #tpu.memory_space<vmem>>, vector<1x1x8xf32>
    %98 = vector.shape_cast %97 : vector<1x1x8xf32> to vector<1x8xf32>
    %99 = vector.broadcast %98 : vector<1x8xf32> to vector<16x8xf32>
    %100 = arith.addf %96, %99 : vector<16x8xf32>
    %c1_72 = arith.constant 1 : index
    %c0_73 = arith.constant 0 : index
    %c16_74 = arith.constant 16 : index
    %101 = vector.load %arg5[%c1_72, %c0_73, %c16_74] : memref<3x32x32xbf16, #tpu.memory_space<vmem>>, vector<1x32x8xbf16>
    %102 = vector.shape_cast %101 : vector<1x32x8xbf16> to vector<32x8xbf16>
    %cst_75 = arith.constant dense<0.000000e+00> : vector<16x8xf32>
    %103 = tpu.matmul %6, %102, %cst_75 {dimension_numbers = #tpu.dot_dimension_numbers<[1], [0], [0], [1], [0, 0, 1, 1], [], []>} : vector<16x32xbf16>, vector<32x8xbf16>, vector<16x8xf32> -> vector<16x8xf32>
    %c1_76 = arith.constant 1 : index
    %c0_77 = arith.constant 0 : index
    %c16_78 = arith.constant 16 : index
    %104 = vector.load %arg6[%c1_76, %c0_77, %c16_78] : memref<3x1x32xf32, #tpu.memory_space<vmem>>, vector<1x1x8xf32>
    %105 = vector.shape_cast %104 : vector<1x1x8xf32> to vector<1x8xf32>
    %106 = vector.broadcast %105 : vector<1x8xf32> to vector<16x8xf32>
    %107 = arith.addf %103, %106 : vector<16x8xf32>
    %c2_79 = arith.constant 2 : index
    %c0_80 = arith.constant 0 : index
    %c16_81 = arith.constant 16 : index
    %108 = vector.load %arg5[%c2_79, %c0_80, %c16_81] : memref<3x32x32xbf16, #tpu.memory_space<vmem>>, vector<1x32x8xbf16>
    %109 = vector.shape_cast %108 : vector<1x32x8xbf16> to vector<32x8xbf16>
    %cst_82 = arith.constant dense<0.000000e+00> : vector<16x8xf32>
    %110 = tpu.matmul %9, %109, %cst_82 {dimension_numbers = #tpu.dot_dimension_numbers<[1], [0], [0], [1], [0, 0, 1, 1], [], []>} : vector<16x32xbf16>, vector<32x8xbf16>, vector<16x8xf32> -> vector<16x8xf32>
    %c2_83 = arith.constant 2 : index
    %c0_84 = arith.constant 0 : index
    %c16_85 = arith.constant 16 : index
    %111 = vector.load %arg6[%c2_83, %c0_84, %c16_85] : memref<3x1x32xf32, #tpu.memory_space<vmem>>, vector<1x1x8xf32>
    %112 = vector.shape_cast %111 : vector<1x1x8xf32> to vector<1x8xf32>
    %113 = vector.broadcast %112 : vector<1x8xf32> to vector<16x8xf32>
    %114 = arith.addf %110, %113 : vector<16x8xf32>
    %115 = arith.truncf %100 : vector<16x8xf32> to vector<16x8xbf16>
    %116 = arith.truncf %107 : vector<16x8xf32> to vector<16x8xbf16>
    %cst_86 = arith.constant dense<0.000000e+00> : vector<16x16xf32>
    %117 = tpu.matmul %115, %116, %cst_86 {dimension_numbers = #tpu.dot_dimension_numbers<[1], [1], [0], [0], [0, 0, 1, 0], [], []>} : vector<16x8xbf16>, vector<16x8xbf16>, vector<16x16xf32> -> vector<16x16xf32>
    %cst_87 = arith.constant 0.353553385 : f32
    %118 = vector.broadcast %cst_87 : f32 to vector<16x16xf32>
    %119 = arith.mulf %117, %118 : vector<16x16xf32>
    %cst_88 = arith.constant dense<0xFF800000> : vector<16xf32>
    %120 = vector.multi_reduction <maximumf>, %119, %cst_88 [1] : vector<16x16xf32> to vector<16xf32>
    %121 = vector.shape_cast %120 : vector<16xf32> to vector<16x1xf32>
    %122 = vector.broadcast %121 : vector<16x1xf32> to vector<16x16xf32>
    %123 = arith.subf %119, %122 : vector<16x16xf32>
    %124 = math.exp %123 : vector<16x16xf32>
    %cst_89 = arith.constant dense<0.000000e+00> : vector<16xf32>
    %125 = vector.multi_reduction <add>, %124, %cst_89 [1] : vector<16x16xf32> to vector<16xf32>
    %126 = vector.shape_cast %125 : vector<16xf32> to vector<16x1xf32>
    %127 = vector.broadcast %126 : vector<16x1xf32> to vector<16x16xf32>
    %128 = arith.divf %124, %127 : vector<16x16xf32>
    %c0_90 = arith.constant 0 : index
    %c32 = arith.constant 32 : index
    %c0_91 = arith.constant 0 : index
    %129 = vector.load %arg14[%c0_90, %c32, %c0_91] : memref<1x64x16xf32, #tpu.memory_space<vmem>>, vector<1x16x16xf32>
    %130 = vector.shape_cast %129 : vector<1x16x16xf32> to vector<16x16xf32>
    %131 = vector.shape_cast %128 : vector<16x16xf32> to vector<1x16x16xf32>
    tpu.vector_store %arg14[%c0_90, %c32, %c0_91], %131 {strides = array<i32>} : memref<1x64x16xf32, #tpu.memory_space<vmem>>, vector<1x16x16xf32>,
    %132 = arith.truncf %128 : vector<16x16xf32> to vector<16x16xbf16>
    %133 = arith.truncf %114 : vector<16x8xf32> to vector<16x8xbf16>
    %cst_92 = arith.constant dense<0.000000e+00> : vector<16x8xf32>
    %134 = tpu.matmul %132, %133, %cst_92 {dimension_numbers = #tpu.dot_dimension_numbers<[1], [0], [0], [1], [0, 0, 1, 1], [], []>} : vector<16x16xbf16>, vector<16x8xbf16>, vector<16x8xf32> -> vector<16x8xf32>
    %c0_93 = arith.constant 0 : index
    %c16_94 = arith.constant 16 : index
    %135 = vector.load %arg15[%c0_93, %c16_94] : memref<16x32xf32, #tpu.memory_space<vmem>>, vector<16x8xf32>
    tpu.vector_store %arg15[%c0_93, %c16_94], %134 {strides = array<i32>} : memref<16x32xf32, #tpu.memory_space<vmem>>, vector<16x8xf32>,
    %c0_95 = arith.constant 0 : index
    %c0_96 = arith.constant 0 : index
    %c24 = arith.constant 24 : index
    %136 = vector.load %arg5[%c0_95, %c0_96, %c24] : memref<3x32x32xbf16, #tpu.memory_space<vmem>>, vector<1x32x8xbf16>
    %137 = vector.shape_cast %136 : vector<1x32x8xbf16> to vector<32x8xbf16>
    %cst_97 = arith.constant dense<0.000000e+00> : vector<16x8xf32>
    %138 = tpu.matmul %3, %137, %cst_97 {dimension_numbers = #tpu.dot_dimension_numbers<[1], [0], [0], [1], [0, 0, 1, 1], [], []>} : vector<16x32xbf16>, vector<32x8xbf16>, vector<16x8xf32> -> vector<16x8xf32>
    %c0_98 = arith.constant 0 : index
    %c0_99 = arith.constant 0 : index
    %c24_100 = arith.constant 24 : index
    %139 = vector.load %arg6[%c0_98, %c0_99, %c24_100] : memref<3x1x32xf32, #tpu.memory_space<vmem>>, vector<1x1x8xf32>
    %140 = vector.shape_cast %139 : vector<1x1x8xf32> to vector<1x8xf32>
    %141 = vector.broadcast %140 : vector<1x8xf32> to vector<16x8xf32>
    %142 = arith.addf %138, %141 : vector<16x8xf32>
    %c1_101 = arith.constant 1 : index
    %c0_102 = arith.constant 0 : index
    %c24_103 = arith.constant 24 : index
    %143 = vector.load %arg5[%c1_101, %c0_102, %c24_103] : memref<3x32x32xbf16, #tpu.memory_space<vmem>>, vector<1x32x8xbf16>
    %144 = vector.shape_cast %143 : vector<1x32x8xbf16> to vector<32x8xbf16>
    %cst_104 = arith.constant dense<0.000000e+00> : vector<16x8xf32>
    %145 = tpu.matmul %6, %144, %cst_104 {dimension_numbers = #tpu.dot_dimension_numbers<[1], [0], [0], [1], [0, 0, 1, 1], [], []>} : vector<16x32xbf16>, vector<32x8xbf16>, vector<16x8xf32> -> vector<16x8xf32>
    %c1_105 = arith.constant 1 : index
    %c0_106 = arith.constant 0 : index
    %c24_107 = arith.constant 24 : index
    %146 = vector.load %arg6[%c1_105, %c0_106, %c24_107] : memref<3x1x32xf32, #tpu.memory_space<vmem>>, vector<1x1x8xf32>
    %147 = vector.shape_cast %146 : vector<1x1x8xf32> to vector<1x8xf32>
    %148 = vector.broadcast %147 : vector<1x8xf32> to vector<16x8xf32>
    %149 = arith.addf %145, %148 : vector<16x8xf32>
    %c2_108 = arith.constant 2 : index
    %c0_109 = arith.constant 0 : index
    %c24_110 = arith.constant 24 : index
    %150 = vector.load %arg5[%c2_108, %c0_109, %c24_110] : memref<3x32x32xbf16, #tpu.memory_space<vmem>>, vector<1x32x8xbf16>
    %151 = vector.shape_cast %150 : vector<1x32x8xbf16> to vector<32x8xbf16>
    %cst_111 = arith.constant dense<0.000000e+00> : vector<16x8xf32>
    %152 = tpu.matmul %9, %151, %cst_111 {dimension_numbers = #tpu.dot_dimension_numbers<[1], [0], [0], [1], [0, 0, 1, 1], [], []>} : vector<16x32xbf16>, vector<32x8xbf16>, vector<16x8xf32> -> vector<16x8xf32>
    %c2_112 = arith.constant 2 : index
    %c0_113 = arith.constant 0 : index
    %c24_114 = arith.constant 24 : index
    %153 = vector.load %arg6[%c2_112, %c0_113, %c24_114] : memref<3x1x32xf32, #tpu.memory_space<vmem>>, vector<1x1x8xf32>
    %154 = vector.shape_cast %153 : vector<1x1x8xf32> to vector<1x8xf32>
    %155 = vector.broadcast %154 : vector<1x8xf32> to vector<16x8xf32>
    %156 = arith.addf %152, %155 : vector<16x8xf32>
    %157 = arith.truncf %142 : vector<16x8xf32> to vector<16x8xbf16>
    %158 = arith.truncf %149 : vector<16x8xf32> to vector<16x8xbf16>
    %cst_115 = arith.constant dense<0.000000e+00> : vector<16x16xf32>
    %159 = tpu.matmul %157, %158, %cst_115 {dimension_numbers = #tpu.dot_dimension_numbers<[1], [1], [0], [0], [0, 0, 1, 0], [], []>} : vector<16x8xbf16>, vector<16x8xbf16>, vector<16x16xf32> -> vector<16x16xf32>
    %cst_116 = arith.constant 0.353553385 : f32
    %160 = vector.broadcast %cst_116 : f32 to vector<16x16xf32>
    %161 = arith.mulf %159, %160 : vector<16x16xf32>
    %cst_117 = arith.constant dense<0xFF800000> : vector<16xf32>
    %162 = vector.multi_reduction <maximumf>, %161, %cst_117 [1] : vector<16x16xf32> to vector<16xf32>
    %163 = vector.shape_cast %162 : vector<16xf32> to vector<16x1xf32>
    %164 = vector.broadcast %163 : vector<16x1xf32> to vector<16x16xf32>
    %165 = arith.subf %161, %164 : vector<16x16xf32>
    %166 = math.exp %165 : vector<16x16xf32>
    %cst_118 = arith.constant dense<0.000000e+00> : vector<16xf32>
    %167 = vector.multi_reduction <add>, %166, %cst_118 [1] : vector<16x16xf32> to vector<16xf32>
    %168 = vector.shape_cast %167 : vector<16xf32> to vector<16x1xf32>
    %169 = vector.broadcast %168 : vector<16x1xf32> to vector<16x16xf32>
    %170 = arith.divf %166, %169 : vector<16x16xf32>
    %c0_119 = arith.constant 0 : index
    %c48 = arith.constant 48 : index
    %c0_120 = arith.constant 0 : index
    %171 = vector.load %arg14[%c0_119, %c48, %c0_120] : memref<1x64x16xf32, #tpu.memory_space<vmem>>, vector<1x16x16xf32>
    %172 = vector.shape_cast %171 : vector<1x16x16xf32> to vector<16x16xf32>
    %173 = vector.shape_cast %170 : vector<16x16xf32> to vector<1x16x16xf32>
    tpu.vector_store %arg14[%c0_119, %c48, %c0_120], %173 {strides = array<i32>} : memref<1x64x16xf32, #tpu.memory_space<vmem>>, vector<1x16x16xf32>,
    %174 = arith.truncf %170 : vector<16x16xf32> to vector<16x16xbf16>
    %175 = arith.truncf %156 : vector<16x8xf32> to vector<16x8xbf16>
    %cst_121 = arith.constant dense<0.000000e+00> : vector<16x8xf32>
    %176 = tpu.matmul %174, %175, %cst_121 {dimension_numbers = #tpu.dot_dimension_numbers<[1], [0], [0], [1], [0, 0, 1, 1], [], []>} : vector<16x16xbf16>, vector<16x8xbf16>, vector<16x8xf32> -> vector<16x8xf32>
    %c0_122 = arith.constant 0 : index
    %c24_123 = arith.constant 24 : index
    %177 = vector.load %arg15[%c0_122, %c24_123] : memref<16x32xf32, #tpu.memory_space<vmem>>, vector<16x8xf32>
    tpu.vector_store %arg15[%c0_122, %c24_123], %176 {strides = array<i32>} : memref<16x32xf32, #tpu.memory_space<vmem>>, vector<16x8xf32>,
    %c0_124 = arith.constant 0 : index
    %c0_125 = arith.constant 0 : index
    %178 = vector.load %arg15[%c0_124, %c0_125] : memref<16x32xf32, #tpu.memory_space<vmem>>, vector<16x32xf32>
    %c0_126 = arith.constant 0 : index
    %c0_127 = arith.constant 0 : index
    %c0_128 = arith.constant 0 : index
    %179 = vector.load %arg4[%c0_126, %c0_127, %c0_128] : memref<1x16x2xf32, #tpu.memory_space<vmem>>, vector<1x16x1xf32>
    %180 = vector.shape_cast %179 : vector<1x16x1xf32> to vector<16x1xf32>
    %181 = vector.broadcast %180 : vector<16x1xf32> to vector<16x32xf32>
    %182 = arith.mulf %8, %181 : vector<16x32xf32>
    %cst_129 = arith.constant 0.000000e+00 : f32
    %183 = vector.broadcast %cst_129 : f32 to vector<16x32xf32>
    %c0_130 = arith.constant 0 : index
    %c0_131 = arith.constant 0 : index
    %184 = vector.load %arg8[%c0_130, %c0_131] : memref<1x32xf32, #tpu.memory_space<vmem>>, vector<1x32xf32>
    %185 = vector.broadcast %184 : vector<1x32xf32> to vector<16x32xf32>
    %186 = arith.addf %183, %185 : vector<16x32xf32>
    %187 = arith.truncf %182 : vector<16x32xf32> to vector<16x32xbf16>
    %c0_132 = arith.constant 0 : index
    %c0_133 = arith.constant 0 : index
    %c0_134 = arith.constant 0 : index
    %188 = vector.load %arg7[%c0_132, %c0_133, %c0_134] : memref<3x32x32xbf16, #tpu.memory_space<vmem>>, vector<1x32x32xbf16>
    %189 = vector.shape_cast %188 : vector<1x32x32xbf16> to vector<32x32xbf16>
    %cst_135 = arith.constant dense<0.000000e+00> : vector<16x32xf32>
    %190 = tpu.matmul %187, %189, %cst_135 {dimension_numbers = #tpu.dot_dimension_numbers<[1], [0], [0], [1], [0, 0, 1, 1], [], []>} : vector<16x32xbf16>, vector<32x32xbf16>, vector<16x32xf32> -> vector<16x32xf32>
    %191 = arith.addf %186, %190 : vector<16x32xf32>
    %c13_i32 = arith.constant 13 : i32
    %192 = tpu.dynamic_rotate %182 by %c13_i32 dim 0 : vector<16x32xf32>, i32 -> vector<16x32xf32>
    %193 = arith.truncf %192 : vector<16x32xf32> to vector<16x32xbf16>
    %c1_136 = arith.constant 1 : index
    %c0_137 = arith.constant 0 : index
    %c0_138 = arith.constant 0 : index
    %194 = vector.load %arg7[%c1_136, %c0_137, %c0_138] : memref<3x32x32xbf16, #tpu.memory_space<vmem>>, vector<1x32x32xbf16>
    %195 = vector.shape_cast %194 : vector<1x32x32xbf16> to vector<32x32xbf16>
    %cst_139 = arith.constant dense<0.000000e+00> : vector<16x32xf32>
    %196 = tpu.matmul %193, %195, %cst_139 {dimension_numbers = #tpu.dot_dimension_numbers<[1], [0], [0], [1], [0, 0, 1, 1], [], []>} : vector<16x32xbf16>, vector<32x32xbf16>, vector<16x32xf32> -> vector<16x32xf32>
    %197 = arith.addf %191, %196 : vector<16x32xf32>
    %c10_i32 = arith.constant 10 : i32
    %198 = tpu.dynamic_rotate %182 by %c10_i32 dim 0 : vector<16x32xf32>, i32 -> vector<16x32xf32>
    %199 = arith.truncf %198 : vector<16x32xf32> to vector<16x32xbf16>
    %c2_140 = arith.constant 2 : index
    %c0_141 = arith.constant 0 : index
    %c0_142 = arith.constant 0 : index
    %200 = vector.load %arg7[%c2_140, %c0_141, %c0_142] : memref<3x32x32xbf16, #tpu.memory_space<vmem>>, vector<1x32x32xbf16>
    %201 = vector.shape_cast %200 : vector<1x32x32xbf16> to vector<32x32xbf16>
    %cst_143 = arith.constant dense<0.000000e+00> : vector<16x32xf32>
    %202 = tpu.matmul %199, %201, %cst_143 {dimension_numbers = #tpu.dot_dimension_numbers<[1], [0], [0], [1], [0, 0, 1, 1], [], []>} : vector<16x32xbf16>, vector<32x32xbf16>, vector<16x32xf32> -> vector<16x32xf32>
    %203 = arith.addf %197, %202 : vector<16x32xf32>
    %cst_144 = arith.constant 0.000000e+00 : f32
    %204 = vector.broadcast %cst_144 : f32 to vector<16x32xf32>
    %205 = arith.maximumf %203, %204 : vector<16x32xf32>
    %c10_i32_145 = arith.constant 10 : i32
    %206 = vector.broadcast %c10_i32_145 : i32 to vector<16x1xi32>
    %207 = arith.cmpi slt, %0, %206 : vector<16x1xi32>
    %cst_146 = arith.constant 0.000000e+00 : f32
    %208 = vector.shape_cast %207 : vector<16x1xi1> to vector<16x1xi1>
    %209 = vector.broadcast %208 : vector<16x1xi1> to vector<16x32xi1>
    %210 = vector.broadcast %cst_146 : f32 to vector<16x32xf32>
    %211 = arith.select %209, %205, %210 : vector<16x32xi1>, vector<16x32xf32>
    %212 = arith.addf %178, %211 : vector<16x32xf32>
    %c0_147 = arith.constant 0 : index
    %c0_148 = arith.constant 0 : index
    %c1_149 = arith.constant 1 : index
    %213 = vector.load %arg4[%c0_147, %c0_148, %c1_149] : memref<1x16x2xf32, #tpu.memory_space<vmem>>, vector<1x16x1xf32>
    %214 = vector.shape_cast %213 : vector<1x16x1xf32> to vector<16x1xf32>
    %215 = vector.broadcast %214 : vector<16x1xf32> to vector<16x32xf32>
    %216 = arith.mulf %8, %215 : vector<16x32xf32>
    %cst_150 = arith.constant 0.000000e+00 : f32
    %217 = vector.broadcast %cst_150 : f32 to vector<16x32xf32>
    %c0_151 = arith.constant 0 : index
    %c0_152 = arith.constant 0 : index
    %218 = vector.load %arg10[%c0_151, %c0_152] : memref<1x32xf32, #tpu.memory_space<vmem>>, vector<1x32xf32>
    %219 = vector.broadcast %218 : vector<1x32xf32> to vector<16x32xf32>
    %220 = arith.addf %217, %219 : vector<16x32xf32>
    %221 = arith.truncf %216 : vector<16x32xf32> to vector<16x32xbf16>
    %c0_153 = arith.constant 0 : index
    %c0_154 = arith.constant 0 : index
    %c0_155 = arith.constant 0 : index
    %222 = vector.load %arg9[%c0_153, %c0_154, %c0_155] : memref<3x32x32xbf16, #tpu.memory_space<vmem>>, vector<1x32x32xbf16>
    %223 = vector.shape_cast %222 : vector<1x32x32xbf16> to vector<32x32xbf16>
    %cst_156 = arith.constant dense<0.000000e+00> : vector<16x32xf32>
    %224 = tpu.matmul %221, %223, %cst_156 {dimension_numbers = #tpu.dot_dimension_numbers<[1], [0], [0], [1], [0, 0, 1, 1], [], []>} : vector<16x32xbf16>, vector<32x32xbf16>, vector<16x32xf32> -> vector<16x32xf32>
    %225 = arith.addf %220, %224 : vector<16x32xf32>
    %c13_i32_157 = arith.constant 13 : i32
    %226 = tpu.dynamic_rotate %216 by %c13_i32_157 dim 0 : vector<16x32xf32>, i32 -> vector<16x32xf32>
    %227 = arith.truncf %226 : vector<16x32xf32> to vector<16x32xbf16>
    %c1_158 = arith.constant 1 : index
    %c0_159 = arith.constant 0 : index
    %c0_160 = arith.constant 0 : index
    %228 = vector.load %arg9[%c1_158, %c0_159, %c0_160] : memref<3x32x32xbf16, #tpu.memory_space<vmem>>, vector<1x32x32xbf16>
    %229 = vector.shape_cast %228 : vector<1x32x32xbf16> to vector<32x32xbf16>
    %cst_161 = arith.constant dense<0.000000e+00> : vector<16x32xf32>
    %230 = tpu.matmul %227, %229, %cst_161 {dimension_numbers = #tpu.dot_dimension_numbers<[1], [0], [0], [1], [0, 0, 1, 1], [], []>} : vector<16x32xbf16>, vector<32x32xbf16>, vector<16x32xf32> -> vector<16x32xf32>
    %231 = arith.addf %225, %230 : vector<16x32xf32>
    %c10_i32_162 = arith.constant 10 : i32
    %232 = tpu.dynamic_rotate %216 by %c10_i32_162 dim 0 : vector<16x32xf32>, i32 -> vector<16x32xf32>
    %233 = arith.truncf %232 : vector<16x32xf32> to vector<16x32xbf16>
    %c2_163 = arith.constant 2 : index
    %c0_164 = arith.constant 0 : index
    %c0_165 = arith.constant 0 : index
    %234 = vector.load %arg9[%c2_163, %c0_164, %c0_165] : memref<3x32x32xbf16, #tpu.memory_space<vmem>>, vector<1x32x32xbf16>
    %235 = vector.shape_cast %234 : vector<1x32x32xbf16> to vector<32x32xbf16>
    %cst_166 = arith.constant dense<0.000000e+00> : vector<16x32xf32>
    %236 = tpu.matmul %233, %235, %cst_166 {dimension_numbers = #tpu.dot_dimension_numbers<[1], [0], [0], [1], [0, 0, 1, 1], [], []>} : vector<16x32xbf16>, vector<32x32xbf16>, vector<16x32xf32> -> vector<16x32xf32>
    %237 = arith.addf %231, %236 : vector<16x32xf32>
    %cst_167 = arith.constant 0.000000e+00 : f32
    %238 = vector.broadcast %cst_167 : f32 to vector<16x32xf32>
    %239 = arith.maximumf %237, %238 : vector<16x32xf32>
    %c10_i32_168 = arith.constant 10 : i32
    %240 = vector.broadcast %c10_i32_168 : i32 to vector<16x1xi32>
    %241 = arith.cmpi slt, %0, %240 : vector<16x1xi32>
    %cst_169 = arith.constant 0.000000e+00 : f32
    %242 = vector.shape_cast %241 : vector<16x1xi1> to vector<16x1xi1>
    %243 = vector.broadcast %242 : vector<16x1xi1> to vector<16x32xi1>
    %244 = vector.broadcast %cst_169 : f32 to vector<16x32xf32>
    %245 = arith.select %243, %239, %244 : vector<16x32xi1>, vector<16x32xf32>
    %246 = arith.addf %212, %245 : vector<16x32xf32>
    %247 = arith.truncf %246 : vector<16x32xf32> to vector<16x32xbf16>
    %c0_170 = arith.constant 0 : index
    %c0_171 = arith.constant 0 : index
    %248 = vector.load %arg11[%c0_170, %c0_171] : memref<32x32xbf16, #tpu.memory_space<vmem>>, vector<32x32xbf16>
    %cst_172 = arith.constant dense<0.000000e+00> : vector<16x32xf32>
    %249 = tpu.matmul %247, %248, %cst_172 {dimension_numbers = #tpu.dot_dimension_numbers<[1], [0], [0], [1], [0, 0, 1, 1], [], []>} : vector<16x32xbf16>, vector<32x32xbf16>, vector<16x32xf32> -> vector<16x32xf32>
    %c0_173 = arith.constant 0 : index
    %c0_174 = arith.constant 0 : index
    %250 = vector.load %arg12[%c0_173, %c0_174] : memref<1x32xf32, #tpu.memory_space<vmem>>, vector<1x32xf32>
    %251 = vector.broadcast %250 : vector<1x32xf32> to vector<16x32xf32>
    %252 = arith.addf %249, %251 : vector<16x32xf32>
    %c0_175 = arith.constant 0 : index
    %c0_176 = arith.constant 0 : index
    %c0_177 = arith.constant 0 : index
    %253 = vector.load %arg13[%c0_175, %c0_176, %c0_177] : memref<1x16x32xf32, #tpu.memory_space<vmem>>, vector<1x16x32xf32>
    %254 = vector.shape_cast %253 : vector<1x16x32xf32> to vector<16x32xf32>
    %255 = vector.shape_cast %252 : vector<16x32xf32> to vector<1x16x32xf32>
    tpu.vector_store %arg13[%c0_175, %c0_176, %c0_177], %255 {strides = array<i32>} : memref<1x16x32xf32, #tpu.memory_space<vmem>>, vector<1x16x32xf32>,
    return
  }
  func.func @transform_0(%arg0: i32) -> (i32, i32, i32) {
    %c0_i32 = arith.constant 0 : i32
    %c0_i32_0 = arith.constant 0 : i32
    %c0_i32_1 = arith.constant 0 : i32
    return %arg0, %c0_i32, %c0_i32_0 : i32, i32, i32
  }
  func.func @transform_1(%arg0: i32) -> (i32, i32, i32) {
    %c0_i32 = arith.constant 0 : i32
    %c0_i32_0 = arith.constant 0 : i32
    %c0_i32_1 = arith.constant 0 : i32
    return %arg0, %c0_i32, %c0_i32_0 : i32, i32, i32
  }
  func.func @transform_2(%arg0: i32) -> (i32, i32, i32) {
    %c0_i32 = arith.constant 0 : i32
    %c0_i32_0 = arith.constant 0 : i32
    %c0_i32_1 = arith.constant 0 : i32
    return %arg0, %c0_i32, %c0_i32_0 : i32, i32, i32
  }
  func.func @transform_3(%arg0: i32) -> (i32, i32, i32) {
    %c0_i32 = arith.constant 0 : i32
    %c0_i32_0 = arith.constant 0 : i32
    %c0_i32_1 = arith.constant 0 : i32
    return %arg0, %c0_i32, %c0_i32_0 : i32, i32, i32
  }
  func.func @transform_4(%arg0: i32) -> (i32, i32, i32) {
    %c0_i32 = arith.constant 0 : i32
    %c0_i32_0 = arith.constant 0 : i32
    %c0_i32_1 = arith.constant 0 : i32
    %c0_i32_2 = arith.constant 0 : i32
    return %c0_i32, %c0_i32_0, %c0_i32_1 : i32, i32, i32
  }
  func.func @transform_5(%arg0: i32) -> (i32, i32, i32) {
    %c0_i32 = arith.constant 0 : i32
    %c0_i32_0 = arith.constant 0 : i32
    %c0_i32_1 = arith.constant 0 : i32
    %c0_i32_2 = arith.constant 0 : i32
    return %c0_i32, %c0_i32_0, %c0_i32_1 : i32, i32, i32
  }
  func.func @transform_6(%arg0: i32) -> (i32, i32, i32) {
    %c0_i32 = arith.constant 0 : i32
    %c0_i32_0 = arith.constant 0 : i32
    %c0_i32_1 = arith.constant 0 : i32
    %c0_i32_2 = arith.constant 0 : i32
    return %c0_i32, %c0_i32_0, %c0_i32_1 : i32, i32, i32
  }
  func.func @transform_7(%arg0: i32) -> (i32, i32) {
    %c0_i32 = arith.constant 0 : i32
    %c0_i32_0 = arith.constant 0 : i32
    %c0_i32_1 = arith.constant 0 : i32
    return %c0_i32, %c0_i32_0 : i32, i32
  }
  func.func @transform_8(%arg0: i32) -> (i32, i32, i32) {
    %c0_i32 = arith.constant 0 : i32
    %c0_i32_0 = arith.constant 0 : i32
    %c0_i32_1 = arith.constant 0 : i32
    %c0_i32_2 = arith.constant 0 : i32
    return %c0_i32, %c0_i32_0, %c0_i32_1 : i32, i32, i32
  }
  func.func @transform_9(%arg0: i32) -> (i32, i32) {
    %c0_i32 = arith.constant 0 : i32
    %c0_i32_0 = arith.constant 0 : i32
    %c0_i32_1 = arith.constant 0 : i32
    return %c0_i32, %c0_i32_0 : i32, i32
  }
  func.func @transform_10(%arg0: i32) -> (i32, i32) {
    %c0_i32 = arith.constant 0 : i32
    %c0_i32_0 = arith.constant 0 : i32
    %c0_i32_1 = arith.constant 0 : i32
    return %c0_i32, %c0_i32_0 : i32, i32
  }
  func.func @transform_11(%arg0: i32) -> (i32, i32) {
    %c0_i32 = arith.constant 0 : i32
    %c0_i32_0 = arith.constant 0 : i32
    %c0_i32_1 = arith.constant 0 : i32
    return %c0_i32, %c0_i32_0 : i32, i32
  }
  func.func @transform_12(%arg0: i32) -> (i32, i32, i32) {
    %c0_i32 = arith.constant 0 : i32
    %c0_i32_0 = arith.constant 0 : i32
    %c0_i32_1 = arith.constant 0 : i32
    return %arg0, %c0_i32, %c0_i32_0 : i32, i32, i32
  }
  func.func @transform_13(%arg0: i32) -> (i32, i32, i32) {
    %c0_i32 = arith.constant 0 : i32
    %c0_i32_0 = arith.constant 0 : i32
    %c0_i32_1 = arith.constant 0 : i32
    return %arg0, %c0_i32, %c0_i32_0 : i32, i32, i32
  }
}

</mosaic_0001>

<llo_original>
// kernel: tpu_custom_call.1
$region0: #{tpu_custom_call.1}
  #allocation0 [shape = 'u32[]', space=smem, size = 0x4, offset = 0x4, fixed_abs, tag = 'smem constant byte address 0x4 - core index']
  #allocation1 [shape = 'u32[144,128]{1,0:T(1,128)}', space=vmem, size = 0x12000, scoped, tag = 'internal scratch']
  #allocation2 [shape = 'f32[16,32]{1,0:T(8,128)}', space=vmem, size = 0x2000, scoped, tag = 'scratch operand']
  %s0 = inlined_call_operand.hbm [shape: f32[2,16,32], index: 0, kind: input, shape index: {}]
  %s1 = inlined_call_operand.hbm [shape: f32[2,16,32], index: 1, kind: input, shape index: {}]
  %s2 = inlined_call_operand.hbm [shape: f32[2,16,32], index: 2, kind: input, shape index: {}]
  %s3 = inlined_call_operand.vmem [shape: f32[2,16,2], index: 3, kind: input, shape index: {}]
  %s4 = inlined_call_operand.hbm [shape: bf16[3,32,32], index: 4, kind: input, shape index: {}]
  %s5 = inlined_call_operand.hbm [shape: f32[3,1,32], index: 5, kind: input, shape index: {}]
  %s6 = inlined_call_operand.hbm [shape: bf16[3,32,32], index: 6, kind: input, shape index: {}]
  %s7 = inlined_call_operand.vmem [shape: f32[1,32], index: 7, kind: input, shape index: {}]
  %s8 = inlined_call_operand.vmem [shape: bf16[3,32,32], index: 8, kind: input, shape index: {}]
  %s9 = inlined_call_operand.vmem [shape: f32[1,32], index: 9, kind: input, shape index: {}]
  %s10 = inlined_call_operand.hbm [shape: bf16[32,32], index: 10, kind: input, shape index: {}]
  %s11 = inlined_call_operand.vmem [shape: f32[1,32], index: 11, kind: input, shape index: {}]
  %s12 = inlined_call_operand.hbm [shape: f32[2,16,32], index: 12, kind: output, shape index: {0}]
  %s13 = inlined_call_operand.vmem [shape: f32[2,64,16], index: 13, kind: output, shape index: {1}]
  %14 = xla_tuple %s12, %s13
  %s15 = sld [smem:[#allocation0]]
  $region117: #{tpu_custom_call.1} parent=0
    _
  %s17 = ssub.s32 1, %s15
  %s18 = scalar_select 0, %s17, %s15
  $region1: #{tpu_custom_call.1} parent=0
    #allocation3 [shape = 'u8[16384]{0}', space=vmem, size = 0x4000, scoped, tag = 'input window, operand 0']
    #allocation4 [shape = 's32[2]{0}', space=sflag, size = 0x8, scoped, tag = 'scoped memory for tpu_custom_call.1']
    #allocation5 [shape = 's32[2]{0}', space=sflag, size = 0x8, scoped, tag = 'scoped memory for tpu_custom_call.1']
    #allocation6 [shape = 'u8[16384]{0}', space=vmem, size = 0x4000, scoped, tag = 'input window, operand 1']
    #allocation7 [shape = 's32[2]{0}', space=sflag, size = 0x8, scoped, tag = 'scoped memory for tpu_custom_call.1']
    #allocation8 [shape = 'u8[16384]{0}', space=vmem, size = 0x4000, scoped, tag = 'input window, operand 2']
    #allocation9 [shape = 'u8[24576]{0}', space=vmem, size = 0x6000, scoped, tag = 'input window, operand 4, single buffered']
    #allocation10 [shape = 's32[1]{0}', space=sflag, size = 0x4, scoped, tag = 'scoped memory for tpu_custom_call.1']
    #allocation11 [shape = 'u8[1536]{0}', space=vmem, size = 0x800, scoped, tag = 'input window, operand 5, single buffered']
    #allocation12 [shape = 'u8[24576]{0}', space=vmem, size = 0x6000, scoped, tag = 'input window, operand 6, single buffered']
    #allocation13 [shape = 's32[1]{0}', space=sflag, size = 0x4, scoped, tag = 'scoped memory for tpu_custom_call.1']
    #allocation14 [shape = 'u8[8192]{0}', space=vmem, size = 0x2000, scoped, tag = 'input window, operand 10, single buffered']
    #allocation15 [shape = 'u8[16384]{0}', space=vmem, size = 0x4000, scoped, tag = 'output window, operand 0']
    %19 = vsyncpa [#allocation4], 0
    %s20 = scalar_lea.sflag [#allocation4], 1
    %21 = vsyncpa %s20, 0
    %22 = vsyncpa [#allocation7], 0
    %s23 = scalar_lea.sflag [#allocation7], 1
    %24 = vsyncpa %s23, 0
    %25 = vsyncpa [#allocation10], 0
    %26 = vsyncpa [#allocation13], 0
    %27 = vsyncpa [#allocation5], 0
    %s28 = scalar_lea.sflag [#allocation5], 1
    %29 = vsyncpa %s28, 0
    loop: start=0, step=1, limit=4
    $region2: #{tpu_custom_call.1} parent=1 // loop_pre_header
      _
    $region3: #{tpu_custom_call.1} parent=1 // loop_header
      %s31 = sphi 0, %s35
      %p32 = scmp.ge.s32.totalorder %s31, 4
      %s41 = sphi 0, %s43
      %s44 = sphi 0, %s41
      %s45 = sphi 0, %s44
      %s61 = sphi 0, %s45
      %s67 = sphi 0, %s69
      %s70 = sphi 0, %s67
      %s71 = sphi 0, %s70
      %s87 = sphi 0, %s71
      %s93 = sphi 0, %s95
      %s96 = sphi 0, %s93
      %s97 = sphi 0, %s96
      %s113 = sphi 0, %s97
      %s119 = sphi 0, %s121
      %s122 = sphi 0, %s119
      %s123 = sphi 0, %s122
      %s139 = sphi 0, %s123
      %s143 = sphi 0, %s143
      %s145 = sphi 0, %s143
      %s146 = sphi 0, %s145
      %s160 = sphi 0, %s146
      %s164 = sphi 0, %s164
      %s166 = sphi 0, %s164
      %s167 = sphi 0, %s166
      %s181 = sphi 0, %s167
      %s185 = sphi 0, %s185
      %s187 = sphi 0, %s185
      %s188 = sphi 0, %s187
      %s202 = sphi 0, %s188
      %s206 = sphi 0, %s206
      %s208 = sphi 0, %s206
      %s209 = sphi 0, %s208
      %s223 = sphi 0, %s209
      %s227 = sphi 0, %s227
      %s229 = sphi 0, %s227
      %s230 = sphi 0, %s229
      %s244 = sphi 0, %s230
      %s248 = sphi 0, %s248
      %s250 = sphi 0, %s248
      %s251 = sphi 0, %s250
      %s265 = sphi 0, %s251
      %s269 = sphi 0, %s269
      %s271 = sphi 0, %s269
      %s272 = sphi 0, %s271
      %s286 = sphi 0, %s272
      %s290 = sphi 0, %s290
      %s292 = sphi 0, %s290
      %s293 = sphi 0, %s292
      %s307 = sphi 0, %s293
      %s313 = sphi 0, %s315
      %s316 = sphi 0, %s313
      %s317 = sphi 0, %s316
      %s333 = sphi 0, %s317
      %s339 = sphi 0, %s341
      %s342 = sphi 0, %s339
      %s343 = sphi 0, %s342
      %s359 = sphi 0, %s343
    $region4: #{tpu_custom_call.1} parent=1 // loop_header_branch
      %34 = sbr.rel (%p32) target = $region8
    $region5: #{tpu_custom_call.1} parent=1 // loop_body
      %s36 = ssub.s32 %s31, 1
      %s37 = ssub.s32 %s31, 2
      %s38 = sadd.s32 %s31, 1
      %s39 = ssub.s32 %s31, %s38
      %p40 = scmp.eq.s32.totalorder %s39, 0
      %s42 = sadd.s32 %s41, 1
      %s43 = scalar_select %p40, %s41, %s42
      %p46 = pneg %p40
      %p47 = scmp.eq.s32.totalorder %s31, 1
      %p48 = por %p46, %p47
      %p49 = scmp.ne.s32.totalorder %s41, %s44
      %p50 = scmp.eq.s32.totalorder %s31, 0
      %p51 = por %p49, %p50
      %p52 = scmp.ne.s32.totalorder %s41, %s44
      %p53 = scmp.eq.s32.totalorder %s36, 1
      %p54 = por %p52, %p53
      %p55 = scmp.ne.s32.totalorder %s44, %s45
      %p56 = scmp.eq.s32.totalorder %s36, 0
      %p57 = por %p55, %p56
      %p58 = scmp.ne.s32.totalorder %s44, %s45
      %p59 = scmp.eq.s32.totalorder %s37, 1
      %p60 = por %p58, %p59
      %p62 = scmp.ne.s32.totalorder %s45, %s61
      %p63 = scmp.eq.s32.totalorder %s37, 0
      %p64 = por %p62, %p63
      %s65 = ssub.s32 %s31, %s38
      %p66 = scmp.eq.s32.totalorder %s65, 0
      %s68 = sadd.s32 %s67, 1
      %s69 = scalar_select %p66, %s67, %s68
      %p72 = pneg %p66
      %p73 = scmp.eq.s32.totalorder %s31, 1
      %p74 = por %p72, %p73
      %p75 = scmp.ne.s32.totalorder %s67, %s70
      %p76 = scmp.eq.s32.totalorder %s31, 0
      %p77 = por %p75, %p76
      %p78 = scmp.ne.s32.totalorder %s67, %s70
      %p79 = scmp.eq.s32.totalorder %s36, 1
      %p80 = por %p78, %p79
      %p81 = scmp.ne.s32.totalorder %s70, %s71
      %p82 = scmp.eq.s32.totalorder %s36, 0
      %p83 = por %p81, %p82
      %p84 = scmp.ne.s32.totalorder %s70, %s71
      %p85 = scmp.eq.s32.totalorder %s37, 1
      %p86 = por %p84, %p85
      %p88 = scmp.ne.s32.totalorder %s71, %s87
      %p89 = scmp.eq.s32.totalorder %s37, 0
      %p90 = por %p88, %p89
      %s91 = ssub.s32 %s31, %s38
      %p92 = scmp.eq.s32.totalorder %s91, 0
      %s94 = sadd.s32 %s93, 1
      %s95 = scalar_select %p92, %s93, %s94
      %p98 = pneg %p92
      %p99 = scmp.eq.s32.totalorder %s31, 1
      %p100 = por %p98, %p99
      %p101 = scmp.ne.s32.totalorder %s93, %s96
      %p102 = scmp.eq.s32.totalorder %s31, 0
      %p103 = por %p101, %p102
      %p104 = scmp.ne.s32.totalorder %s93, %s96
      %p105 = scmp.eq.s32.totalorder %s36, 1
      %p106 = por %p104, %p105
      %p107 = scmp.ne.s32.totalorder %s96, %s97
      %p108 = scmp.eq.s32.totalorder %s36, 0
      %p109 = por %p107, %p108
      %p110 = scmp.ne.s32.totalorder %s96, %s97
      %p111 = scmp.eq.s32.totalorder %s37, 1
      %p112 = por %p110, %p111
      %p114 = scmp.ne.s32.totalorder %s97, %s113
      %p115 = scmp.eq.s32.totalorder %s37, 0
      %p116 = por %p114, %p115
      %s117 = ssub.s32 %s31, %s38
      %p118 = scmp.eq.s32.totalorder %s117, 0
      %s120 = sadd.s32 %s119, 1
      %s121 = scalar_select %p118, %s119, %s120
      %p124 = pneg %p118
      %p125 = scmp.eq.s32.totalorder %s31, 1
      %p126 = por %p124, %p125
      %p127 = scmp.ne.s32.totalorder %s119, %s122
      %p128 = scmp.eq.s32.totalorder %s31, 0
      %p129 = por %p127, %p128
      %p130 = scmp.ne.s32.totalorder %s119, %s122
      %p131 = scmp.eq.s32.totalorder %s36, 1
      %p132 = por %p130, %p131
      %p133 = scmp.ne.s32.totalorder %s122, %s123
      %p134 = scmp.eq.s32.totalorder %s36, 0
      %p135 = por %p133, %p134
      %p136 = scmp.ne.s32.totalorder %s122, %s123
      %p137 = scmp.eq.s32.totalorder %s37, 1
      %p138 = por %p136, %p137
      %p140 = scmp.ne.s32.totalorder %s123, %s139
      %p141 = scmp.eq.s32.totalorder %s37, 0
      %p142 = por %p140, %p141
      %s144 = sadd.s32 %s143, 1
      %p147 = scmp.eq.s32.totalorder %s31, 1
      %p148 = scmp.ne.s32.totalorder %s143, %s145
      %p149 = scmp.eq.s32.totalorder %s31, 0
      %p150 = por %p148, %p149
      %p151 = scmp.ne.s32.totalorder %s143, %s145
      %p152 = scmp.eq.s32.totalorder %s36, 1
      %p153 = por %p151, %p152
      %p154 = scmp.ne.s32.totalorder %s145, %s146
      %p155 = scmp.eq.s32.totalorder %s36, 0
      %p156 = por %p154, %p155
      %p157 = scmp.ne.s32.totalorder %s145, %s146
      %p158 = scmp.eq.s32.totalorder %s37, 1
      %p159 = por %p157, %p158
      %p161 = scmp.ne.s32.totalorder %s146, %s160
      %p162 = scmp.eq.s32.totalorder %s37, 0
      %p163 = por %p161, %p162
      %s165 = sadd.s32 %s164, 1
      %p168 = scmp.eq.s32.totalorder %s31, 1
      %p169 = scmp.ne.s32.totalorder %s164, %s166
      %p170 = scmp.eq.s32.totalorder %s31, 0
      %p171 = por %p169, %p170
      %p172 = scmp.ne.s32.totalorder %s164, %s166
      %p173 = scmp.eq.s32.totalorder %s36, 1
      %p174 = por %p172, %p173
      %p175 = scmp.ne.s32.totalorder %s166, %s167
      %p176 = scmp.eq.s32.totalorder %s36, 0
      %p177 = por %p175, %p176
      %p178 = scmp.ne.s32.totalorder %s166, %s167
      %p179 = scmp.eq.s32.totalorder %s37, 1
      %p180 = por %p178, %p179
      %p182 = scmp.ne.s32.totalorder %s167, %s181
      %p183 = scmp.eq.s32.totalorder %s37, 0
      %p184 = por %p182, %p183
      %s186 = sadd.s32 %s185, 1
      %p189 = scmp.eq.s32.totalorder %s31, 1
      %p190 = scmp.ne.s32.totalorder %s185, %s187
      %p191 = scmp.eq.s32.totalorder %s31, 0
      %p192 = por %p190, %p191
      %p193 = scmp.ne.s32.totalorder %s185, %s187
      %p194 = scmp.eq.s32.totalorder %s36, 1
      %p195 = por %p193, %p194
      %p196 = scmp.ne.s32.totalorder %s187, %s188
      %p197 = scmp.eq.s32.totalorder %s36, 0
      %p198 = por %p196, %p197
      %p199 = scmp.ne.s32.totalorder %s187, %s188
      %p200 = scmp.eq.s32.totalorder %s37, 1
      %p201 = por %p199, %p200
      %p203 = scmp.ne.s32.totalorder %s188, %s202
      %p204 = scmp.eq.s32.totalorder %s37, 0
      %p205 = por %p203, %p204
      %s207 = sadd.s32 %s206, 1
      %p210 = scmp.eq.s32.totalorder %s31, 1
      %p211 = scmp.ne.s32.totalorder %s206, %s208
      %p212 = scmp.eq.s32.totalorder %s31, 0
      %p213 = por %p211, %p212
      %p214 = scmp.ne.s32.totalorder %s206, %s208
      %p215 = scmp.eq.s32.totalorder %s36, 1
      %p216 = por %p214, %p215
      %p217 = scmp.ne.s32.totalorder %s208, %s209
      %p218 = scmp.eq.s32.totalorder %s36, 0
      %p219 = por %p217, %p218
      %p220 = scmp.ne.s32.totalorder %s208, %s209
      %p221 = scmp.eq.s32.totalorder %s37, 1
      %p222 = por %p220, %p221
      %p224 = scmp.ne.s32.totalorder %s209, %s223
      %p225 = scmp.eq.s32.totalorder %s37, 0
      %p226 = por %p224, %p225
      %s228 = sadd.s32 %s227, 1
      %p231 = scmp.eq.s32.totalorder %s31, 1
      %p232 = scmp.ne.s32.totalorder %s227, %s229
      %p233 = scmp.eq.s32.totalorder %s31, 0
      %p234 = por %p232, %p233
      %p235 = scmp.ne.s32.totalorder %s227, %s229
      %p236 = scmp.eq.s32.totalorder %s36, 1
      %p237 = por %p235, %p236
      %p238 = scmp.ne.s32.totalorder %s229, %s230
      %p239 = scmp.eq.s32.totalorder %s36, 0
      %p240 = por %p238, %p239
      %p241 = scmp.ne.s32.totalorder %s229, %s230
      %p242 = scmp.eq.s32.totalorder %s37, 1
      %p243 = por %p241, %p242
      %p245 = scmp.ne.s32.totalorder %s230, %s244
      %p246 = scmp.eq.s32.totalorder %s37, 0
      %p247 = por %p245, %p246
      %s249 = sadd.s32 %s248, 1
      %p252 = scmp.eq.s32.totalorder %s31, 1
      %p253 = scmp.ne.s32.totalorder %s248, %s250
      %p254 = scmp.eq.s32.totalorder %s31, 0
      %p255 = por %p253, %p254
      %p256 = scmp.ne.s32.totalorder %s248, %s250
      %p257 = scmp.eq.s32.totalorder %s36, 1
      %p258 = por %p256, %p257
      %p259 = scmp.ne.s32.totalorder %s250, %s251
      %p260 = scmp.eq.s32.totalorder %s36, 0
      %p261 = por %p259, %p260
      %p262 = scmp.ne.s32.totalorder %s250, %s251
      %p263 = scmp.eq.s32.totalorder %s37, 1
      %p264 = por %p262, %p263
      %p266 = scmp.ne.s32.totalorder %s251, %s265
      %p267 = scmp.eq.s32.totalorder %s37, 0
      %p268 = por %p266, %p267
      %s270 = sadd.s32 %s269, 1
      %p273 = scmp.eq.s32.totalorder %s31, 1
      %p274 = scmp.ne.s32.totalorder %s269, %s271
      %p275 = scmp.eq.s32.totalorder %s31, 0
      %p276 = por %p274, %p275
      %p277 = scmp.ne.s32.totalorder %s269, %s271
      %p278 = scmp.eq.s32.totalorder %s36, 1
      %p279 = por %p277, %p278
      %p280 = scmp.ne.s32.totalorder %s271, %s272
      %p281 = scmp.eq.s32.totalorder %s36, 0
      %p282 = por %p280, %p281
      %p283 = scmp.ne.s32.totalorder %s271, %s272
      %p284 = scmp.eq.s32.totalorder %s37, 1
      %p285 = por %p283, %p284
      %p287 = scmp.ne.s32.totalorder %s272, %s286
      %p288 = scmp.eq.s32.totalorder %s37, 0
      %p289 = por %p287, %p288
      %s291 = sadd.s32 %s290, 1
      %p294 = scmp.eq.s32.totalorder %s31, 1
      %p295 = scmp.ne.s32.totalorder %s290, %s292
      %p296 = scmp.eq.s32.totalorder %s31, 0
      %p297 = por %p295, %p296
      %p298 = scmp.ne.s32.totalorder %s290, %s292
      %p299 = scmp.eq.s32.totalorder %s36, 1
      %p300 = por %p298, %p299
      %p301 = scmp.ne.s32.totalorder %s292, %s293
      %p302 = scmp.eq.s32.totalorder %s36, 0
      %p303 = por %p301, %p302
      %p304 = scmp.ne.s32.totalorder %s292, %s293
      %p305 = scmp.eq.s32.totalorder %s37, 1
      %p306 = por %p304, %p305
      %p308 = scmp.ne.s32.totalorder %s293, %s307
      %p309 = scmp.eq.s32.totalorder %s37, 0
      %p310 = por %p308, %p309
      %s311 = ssub.s32 %s31, %s38
      %p312 = scmp.eq.s32.totalorder %s311, 0
      %s314 = sadd.s32 %s313, 1
      %s315 = scalar_select %p312, %s313, %s314
      %p318 = pneg %p312
      %p319 = scmp.eq.s32.totalorder %s31, 1
      %p320 = por %p318, %p319
      %p321 = scmp.ne.s32.totalorder %s313, %s316
      %p322 = scmp.eq.s32.totalorder %s31, 0
      %p323 = por %p321, %p322
      %p324 = scmp.ne.s32.totalorder %s313, %s316
      %p325 = scmp.eq.s32.totalorder %s36, 1
      %p326 = por %p324, %p325
      %p327 = scmp.ne.s32.totalorder %s316, %s317
      %p328 = scmp.eq.s32.totalorder %s36, 0
      %p329 = por %p327, %p328
      %p330 = scmp.ne.s32.totalorder %s316, %s317
      %p331 = scmp.eq.s32.totalorder %s37, 1
      %p332 = por %p330, %p331
      %p334 = scmp.ne.s32.totalorder %s317, %s333
      %p335 = scmp.eq.s32.totalorder %s37, 0
      %p336 = por %p334, %p335
      %s337 = ssub.s32 %s31, %s38
      %p338 = scmp.eq.s32.totalorder %s337, 0
      %s340 = sadd.s32 %s339, 1
      %s341 = scalar_select %p338, %s339, %s340
      %p344 = pneg %p338
      %p345 = scmp.eq.s32.totalorder %s31, 1
      %p346 = por %p344, %p345
      %p347 = scmp.ne.s32.totalorder %s339, %s342
      %p348 = scmp.eq.s32.totalorder %s31, 0
      %p349 = por %p347, %p348
      %p350 = scmp.ne.s32.totalorder %s339, %s342
      %p351 = scmp.eq.s32.totalorder %s36, 1
      %p352 = por %p350, %p351
      %p353 = scmp.ne.s32.totalorder %s342, %s343
      %p354 = scmp.eq.s32.totalorder %s36, 0
      %p355 = por %p353, %p354
      %p356 = scmp.ne.s32.totalorder %s342, %s343
      %p357 = scmp.eq.s32.totalorder %s37, 1
      %p358 = por %p356, %p357
      %p360 = scmp.ne.s32.totalorder %s343, %s359
      %p361 = scmp.eq.s32.totalorder %s37, 0
      %p362 = por %p360, %p361
      %p363 = scmp.le.s32.totalorder 1, %s31
      %p364 = scmp.lt.s32.totalorder %s31, 3
      %p365 = pnand %p363, %p364
      %p366 = pneg %p365
      // Predicated region
      $region9: #{tpu_custom_call.1} parent=5 // pred_check
        _
      $region10: #{tpu_custom_call.1} parent=5 // pred_check_branch
        %368 = sbr.rel (%p365) target = $region12
      $region11: #{tpu_custom_call.1} parent=5 // pred_region
        %s369 = ssub.s32 %s31, 1
        // Predicated region
        $region13: #{tpu_custom_call.1} parent=11 // pred_check
          %p370 = pneg %p156
        $region14: #{tpu_custom_call.1} parent=11 // pred_check_branch
          %372 = sbr.rel (%p370) target = $region16
        $region15: #{tpu_custom_call.1} parent=11 // pred_region
          %s374 = ssub.s32 768, 768
          %375 = vsyncadd [#allocation10], %s374
          %s376 = sshll.u32 [#allocation9], 4
          %s377 = int_to_ptr.vmem [resolvable:$true] %s376
          %382 = dma.hbm_to_vmem [thread:$0]  %s4, 768, %s377, [#allocation10], 64, 64, 4
        $region16: #{tpu_custom_call.1} parent=11 // pred_fallthru
          _
        // Predicated region
        $region17: #{tpu_custom_call.1} parent=11 // pred_check
          %p383 = pneg %p177
        $region18: #{tpu_custom_call.1} parent=11 // pred_check_branch
          %385 = sbr.rel (%p383) target = $region20
        $region19: #{tpu_custom_call.1} parent=11 // pred_region
          %s387 = ssub.s32 48, 48
          %388 = vsyncadd [#allocation10], %s387
          %s389 = sshll.u32 [#allocation11], 4
          %s390 = int_to_ptr.vmem [resolvable:$true] %s389
          %395 = dma.hbm_to_vmem [thread:$0]  %s5, 48, %s390, [#allocation10], 16, 16, 1
        $region20: #{tpu_custom_call.1} parent=11 // pred_fallthru
          _
        // Predicated region
        $region21: #{tpu_custom_call.1} parent=11 // pred_check
          %p396 = pneg %p198
        $region22: #{tpu_custom_call.1} parent=11 // pred_check_branch
          %398 = sbr.rel (%p396) target = $region24
        $region23: #{tpu_custom_call.1} parent=11 // pred_region
          %s400 = ssub.s32 768, 768
          %401 = vsyncadd [#allocation13], %s400
          %s402 = sshll.u32 [#allocation12], 4
          %s403 = int_to_ptr.vmem [resolvable:$true] %s402
          %408 = dma.hbm_to_vmem [thread:$0]  %s6, 768, %s403, [#allocation13], 64, 64, 4
        $region24: #{tpu_custom_call.1} parent=11 // pred_fallthru
          _
        // Predicated region
        $region25: #{tpu_custom_call.1} parent=11 // pred_check
          %p409 = pneg %p219
        $region26: #{tpu_custom_call.1} parent=11 // pred_check_branch
          %411 = sbr.rel (%p409) target = $region28
        $region27: #{tpu_custom_call.1} parent=11 // pred_region
          _
        $region28: #{tpu_custom_call.1} parent=11 // pred_fallthru
          _
        // Predicated region
        $region29: #{tpu_custom_call.1} parent=11 // pred_check
          %p412 = pneg %p240
        $region30: #{tpu_custom_call.1} parent=11 // pred_check_branch
          %414 = sbr.rel (%p412) target = $region32
        $region31: #{tpu_custom_call.1} parent=11 // pred_region
          _
        $region32: #{tpu_custom_call.1} parent=11 // pred_fallthru
          _
        // Predicated region
        $region33: #{tpu_custom_call.1} parent=11 // pred_check
          %p415 = pneg %p261
        $region34: #{tpu_custom_call.1} parent=11 // pred_check_branch
          %417 = sbr.rel (%p415) target = $region36
        $region35: #{tpu_custom_call.1} parent=11 // pred_region
          _
        $region36: #{tpu_custom_call.1} parent=11 // pred_fallthru
          _
        // Predicated region
        $region37: #{tpu_custom_call.1} parent=11 // pred_check
          %p418 = pneg %p282
        $region38: #{tpu_custom_call.1} parent=11 // pred_check_branch
          %420 = sbr.rel (%p418) target = $region40
        $region39: #{tpu_custom_call.1} parent=11 // pred_region
          %s422 = ssub.s32 256, 256
          %423 = vsyncadd [#allocation13], %s422
          %s424 = sshll.u32 [#allocation14], 4
          %s425 = int_to_ptr.vmem [resolvable:$true] %s424
          %430 = dma.hbm_to_vmem [thread:$0]  %s10, 256, %s425, [#allocation13], 64, 64, 4
        $region40: #{tpu_custom_call.1} parent=11 // pred_fallthru
          _
        // Predicated region
        $region41: #{tpu_custom_call.1} parent=11 // pred_check
          %p431 = pneg %p303
        $region42: #{tpu_custom_call.1} parent=11 // pred_check_branch
          %433 = sbr.rel (%p431) target = $region44
        $region43: #{tpu_custom_call.1} parent=11 // pred_region
          _
        $region44: #{tpu_custom_call.1} parent=11 // pred_fallthru
          _
      $region12: #{tpu_custom_call.1} parent=5 // pred_fallthru
        _
      %p434 = scmp.lt.s32.totalorder %s31, 2
      // Predicated region
      $region45: #{tpu_custom_call.1} parent=5 // pred_check
        %p435 = pneg %p434
      $region46: #{tpu_custom_call.1} parent=5 // pred_check_branch
        %437 = sbr.rel (%p435) target = $region48
      $region47: #{tpu_custom_call.1} parent=5 // pred_region
        // Predicated region
        $region49: #{tpu_custom_call.1} parent=47 // pred_check
          %p438 = pneg %p51
        $region50: #{tpu_custom_call.1} parent=47 // pred_check_branch
          %440 = sbr.rel (%p438) target = $region52
        $region51: #{tpu_custom_call.1} parent=47 // pred_region
          %s441 = sand.u32 %s41, 1
          %s442 = scalar_lea.sflag [#allocation4], %s441
          %s443 = sand.u32 %s41, 1
          %s444 = smul.addr %s443, 16
          %s445 = scalar_lea.vmem [#allocation3], %s444
          %s447 = ssub.s32 256, 256
          %448 = vsyncadd %s442, %s447
          %s449 = smul.addr %s31, 2
          %s450 = smul.addr %s449, 128
          %s451 = scalar_lea.hbm %s0, %s450
          %s452 = sshll.u32 %s445, 4
          %s453 = int_to_ptr.vmem [resolvable:$true] %s452
          %458 = dma.hbm_to_vmem [thread:$0]  %s451, 256, %s453, %s442, 128, 128, 8
        $region52: #{tpu_custom_call.1} parent=47 // pred_fallthru
          _
        // Predicated region
        $region53: #{tpu_custom_call.1} parent=47 // pred_check
          %p459 = pneg %p77
        $region54: #{tpu_custom_call.1} parent=47 // pred_check_branch
          %461 = sbr.rel (%p459) target = $region56
        $region55: #{tpu_custom_call.1} parent=47 // pred_region
          %s462 = sand.u32 %s31, 1
          %s463 = scalar_lea.sflag [#allocation7], %s462
          %s464 = sand.u32 %s67, 1
          %s465 = smul.addr %s464, 16
          %s466 = scalar_lea.vmem [#allocation6], %s465
          %s468 = ssub.s32 256, 256
          %469 = vsyncadd %s463, %s468
          %s470 = smul.addr %s31, 2
          %s471 = smul.addr %s470, 128
          %s472 = scalar_lea.hbm %s1, %s471
          %s473 = sshll.u32 %s466, 4
          %s474 = int_to_ptr.vmem [resolvable:$true] %s473
          %479 = dma.hbm_to_vmem [thread:$0]  %s472, 256, %s474, %s463, 128, 128, 8
        $region56: #{tpu_custom_call.1} parent=47 // pred_fallthru
          _
        // Predicated region
        $region57: #{tpu_custom_call.1} parent=47 // pred_check
          %p480 = pneg %p103
        $region58: #{tpu_custom_call.1} parent=47 // pred_check_branch
          %482 = sbr.rel (%p480) target = $region60
        $region59: #{tpu_custom_call.1} parent=47 // pred_region
          %s483 = sand.u32 %s31, 1
          %s484 = scalar_lea.sflag [#allocation7], %s483
          %s485 = sand.u32 %s93, 1
          %s486 = smul.addr %s485, 16
          %s487 = scalar_lea.vmem [#allocation8], %s486
          %s489 = ssub.s32 256, 256
          %490 = vsyncadd %s484, %s489
          %s491 = smul.addr %s31, 2
          %s492 = smul.addr %s491, 128
          %s493 = scalar_lea.hbm %s2, %s492
          %s494 = sshll.u32 %s487, 4
          %s495 = int_to_ptr.vmem [resolvable:$true] %s494
          %500 = dma.hbm_to_vmem [thread:$0]  %s493, 256, %s495, %s484, 128, 128, 8
        $region60: #{tpu_custom_call.1} parent=47 // pred_fallthru
          _
        // Predicated region
        $region61: #{tpu_custom_call.1} parent=47 // pred_check
          %p501 = pneg %p129
        $region62: #{tpu_custom_call.1} parent=47 // pred_check_branch
          %503 = sbr.rel (%p501) target = $region64
        $region63: #{tpu_custom_call.1} parent=47 // pred_region
          %p504 = scmp.lt.s32.totalorder %s31, 1
          %s505 = scalar_select %p504, %s31, 1
          %s506 = smul.addr %s505, 2
          %s507 = smul.addr %s506, 8
          %s508 = scalar_lea.vmem %s3, %s507
        $region64: #{tpu_custom_call.1} parent=47 // pred_fallthru
          _
      $region48: #{tpu_custom_call.1} parent=5 // pred_fallthru
        _
      %p509 = scmp.le.s32.totalorder 1, %s31
      %p510 = scmp.lt.s32.totalorder %s31, 3
      %p511 = pnand %p509, %p510
      %p512 = pneg %p511
      // Predicated region
      $region65: #{tpu_custom_call.1} parent=5 // pred_check
        _
      $region66: #{tpu_custom_call.1} parent=5 // pred_check_branch
        %514 = sbr.rel (%p511) target = $region68
      $region67: #{tpu_custom_call.1} parent=5 // pred_region
        %s515 = ssub.s32 %s31, 1
        %s516 = sand.u32 %s44, 1
        %s517 = scalar_lea.sflag [#allocation4], %s516
        %s518 = sand.u32 %s44, 1
        %s519 = smul.addr %s518, 16
        %s520 = scalar_lea.vmem [#allocation3], %s519
        // Predicated region
        $region69: #{tpu_custom_call.1} parent=67 // pred_check
          %p521 = pneg %p57
        $region70: #{tpu_custom_call.1} parent=67 // pred_check_branch
          %523 = sbr.rel (%p521) target = $region72
        $region71: #{tpu_custom_call.1} parent=67 // pred_region
          %524 = dma.done %s517, 256
        $region72: #{tpu_custom_call.1} parent=67 // pred_fallthru
          _
        %s525 = sand.u32 %s36, 1
        %s526 = scalar_lea.sflag [#allocation7], %s525
        %s527 = sand.u32 %s70, 1
        %s528 = smul.addr %s527, 16
        %s529 = scalar_lea.vmem [#allocation6], %s528
        // Predicated region
        $region73: #{tpu_custom_call.1} parent=67 // pred_check
          %p530 = pneg %p83
        $region74: #{tpu_custom_call.1} parent=67 // pred_check_branch
          %532 = sbr.rel (%p530) target = $region76
        $region75: #{tpu_custom_call.1} parent=67 // pred_region
          %533 = dma.done %s526, 256
        $region76: #{tpu_custom_call.1} parent=67 // pred_fallthru
          _
        %s534 = sand.u32 %s36, 1
        %s535 = scalar_lea.sflag [#allocation7], %s534
        %s536 = sand.u32 %s96, 1
        %s537 = smul.addr %s536, 16
        %s538 = scalar_lea.vmem [#allocation8], %s537
        // Predicated region
        $region77: #{tpu_custom_call.1} parent=67 // pred_check
          %p539 = pneg %p109
        $region78: #{tpu_custom_call.1} parent=67 // pred_check_branch
          %541 = sbr.rel (%p539) target = $region80
        $region79: #{tpu_custom_call.1} parent=67 // pred_region
          %542 = dma.done %s535, 256
        $region80: #{tpu_custom_call.1} parent=67 // pred_fallthru
          _
        // Predicated region
        $region81: #{tpu_custom_call.1} parent=67 // pred_check
          %p543 = pneg %p156
        $region82: #{tpu_custom_call.1} parent=67 // pred_check_branch
          %545 = sbr.rel (%p543) target = $region84
        $region83: #{tpu_custom_call.1} parent=67 // pred_region
          %546 = dma.done [#allocation10], 768
        $region84: #{tpu_custom_call.1} parent=67 // pred_fallthru
          _
        // Predicated region
        $region85: #{tpu_custom_call.1} parent=67 // pred_check
          %p547 = pneg %p177
        $region86: #{tpu_custom_call.1} parent=67 // pred_check_branch
          %549 = sbr.rel (%p547) target = $region88
        $region87: #{tpu_custom_call.1} parent=67 // pred_region
          %550 = dma.done [#allocation10], 48
        $region88: #{tpu_custom_call.1} parent=67 // pred_fallthru
          _
        // Predicated region
        $region89: #{tpu_custom_call.1} parent=67 // pred_check
          %p551 = pneg %p198
        $region90: #{tpu_custom_call.1} parent=67 // pred_check_branch
          %553 = sbr.rel (%p551) target = $region92
        $region91: #{tpu_custom_call.1} parent=67 // pred_region
          %554 = dma.done [#allocation13], 768
        $region92: #{tpu_custom_call.1} parent=67 // pred_fallthru
          _
        // Predicated region
        $region93: #{tpu_custom_call.1} parent=67 // pred_check
          %p555 = pneg %p282
        $region94: #{tpu_custom_call.1} parent=67 // pred_check_branch
          %557 = sbr.rel (%p555) target = $region96
        $region95: #{tpu_custom_call.1} parent=67 // pred_region
          %558 = dma.done [#allocation13], 256
        $region96: #{tpu_custom_call.1} parent=67 // pred_fallthru
          _
        %s559 = sand.u32 %s44, 1
        %s560 = scalar_lea.sflag [#allocation4], %s559
        %s561 = sand.u32 %s44, 1
        %s562 = smul.addr %s561, 16
        %s563 = scalar_lea.vmem [#allocation3], %s562
        %p564 = pneg %p57
        %p565 = pneg %p54
        %s566 = sand.u32 %s36, 1
        %s567 = scalar_lea.sflag [#allocation7], %s566
        %s568 = sand.u32 %s70, 1
        %s569 = smul.addr %s568, 16
        %s570 = scalar_lea.vmem [#allocation6], %s569
        %p571 = pneg %p83
        %p572 = pneg %p80
        %s573 = sand.u32 %s36, 1
        %s574 = scalar_lea.sflag [#allocation7], %s573
        %s575 = sand.u32 %s96, 1
        %s576 = smul.addr %s575, 16
        %s577 = scalar_lea.vmem [#allocation8], %s576
        %p578 = pneg %p109
        %p579 = pneg %p106
        %p580 = scmp.lt.s32.totalorder %s36, 1
        %s581 = scalar_select %p580, %s36, 1
        %s582 = smul.addr %s581, 2
        %s583 = smul.addr %s582, 8
        %s584 = scalar_lea.vmem %s3, %s583
        %p585 = pneg %p135
        %p586 = pneg %p132
        %p587 = pneg %p156
        %p588 = pneg %p153
        %p589 = pneg %p177
        %p590 = pneg %p174
        %p591 = pneg %p198
        %p592 = pneg %p195
        %p593 = pneg %p219
        %p594 = pneg %p216
        %p595 = pneg %p240
        %p596 = pneg %p237
        %p597 = pneg %p261
        %p598 = pneg %p258
        %p599 = pneg %p282
        %p600 = pneg %p279
        %p601 = pneg %p303
        %p602 = pneg %p300
        %p603 = pneg %p329
        %p604 = pneg %p326
        %s605 = sand.u32 %s316, 1
        %s606 = scalar_lea.sflag [#allocation5], %s605
        %s607 = sand.u32 %s316, 1
        %s608 = smul.addr %s607, 16
        %s609 = scalar_lea.vmem [#allocation15], %s608
        %p610 = pneg %p355
        %p611 = pneg %p352
        %p612 = scmp.lt.s32.totalorder %s36, 1
        %s613 = scalar_select %p612, %s36, 1
        %s614 = smul.addr %s613, 8
        %s615 = smul.addr %s614, 8
        %s616 = scalar_lea.vmem %s13, %s615
        %p617 = scmp.lt.s32.totalorder %s36, 1
        %s618 = scalar_select %p617, %s36, 1
        %s619 = smul.addr %s618, 2
        %s620 = smul.addr %s619, 8
        %s621 = scalar_lea.vmem %s3, %s620
        %p622 = scmp.lt.s32.totalorder %s36, 1
        %s623 = scalar_select %p622, %s36, 1
        %s624 = smul.addr %s623, 8
        %s625 = smul.addr %s624, 8
        %s626 = scalar_lea.vmem %s13, %s625
        %v628 = vlaneseq
        %v629 = vshrl.u32 %v628, 7
        %v630 = vadd.s32 %v629, 8
        %v631 = vld [vmem:[%s520] sm:$0xff]
        %v632 = vld [vmem:[%s520 + $0x8] sm:$0xff]
        %v633 = vpack.c.bf16 %v632, %v631
        %v634 = vld [vmem:[%s529] sm:$0xff]
        %v635 = vld [vmem:[%s529 + $0x8] sm:$0xff]
        %v636 = vpack.c.bf16 %v635, %v634
        %v637 = vld [vmem:[%s538] sm:$0xff]
        %v638 = vld [vmem:[%s538 + $0x8] sm:$0xff]
        %v639 = vpack.c.bf16 %v638, %v637
        %v640 = vld [vmem:[#allocation9] sm:$0xf]
        %v641 = vld [vmem:[#allocation9 + $0x4] sm:$0xf]
        %v642 = vld [vmem:[#allocation9 + $0x8] sm:$0xf]
        %v643 = vld [vmem:[#allocation9 + $0xc] sm:$0xf]
        %v644 = vld [vmem:[#allocation11] sm:$0x1]
        %v646 = vlaneseq
        %v647 = vshrl.u32 %v646, 7
        %v648 = vsub.s32 0, %v647
        %v649 = vrot.slane %v644, %v648
        %v655 = vunpack.c.l.b16 %v640
        %v656 = vunpack.c.l.b16 %v641
        %v657 = vunpack.c.l.b16 %v642
        %v658 = vunpack.c.l.b16 %v643
        %v659 = vpack.c.b16 %v656, %v655
        %v660 = vpack.c.b16 %v658, %v657
        %vm663 = vcmask 261120
        %v665 = vsel %vm663, %v633, 0
        %667 = vmatprep.subr.bf16.mxu0 0
        %668 = vmatpush1.bf16.msra.mxu0 0
        %669 = vmatprep.subr.bf16.mxu0 0
        %670 = vmatpush1.bf16.msra.mxu0 0
        %671 = vmatprep.subr.bf16.mxu0 0
        %672 = vmatpush1.bf16.msra.mxu0 0
        %673 = vmatprep.subr.bf16.mxu0 0
        %674 = vmatpush1.bf16.msra.mxu0 0
        %675 = vmatprep.subr.bf16.mxu0 0
        %676 = vmatpush1.bf16.msra.mxu0 0
        %677 = vmatprep.subr.bf16.mxu0 0
        %678 = vmatpush1.bf16.msra.mxu0 0
        %679 = vmatprep.subr.bf16.mxu0 0
        %680 = vmatpush1.bf16.msra.mxu0 %v660
        %681 = vmatprep.subr.bf16.mxu0 0
        %682 = vmatpush1.bf16.msra.mxu0 %v659
        %683 = vmatprep.subr.bf16.mxu0 0
        %684 = vmatpush2.bf16.msra.mxu0 0
        %685 = vmatprep.subr.bf16.mxu0 0
        %686 = vmatpush2.bf16.msra.mxu0 0
        %687 = vmatprep.subr.bf16.mxu0 0
        %688 = vmatpush2.bf16.msra.mxu0 0
        %689 = vmatprep.subr.bf16.mxu0 0
        %690 = vmatpush2.bf16.msra.mxu0 0
        %691 = vmatprep.subr.bf16.mxu0 0
        %692 = vmatpush2.bf16.msra.mxu0 0
        %693 = vmatprep.subr.bf16.mxu0 0
        %694 = vmatpush2.bf16.msra.mxu0 0
        %695 = vmatprep.subr.bf16.mxu0 0
        %696 = vmatpush2.bf16.msra.mxu0 0
        %697 = vmatprep.subr.bf16.mxu0 0
        %698 = vmatpush2.bf16.msra.mxu0 0
        %699 = vmatprep.mubr.bf16.mxu0 0
        %700 = vmatmul.mubr.bf16.gmra.mxu0 %v665
        %v701 = vpop.f32.mrf.mxu0
        %v702 = vadd.f32 %v649, %v701
        %v703 = vpop.f32.mrf.mxu0
        %v704 = vpop.f32.mrf.mxu0
        %v705 = vadd.f32 %v649, %v704
        %v706 = vpop.f32.mrf.mxu0
        %707 = vdwg.mxu0
        %s708 = scalar_lea.vmem [#allocation9], 16
        %v709 = vld [vmem:[%s708] sm:$0xf]
        %v710 = vld [vmem:[%s708 + $0x4] sm:$0xf]
        %v711 = vld [vmem:[%s708 + $0x8] sm:$0xf]
        %v712 = vld [vmem:[%s708 + $0xc] sm:$0xf]
        %s713 = scalar_lea.vmem [#allocation11], 1
        %v714 = vld [vmem:[%s713] sm:$0x1]
        %v716 = vlaneseq
        %v717 = vshrl.u32 %v716, 7
        %v718 = vsub.s32 0, %v717
        %v719 = vrot.slane %v714, %v718
        %v725 = vunpack.c.l.b16 %v709
        %v726 = vunpack.c.l.b16 %v710
        %v727 = vunpack.c.l.b16 %v711
        %v728 = vunpack.c.l.b16 %v712
        %v729 = vpack.c.b16 %v726, %v725
        %v730 = vpack.c.b16 %v728, %v727
        %v734 = vsel %vm663, %v636, 0
        %736 = vmatprep.subr.bf16.mxu0 0
        %737 = vmatpush1.bf16.msra.mxu0 0
        %738 = vmatprep.subr.bf16.mxu0 0
        %739 = vmatpush1.bf16.msra.mxu0 0
        %740 = vmatprep.subr.bf16.mxu0 0
        %741 = vmatpush1.bf16.msra.mxu0 0
        %742 = vmatprep.subr.bf16.mxu0 0
        %743 = vmatpush1.bf16.msra.mxu0 0
        %744 = vmatprep.subr.bf16.mxu0 0
        %745 = vmatpush1.bf16.msra.mxu0 0
        %746 = vmatprep.subr.bf16.mxu0 0
        %747 = vmatpush1.bf16.msra.mxu0 0
        %748 = vmatprep.subr.bf16.mxu0 0
        %749 = vmatpush1.bf16.msra.mxu0 %v730
        %750 = vmatprep.subr.bf16.mxu0 0
        %751 = vmatpush1.bf16.msra.mxu0 %v729
        %752 = vmatprep.subr.bf16.mxu0 0
        %753 = vmatpush2.bf16.msra.mxu0 0
        %754 = vmatprep.subr.bf16.mxu0 0
        %755 = vmatpush2.bf16.msra.mxu0 0
        %756 = vmatprep.subr.bf16.mxu0 0
        %757 = vmatpush2.bf16.msra.mxu0 0
        %758 = vmatprep.subr.bf16.mxu0 0
        %759 = vmatpush2.bf16.msra.mxu0 0
        %760 = vmatprep.subr.bf16.mxu0 0
        %761 = vmatpush2.bf16.msra.mxu0 0
        %762 = vmatprep.subr.bf16.mxu0 0
        %763 = vmatpush2.bf16.msra.mxu0 0
        %764 = vmatprep.subr.bf16.mxu0 0
        %765 = vmatpush2.bf16.msra.mxu0 0
        %766 = vmatprep.subr.bf16.mxu0 0
        %767 = vmatpush2.bf16.msra.mxu0 0
        %768 = vmatprep.mubr.bf16.mxu0 0
        %769 = vmatmul.mubr.bf16.gmra.mxu0 %v734
        %v770 = vpop.f32.mrf.mxu0
        %v771 = vadd.f32 %v719, %v770
        %v772 = vpop.f32.mrf.mxu0
        %v773 = vpop.f32.mrf.mxu0
        %v774 = vadd.f32 %v719, %v773
        %v775 = vpop.f32.mrf.mxu0
        %776 = vdwg.mxu0
        %s777 = scalar_lea.vmem [#allocation9], 32
        %v778 = vld [vmem:[%s777] sm:$0xf]
        %v779 = vld [vmem:[%s777 + $0x4] sm:$0xf]
        %v780 = vld [vmem:[%s777 + $0x8] sm:$0xf]
        %v781 = vld [vmem:[%s777 + $0xc] sm:$0xf]
        %s782 = scalar_lea.vmem [#allocation11], 2
        %v783 = vld [vmem:[%s782] sm:$0x1]
        %v785 = vlaneseq
        %v786 = vshrl.u32 %v785, 7
        %v787 = vsub.s32 0, %v786
        %v788 = vrot.slane %v783, %v787
        %v794 = vunpack.c.l.b16 %v778
        %v795 = vunpack.c.l.b16 %v779
        %v796 = vunpack.c.l.b16 %v780
        %v797 = vunpack.c.l.b16 %v781
        %v798 = vpack.c.b16 %v795, %v794
        %v799 = vpack.c.b16 %v797, %v796
        %v803 = vsel %vm663, %v639, 0
        %805 = vmatprep.subr.bf16.mxu0 0
        %806 = vmatpush1.bf16.msra.mxu0 0
        %807 = vmatprep.subr.bf16.mxu0 0
        %808 = vmatpush1.bf16.msra.mxu0 0
        %809 = vmatprep.subr.bf16.mxu0 0
        %810 = vmatpush1.bf16.msra.mxu0 0
        %811 = vmatprep.subr.bf16.mxu0 0
        %812 = vmatpush1.bf16.msra.mxu0 0
        %813 = vmatprep.subr.bf16.mxu0 0
        %814 = vmatpush1.bf16.msra.mxu0 0
        %815 = vmatprep.subr.bf16.mxu0 0
        %816 = vmatpush1.bf16.msra.mxu0 0
        %817 = vmatprep.subr.bf16.mxu0 0
        %818 = vmatpush1.bf16.msra.mxu0 %v799
        %819 = vmatprep.subr.bf16.mxu0 0
        %820 = vmatpush1.bf16.msra.mxu0 %v798
        %821 = vmatprep.subr.bf16.mxu0 0
        %822 = vmatpush2.bf16.msra.mxu0 0
        %823 = vmatprep.subr.bf16.mxu0 0
        %824 = vmatpush2.bf16.msra.mxu0 0
        %825 = vmatprep.subr.bf16.mxu0 0
        %826 = vmatpush2.bf16.msra.mxu0 0
        %827 = vmatprep.subr.bf16.mxu0 0
        %828 = vmatpush2.bf16.msra.mxu0 0
        %829 = vmatprep.subr.bf16.mxu0 0
        %830 = vmatpush2.bf16.msra.mxu0 0
        %831 = vmatprep.subr.bf16.mxu0 0
        %832 = vmatpush2.bf16.msra.mxu0 0
        %833 = vmatprep.subr.bf16.mxu0 0
        %834 = vmatpush2.bf16.msra.mxu0 0
        %835 = vmatprep.subr.bf16.mxu0 0
        %836 = vmatpush2.bf16.msra.mxu0 0
        %837 = vmatprep.mubr.bf16.mxu0 0
        %838 = vmatmul.mubr.bf16.gmra.mxu0 %v803
        %v839 = vpop.f32.mrf.mxu0
        %v840 = vadd.f32 %v788, %v839
        %v841 = vpop.f32.mrf.mxu0
        %v842 = vpop.f32.mrf.mxu0
        %v843 = vadd.f32 %v788, %v842
        %v844 = vpop.f32.mrf.mxu0
        %845 = vdwg.mxu0
        %v846 = vpack.c.bf16 %v705, %v702
        %v847 = vpack.c.bf16 %v774, %v771
        %vm848 = vcmask 64512
        %v850 = vsel %vm848, %v846, 0
        %v853 = vsel %vm848, %v847, 0
        %855 = vmatprep.subr.bf16.mxu0 0
        %856 = vmatpush1.bf16.xpose.msra.mxu0 0
        %857 = vmatprep.subr.bf16.mxu0 0
        %858 = vmatpush1.bf16.xpose.msra.mxu0 0
        %859 = vmatprep.subr.bf16.mxu0 0
        %860 = vmatpush1.bf16.xpose.msra.mxu0 0
        %861 = vmatprep.subr.bf16.mxu0 0
        %862 = vmatpush1.bf16.xpose.msra.mxu0 0
        %863 = vmatprep.subr.bf16.mxu0 0
        %864 = vmatpush1.bf16.xpose.msra.mxu0 0
        %865 = vmatprep.subr.bf16.mxu0 0
        %866 = vmatpush1.bf16.xpose.msra.mxu0 0
        %867 = vmatprep.subr.bf16.mxu0 0
        %868 = vmatpush1.bf16.xpose.msra.mxu0 0
        %869 = vmatprep.subr.bf16.mxu0 0
        %870 = vmatpush1.bf16.xpose.msra.mxu0 %v853
        %871 = vmatprep.subr.bf16.mxu0 0
        %872 = vmatpush2.bf16.xpose.msra.mxu0 0
        %873 = vmatprep.subr.bf16.mxu0 0
        %874 = vmatpush2.bf16.xpose.msra.mxu0 0
        %875 = vmatprep.subr.bf16.mxu0 0
        %876 = vmatpush2.bf16.xpose.msra.mxu0 0
        %877 = vmatprep.subr.bf16.mxu0 0
        %878 = vmatpush2.bf16.xpose.msra.mxu0 0
        %879 = vmatprep.subr.bf16.mxu0 0
        %880 = vmatpush2.bf16.xpose.msra.mxu0 0
        %881 = vmatprep.subr.bf16.mxu0 0
        %882 = vmatpush2.bf16.xpose.msra.mxu0 0
        %883 = vmatprep.subr.bf16.mxu0 0
        %884 = vmatpush2.bf16.xpose.msra.mxu0 0
        %885 = vmatprep.subr.bf16.mxu0 0
        %886 = vmatpush2.bf16.xpose.msra.mxu0 0
        %887 = vmatprep.mubr.bf16.mxu0 0
        %888 = vmatmul.mubr.bf16.gmra.mxu0 %v850
        %v889 = vpop.f32.mrf.mxu0
        %v890 = vadd.f32 0.0, %v889
        %v891 = vpop.f32.mrf.mxu0
        %v892 = vpop.f32.mrf.mxu0
        %v893 = vadd.f32 0.0, %v892
        %v894 = vpop.f32.mrf.mxu0
        %895 = vdwg.mxu0
        %v896 = vmul.f32 %v890, 0.35355338
        %v897 = vmul.f32 %v893, 0.35355338
        %vm898 = vcmask 130048
        %v899 = vsel %vm898, %v896, -inf
        %900 = vmax.xlane.f32.xlu0 %v899
        %v901 = vpop.xlane.xlu0 %900
        %v902 = vsel %vm898, %v897, -inf
        %903 = vmax.xlane.f32.xlu0 %v902
        %v904 = vpop.xlane.xlu0 %903
        %v905 = vsub.f32 %v896, %v901
        %v906 = vsub.f32 %v897, %v904
        %v907 = vmul.f32 %v905, 1.442695
        %v908 = vpow.pop %v907
        %v909 = vmul.f32 %v906, 1.442695
        %v910 = vpow.pop %v909
        %v911 = vsel %vm898, %v908, 0.0
        %912 = vadd.xlane.f32.xlu0 %v911
        %v913 = vpop.xlane.xlu0 %912
        %v914 = vsel %vm898, %v910, 0.0
        %915 = vadd.xlane.f32.xlu0 %v914
        %v916 = vpop.xlane.xlu0 %915
        %v917 = vrcp.pop %v913
        %v918 = vmul.f32 %v908, %v917
        %v919 = vrcp.pop %v916
        %v920 = vmul.f32 %v910, %v919
        %921 = vst.msk [vmem:[%s626] sm:$0xff] %vm898, %v918
        %922 = vst.msk [vmem:[%s626 + $0x8] sm:$0xff] %vm898, %v920
        %v923 = vpack.c.bf16 %v920, %v918
        %v924 = vpack.c.bf16 %v843, %v840
        %v926 = vsel %vm898, %v923, 0
        %928 = vmatprep.subr.bf16.mxu0 0
        %929 = vmatpush1.bf16.msra.mxu0 0
        %930 = vmatprep.subr.bf16.mxu0 0
        %931 = vmatpush1.bf16.msra.mxu0 0
        %932 = vmatprep.subr.bf16.mxu0 0
        %933 = vmatpush1.bf16.msra.mxu0 0
        %934 = vmatprep.subr.bf16.mxu0 0
        %935 = vmatpush1.bf16.msra.mxu0 0
        %936 = vmatprep.subr.bf16.mxu0 0
        %937 = vmatpush1.bf16.msra.mxu0 0
        %938 = vmatprep.subr.bf16.mxu0 0
        %939 = vmatpush1.bf16.msra.mxu0 0
        %940 = vmatprep.subr.bf16.mxu0 0
        %941 = vmatpush1.bf16.msra.mxu0 0
        %942 = vmatprep.subr.bf16.mxu0 0
        %943 = vmatpush1.bf16.msra.mxu0 %v924
        %944 = vmatprep.subr.bf16.mxu0 0
        %945 = vmatpush2.bf16.msra.mxu0 0
        %946 = vmatprep.subr.bf16.mxu0 0
        %947 = vmatpush2.bf16.msra.mxu0 0
        %948 = vmatprep.subr.bf16.mxu0 0
        %949 = vmatpush2.bf16.msra.mxu0 0
        %950 = vmatprep.subr.bf16.mxu0 0
        %951 = vmatpush2.bf16.msra.mxu0 0
        %952 = vmatprep.subr.bf16.mxu0 0
        %953 = vmatpush2.bf16.msra.mxu0 0
        %954 = vmatprep.subr.bf16.mxu0 0
        %955 = vmatpush2.bf16.msra.mxu0 0
        %956 = vmatprep.subr.bf16.mxu0 0
        %957 = vmatpush2.bf16.msra.mxu0 0
        %958 = vmatprep.subr.bf16.mxu0 0
        %959 = vmatpush2.bf16.msra.mxu0 0
        %960 = vmatprep.mubr.bf16.mxu0 0
        %961 = vmatmul.mubr.bf16.gmra.mxu0 %v926
        %v962 = vpop.f32.mrf.mxu0
        %v963 = vadd.f32 0.0, %v962
        %v964 = vpop.f32.mrf.mxu0
        %v965 = vpop.f32.mrf.mxu0
        %v966 = vadd.f32 0.0, %v965
        %v967 = vpop.f32.mrf.mxu0
        %968 = vdwg.mxu0
        %969 = vst.msk [vmem:[#allocation2] sm:$0xff] %vm848, %v963
        %970 = vst.msk [vmem:[#allocation2 + $0x8] sm:$0xff] %vm848, %v966
        %v971 = vld [vmem:[#allocation9] sm:$0xf]
        %v972 = vld [vmem:[#allocation9 + $0x4] sm:$0xf]
        %v973 = vld [vmem:[#allocation9 + $0x8] sm:$0xf]
        %v974 = vld [vmem:[#allocation9 + $0xc] sm:$0xf]
        %v975 = vld [vmem:[#allocation11] sm:$0x1]
        %v977 = vlaneseq
        %v978 = vshrl.u32 %v977, 7
        %v979 = vsub.s32 0, %v978
        %v980 = vrot.slane %v975, %v979
        %v985 = vunpack.c.l.b16 %v971
        %v986 = vunpack.c.l.b16 %v972
        %v987 = vunpack.c.l.b16 %v973
        %v988 = vunpack.c.l.b16 %v974
        %v989 = vpack.c.b16 %v986, %v985
        %v990 = vpack.c.b16 %v988, %v987
        %991 = vrot.lane.b32.xlu0 %v989, 120
        %v992 = vpop.permute.xlu0 %991
        %993 = vrot.lane.b32.xlu0 %v990, 120
        %v994 = vpop.permute.xlu0 %993
        %997 = vrot.lane.b32.xlu0 %v980, 120
        %v998 = vpop.permute.xlu0 %997
        %1000 = vmatprep.subr.bf16.mxu0 0
        %1001 = vmatpush1.bf16.msra.mxu0 0
        %1002 = vmatprep.subr.bf16.mxu0 0
        %1003 = vmatpush1.bf16.msra.mxu0 0
        %1004 = vmatprep.subr.bf16.mxu0 0
        %1005 = vmatpush1.bf16.msra.mxu0 0
        %1006 = vmatprep.subr.bf16.mxu0 0
        %1007 = vmatpush1.bf16.msra.mxu0 0
        %1008 = vmatprep.subr.bf16.mxu0 0
        %1009 = vmatpush1.bf16.msra.mxu0 0
        %1010 = vmatprep.subr.bf16.mxu0 0
        %1011 = vmatpush1.bf16.msra.mxu0 0
        %1012 = vmatprep.subr.bf16.mxu0 0
        %1013 = vmatpush1.bf16.msra.mxu0 %v994
        %1014 = vmatprep.subr.bf16.mxu0 0
        %1015 = vmatpush1.bf16.msra.mxu0 %v992
        %1016 = vmatprep.subr.bf16.mxu0 0
        %1017 = vmatpush2.bf16.msra.mxu0 0
        %1018 = vmatprep.subr.bf16.mxu0 0
        %1019 = vmatpush2.bf16.msra.mxu0 0
        %1020 = vmatprep.subr.bf16.mxu0 0
        %1021 = vmatpush2.bf16.msra.mxu0 0
        %1022 = vmatprep.subr.bf16.mxu0 0
        %1023 = vmatpush2.bf16.msra.mxu0 0
        %1024 = vmatprep.subr.bf16.mxu0 0
        %1025 = vmatpush2.bf16.msra.mxu0 0
        %1026 = vmatprep.subr.bf16.mxu0 0
        %1027 = vmatpush2.bf16.msra.mxu0 0
        %1028 = vmatprep.subr.bf16.mxu0 0
        %1029 = vmatpush2.bf16.msra.mxu0 0
        %1030 = vmatprep.subr.bf16.mxu0 0
        %1031 = vmatpush2.bf16.msra.mxu0 0
        %1032 = vmatprep.mubr.bf16.mxu0 0
        %1033 = vmatmul.mubr.bf16.gmra.mxu0 %v665
        %v1034 = vpop.f32.mrf.mxu0
        %v1035 = vadd.f32 %v998, %v1034
        %v1036 = vpop.f32.mrf.mxu0
        %v1037 = vpop.f32.mrf.mxu0
        %v1038 = vadd.f32 %v998, %v1037
        %v1039 = vpop.f32.mrf.mxu0
        %1040 = vdwg.mxu0
        %v1041 = vld [vmem:[%s708] sm:$0xf]
        %v1042 = vld [vmem:[%s708 + $0x4] sm:$0xf]
        %v1043 = vld [vmem:[%s708 + $0x8] sm:$0xf]
        %v1044 = vld [vmem:[%s708 + $0xc] sm:$0xf]
        %v1045 = vld [vmem:[%s713] sm:$0x1]
        %v1047 = vlaneseq
        %v1048 = vshrl.u32 %v1047, 7
        %v1049 = vsub.s32 0, %v1048
        %v1050 = vrot.slane %v1045, %v1049
        %v1055 = vunpack.c.l.b16 %v1041
        %v1056 = vunpack.c.l.b16 %v1042
        %v1057 = vunpack.c.l.b16 %v1043
        %v1058 = vunpack.c.l.b16 %v1044
        %v1059 = vpack.c.b16 %v1056, %v1055
        %v1060 = vpack.c.b16 %v1058, %v1057
        %1061 = vrot.lane.b32.xlu0 %v1059, 120
        %v1062 = vpop.permute.xlu0 %1061
        %1063 = vrot.lane.b32.xlu0 %v1060, 120
        %v1064 = vpop.permute.xlu0 %1063
        %1067 = vrot.lane.b32.xlu0 %v1050, 120
        %v1068 = vpop.permute.xlu0 %1067
        %1070 = vmatprep.subr.bf16.mxu0 0
        %1071 = vmatpush1.bf16.msra.mxu0 0
        %1072 = vmatprep.subr.bf16.mxu0 0
        %1073 = vmatpush1.bf16.msra.mxu0 0
        %1074 = vmatprep.subr.bf16.mxu0 0
        %1075 = vmatpush1.bf16.msra.mxu0 0
        %1076 = vmatprep.subr.bf16.mxu0 0
        %1077 = vmatpush1.bf16.msra.mxu0 0
        %1078 = vmatprep.subr.bf16.mxu0 0
        %1079 = vmatpush1.bf16.msra.mxu0 0
        %1080 = vmatprep.subr.bf16.mxu0 0
        %1081 = vmatpush1.bf16.msra.mxu0 0
        %1082 = vmatprep.subr.bf16.mxu0 0
        %1083 = vmatpush1.bf16.msra.mxu0 %v1064
        %1084 = vmatprep.subr.bf16.mxu0 0
        %1085 = vmatpush1.bf16.msra.mxu0 %v1062
        %1086 = vmatprep.subr.bf16.mxu0 0
        %1087 = vmatpush2.bf16.msra.mxu0 0
        %1088 = vmatprep.subr.bf16.mxu0 0
        %1089 = vmatpush2.bf16.msra.mxu0 0
        %1090 = vmatprep.subr.bf16.mxu0 0
        %1091 = vmatpush2.bf16.msra.mxu0 0
        %1092 = vmatprep.subr.bf16.mxu0 0
        %1093 = vmatpush2.bf16.msra.mxu0 0
        %1094 = vmatprep.subr.bf16.mxu0 0
        %1095 = vmatpush2.bf16.msra.mxu0 0
        %1096 = vmatprep.subr.bf16.mxu0 0
        %1097 = vmatpush2.bf16.msra.mxu0 0
        %1098 = vmatprep.subr.bf16.mxu0 0
        %1099 = vmatpush2.bf16.msra.mxu0 0
        %1100 = vmatprep.subr.bf16.mxu0 0
        %1101 = vmatpush2.bf16.msra.mxu0 0
        %1102 = vmatprep.mubr.bf16.mxu0 0
        %1103 = vmatmul.mubr.bf16.gmra.mxu0 %v734
        %v1104 = vpop.f32.mrf.mxu0
        %v1105 = vadd.f32 %v1068, %v1104
        %v1106 = vpop.f32.mrf.mxu0
        %v1107 = vpop.f32.mrf.mxu0
        %v1108 = vadd.f32 %v1068, %v1107
        %v1109 = vpop.f32.mrf.mxu0
        %1110 = vdwg.mxu0
        %v1111 = vld [vmem:[%s777] sm:$0xf]
        %v1112 = vld [vmem:[%s777 + $0x4] sm:$0xf]
        %v1113 = vld [vmem:[%s777 + $0x8] sm:$0xf]
        %v1114 = vld [vmem:[%s777 + $0xc] sm:$0xf]
        %v1115 = vld [vmem:[%s782] sm:$0x1]
        %v1117 = vlaneseq
        %v1118 = vshrl.u32 %v1117, 7
        %v1119 = vsub.s32 0, %v1118
        %v1120 = vrot.slane %v1115, %v1119
        %v1125 = vunpack.c.l.b16 %v1111
        %v1126 = vunpack.c.l.b16 %v1112
        %v1127 = vunpack.c.l.b16 %v1113
        %v1128 = vunpack.c.l.b16 %v1114
        %v1129 = vpack.c.b16 %v1126, %v1125
        %v1130 = vpack.c.b16 %v1128, %v1127
        %1131 = vrot.lane.b32.xlu0 %v1129, 120
        %v1132 = vpop.permute.xlu0 %1131
        %1133 = vrot.lane.b32.xlu0 %v1130, 120
        %v1134 = vpop.permute.xlu0 %1133
        %1137 = vrot.lane.b32.xlu0 %v1120, 120
        %v1138 = vpop.permute.xlu0 %1137
        %1140 = vmatprep.subr.bf16.mxu0 0
        %1141 = vmatpush1.bf16.msra.mxu0 0
        %1142 = vmatprep.subr.bf16.mxu0 0
        %1143 = vmatpush1.bf16.msra.mxu0 0
        %1144 = vmatprep.subr.bf16.mxu0 0
        %1145 = vmatpush1.bf16.msra.mxu0 0
        %1146 = vmatprep.subr.bf16.mxu0 0
        %1147 = vmatpush1.bf16.msra.mxu0 0
        %1148 = vmatprep.subr.bf16.mxu0 0
        %1149 = vmatpush1.bf16.msra.mxu0 0
        %1150 = vmatprep.subr.bf16.mxu0 0
        %1151 = vmatpush1.bf16.msra.mxu0 0
        %1152 = vmatprep.subr.bf16.mxu0 0
        %1153 = vmatpush1.bf16.msra.mxu0 %v1134
        %1154 = vmatprep.subr.bf16.mxu0 0
        %1155 = vmatpush1.bf16.msra.mxu0 %v1132
        %1156 = vmatprep.subr.bf16.mxu0 0
        %1157 = vmatpush2.bf16.msra.mxu0 0
        %1158 = vmatprep.subr.bf16.mxu0 0
        %1159 = vmatpush2.bf16.msra.mxu0 0
        %1160 = vmatprep.subr.bf16.mxu0 0
        %1161 = vmatpush2.bf16.msra.mxu0 0
        %1162 = vmatprep.subr.bf16.mxu0 0
        %1163 = vmatpush2.bf16.msra.mxu0 0
        %1164 = vmatprep.subr.bf16.mxu0 0
        %1165 = vmatpush2.bf16.msra.mxu0 0
        %1166 = vmatprep.subr.bf16.mxu0 0
        %1167 = vmatpush2.bf16.msra.mxu0 0
        %1168 = vmatprep.subr.bf16.mxu0 0
        %1169 = vmatpush2.bf16.msra.mxu0 0
        %1170 = vmatprep.subr.bf16.mxu0 0
        %1171 = vmatpush2.bf16.msra.mxu0 0
        %1172 = vmatprep.mubr.bf16.mxu0 0
        %1173 = vmatmul.mubr.bf16.gmra.mxu0 %v803
        %v1174 = vpop.f32.mrf.mxu0
        %v1175 = vadd.f32 %v1138, %v1174
        %v1176 = vpop.f32.mrf.mxu0
        %v1177 = vpop.f32.mrf.mxu0
        %v1178 = vadd.f32 %v1138, %v1177
        %v1179 = vpop.f32.mrf.mxu0
        %1180 = vdwg.mxu0
        %v1181 = vpack.c.bf16 %v1038, %v1035
        %v1182 = vpack.c.bf16 %v1108, %v1105
        %v1184 = vsel %vm848, %v1181, 0
        %v1187 = vsel %vm848, %v1182, 0
        %1189 = vmatprep.subr.bf16.mxu0 0
        %1190 = vmatpush1.bf16.xpose.msra.mxu0 0
        %1191 = vmatprep.subr.bf16.mxu0 0
        %1192 = vmatpush1.bf16.xpose.msra.mxu0 0
        %1193 = vmatprep.subr.bf16.mxu0 0
        %1194 = vmatpush1.bf16.xpose.msra.mxu0 0
        %1195 = vmatprep.subr.bf16.mxu0 0
        %1196 = vmatpush1.bf16.xpose.msra.mxu0 0
        %1197 = vmatprep.subr.bf16.mxu0 0
        %1198 = vmatpush1.bf16.xpose.msra.mxu0 0
        %1199 = vmatprep.subr.bf16.mxu0 0
        %1200 = vmatpush1.bf16.xpose.msra.mxu0 0
        %1201 = vmatprep.subr.bf16.mxu0 0
        %1202 = vmatpush1.bf16.xpose.msra.mxu0 0
        %1203 = vmatprep.subr.bf16.mxu0 0
        %1204 = vmatpush1.bf16.xpose.msra.mxu0 %v1187
        %1205 = vmatprep.subr.bf16.mxu0 0
        %1206 = vmatpush2.bf16.xpose.msra.mxu0 0
        %1207 = vmatprep.subr.bf16.mxu0 0
        %1208 = vmatpush2.bf16.xpose.msra.mxu0 0
        %1209 = vmatprep.subr.bf16.mxu0 0
        %1210 = vmatpush2.bf16.xpose.msra.mxu0 0
        %1211 = vmatprep.subr.bf16.mxu0 0
        %1212 = vmatpush2.bf16.xpose.msra.mxu0 0
        %1213 = vmatprep.subr.bf16.mxu0 0
        %1214 = vmatpush2.bf16.xpose.msra.mxu0 0
        %1215 = vmatprep.subr.bf16.mxu0 0
        %1216 = vmatpush2.bf16.xpose.msra.mxu0 0
        %1217 = vmatprep.subr.bf16.mxu0 0
        %1218 = vmatpush2.bf16.xpose.msra.mxu0 0
        %1219 = vmatprep.subr.bf16.mxu0 0
        %1220 = vmatpush2.bf16.xpose.msra.mxu0 0
        %1221 = vmatprep.mubr.bf16.mxu0 0
        %1222 = vmatmul.mubr.bf16.gmra.mxu0 %v1184
        %v1223 = vpop.f32.mrf.mxu0
        %v1224 = vadd.f32 0.0, %v1223
        %v1225 = vpop.f32.mrf.mxu0
        %v1226 = vpop.f32.mrf.mxu0
        %v1227 = vadd.f32 0.0, %v1226
        %v1228 = vpop.f32.mrf.mxu0
        %1229 = vdwg.mxu0
        %v1230 = vmul.f32 %v1224, 0.35355338
        %v1231 = vmul.f32 %v1227, 0.35355338
        %v1232 = vsel %vm898, %v1230, -inf
        %1233 = vmax.xlane.f32.xlu0 %v1232
        %v1234 = vpop.xlane.xlu0 %1233
        %v1235 = vsel %vm898, %v1231, -inf
        %1236 = vmax.xlane.f32.xlu0 %v1235
        %v1237 = vpop.xlane.xlu0 %1236
        %v1238 = vsub.f32 %v1230, %v1234
        %v1239 = vsub.f32 %v1231, %v1237
        %v1240 = vmul.f32 %v1238, 1.442695
        %v1241 = vpow.pop %v1240
        %v1242 = vmul.f32 %v1239, 1.442695
        %v1243 = vpow.pop %v1242
        %v1244 = vsel %vm898, %v1241, 0.0
        %1245 = vadd.xlane.f32.xlu0 %v1244
        %v1246 = vpop.xlane.xlu0 %1245
        %v1247 = vsel %vm898, %v1243, 0.0
        %1248 = vadd.xlane.f32.xlu0 %v1247
        %v1249 = vpop.xlane.xlu0 %1248
        %v1250 = vrcp.pop %v1246
        %v1251 = vmul.f32 %v1241, %v1250
        %v1252 = vrcp.pop %v1249
        %v1253 = vmul.f32 %v1243, %v1252
        %1254 = vst.msk [vmem:[%s626 + $0x10] sm:$0xff] %vm898, %v1251
        %1255 = vst.msk [vmem:[%s626 + $0x18] sm:$0xff] %vm898, %v1253
        %v1256 = vpack.c.bf16 %v1253, %v1251
        %v1257 = vpack.c.bf16 %v1178, %v1175
        %v1259 = vsel %vm898, %v1256, 0
        %1261 = vmatprep.subr.bf16.mxu0 0
        %1262 = vmatpush1.bf16.msra.mxu0 0
        %1263 = vmatprep.subr.bf16.mxu0 0
        %1264 = vmatpush1.bf16.msra.mxu0 0
        %1265 = vmatprep.subr.bf16.mxu0 0
        %1266 = vmatpush1.bf16.msra.mxu0 0
        %1267 = vmatprep.subr.bf16.mxu0 0
        %1268 = vmatpush1.bf16.msra.mxu0 0
        %1269 = vmatprep.subr.bf16.mxu0 0
        %1270 = vmatpush1.bf16.msra.mxu0 0
        %1271 = vmatprep.subr.bf16.mxu0 0
        %1272 = vmatpush1.bf16.msra.mxu0 0
        %1273 = vmatprep.subr.bf16.mxu0 0
        %1274 = vmatpush1.bf16.msra.mxu0 0
        %1275 = vmatprep.subr.bf16.mxu0 0
        %1276 = vmatpush1.bf16.msra.mxu0 %v1257
        %1277 = vmatprep.subr.bf16.mxu0 0
        %1278 = vmatpush2.bf16.msra.mxu0 0
        %1279 = vmatprep.subr.bf16.mxu0 0
        %1280 = vmatpush2.bf16.msra.mxu0 0
        %1281 = vmatprep.subr.bf16.mxu0 0
        %1282 = vmatpush2.bf16.msra.mxu0 0
        %1283 = vmatprep.subr.bf16.mxu0 0
        %1284 = vmatpush2.bf16.msra.mxu0 0
        %1285 = vmatprep.subr.bf16.mxu0 0
        %1286 = vmatpush2.bf16.msra.mxu0 0
        %1287 = vmatprep.subr.bf16.mxu0 0
        %1288 = vmatpush2.bf16.msra.mxu0 0
        %1289 = vmatprep.subr.bf16.mxu0 0
        %1290 = vmatpush2.bf16.msra.mxu0 0
        %1291 = vmatprep.subr.bf16.mxu0 0
        %1292 = vmatpush2.bf16.msra.mxu0 0
        %1293 = vmatprep.mubr.bf16.mxu0 0
        %1294 = vmatmul.mubr.bf16.gmra.mxu0 %v1259
        %v1295 = vpop.f32.mrf.mxu0
        %v1296 = vadd.f32 0.0, %v1295
        %v1297 = vpop.f32.mrf.mxu0
        %v1298 = vpop.f32.mrf.mxu0
        %v1299 = vadd.f32 0.0, %v1298
        %v1300 = vpop.f32.mrf.mxu0
        %1301 = vdwg.mxu0
        %1304 = vrot.lane.b32.xlu0 %v1296, 8
        %v1305 = vpop.permute.xlu0 %1304
        %1306 = vrot.lane.b32.xlu0 %v1299, 8
        %v1307 = vpop.permute.xlu0 %1306
        %vm1310 = vcmask 130112
        %1311 = vst.msk [vmem:[#allocation2] sm:$0xff] %vm1310, %v1305
        %1312 = vst.msk [vmem:[#allocation2 + $0x8] sm:$0xff] %vm1310, %v1307
        %v1313 = vld [vmem:[#allocation9] sm:$0xf]
        %v1314 = vld [vmem:[#allocation9 + $0x4] sm:$0xf]
        %v1315 = vld [vmem:[#allocation9 + $0x8] sm:$0xf]
        %v1316 = vld [vmem:[#allocation9 + $0xc] sm:$0xf]
        %v1317 = vld [vmem:[#allocation11] sm:$0x1]
        %v1319 = vlaneseq
        %v1320 = vshrl.u32 %v1319, 7
        %v1321 = vsub.s32 0, %v1320
        %v1322 = vrot.slane %v1317, %v1321
        %v1327 = vunpack.c.l.b16 %v1313
        %v1328 = vunpack.c.l.b16 %v1314
        %v1329 = vunpack.c.l.b16 %v1315
        %v1330 = vunpack.c.l.b16 %v1316
        %v1331 = vpack.c.b16 %v1328, %v1327
        %v1332 = vpack.c.b16 %v1330, %v1329
        %1333 = vrot.lane.b32.xlu0 %v1331, 112
        %v1334 = vpop.permute.xlu0 %1333
        %1335 = vrot.lane.b32.xlu0 %v1332, 112
        %v1336 = vpop.permute.xlu0 %1335
        %1339 = vrot.lane.b32.xlu0 %v1322, 112
        %v1340 = vpop.permute.xlu0 %1339
        %1342 = vmatprep.subr.bf16.mxu0 0
        %1343 = vmatpush1.bf16.msra.mxu0 0
        %1344 = vmatprep.subr.bf16.mxu0 0
        %1345 = vmatpush1.bf16.msra.mxu0 0
        %1346 = vmatprep.subr.bf16.mxu0 0
        %1347 = vmatpush1.bf16.msra.mxu0 0
        %1348 = vmatprep.subr.bf16.mxu0 0
        %1349 = vmatpush1.bf16.msra.mxu0 0
        %1350 = vmatprep.subr.bf16.mxu0 0
        %1351 = vmatpush1.bf16.msra.mxu0 0
        %1352 = vmatprep.subr.bf16.mxu0 0
        %1353 = vmatpush1.bf16.msra.mxu0 0
        %1354 = vmatprep.subr.bf16.mxu0 0
        %1355 = vmatpush1.bf16.msra.mxu0 %v1336
        %1356 = vmatprep.subr.bf16.mxu0 0
        %1357 = vmatpush1.bf16.msra.mxu0 %v1334
        %1358 = vmatprep.subr.bf16.mxu0 0
        %1359 = vmatpush2.bf16.msra.mxu0 0
        %1360 = vmatprep.subr.bf16.mxu0 0
        %1361 = vmatpush2.bf16.msra.mxu0 0
        %1362 = vmatprep.subr.bf16.mxu0 0
        %1363 = vmatpush2.bf16.msra.mxu0 0
        %1364 = vmatprep.subr.bf16.mxu0 0
        %1365 = vmatpush2.bf16.msra.mxu0 0
        %1366 = vmatprep.subr.bf16.mxu0 0
        %1367 = vmatpush2.bf16.msra.mxu0 0
        %1368 = vmatprep.subr.bf16.mxu0 0
        %1369 = vmatpush2.bf16.msra.mxu0 0
        %1370 = vmatprep.subr.bf16.mxu0 0
        %1371 = vmatpush2.bf16.msra.mxu0 0
        %1372 = vmatprep.subr.bf16.mxu0 0
        %1373 = vmatpush2.bf16.msra.mxu0 0
        %1374 = vmatprep.mubr.bf16.mxu0 0
        %1375 = vmatmul.mubr.bf16.gmra.mxu0 %v665
        %v1376 = vpop.f32.mrf.mxu0
        %v1377 = vadd.f32 %v1340, %v1376
        %v1378 = vpop.f32.mrf.mxu0
        %v1379 = vpop.f32.mrf.mxu0
        %v1380 = vadd.f32 %v1340, %v1379
        %v1381 = vpop.f32.mrf.mxu0
        %1382 = vdwg.mxu0
        %v1383 = vld [vmem:[%s708] sm:$0xf]
        %v1384 = vld [vmem:[%s708 + $0x4] sm:$0xf]
        %v1385 = vld [vmem:[%s708 + $0x8] sm:$0xf]
        %v1386 = vld [vmem:[%s708 + $0xc] sm:$0xf]
        %v1387 = vld [vmem:[%s713] sm:$0x1]
        %v1389 = vlaneseq
        %v1390 = vshrl.u32 %v1389, 7
        %v1391 = vsub.s32 0, %v1390
        %v1392 = vrot.slane %v1387, %v1391
        %v1397 = vunpack.c.l.b16 %v1383
        %v1398 = vunpack.c.l.b16 %v1384
        %v1399 = vunpack.c.l.b16 %v1385
        %v1400 = vunpack.c.l.b16 %v1386
        %v1401 = vpack.c.b16 %v1398, %v1397
        %v1402 = vpack.c.b16 %v1400, %v1399
        %1403 = vrot.lane.b32.xlu0 %v1401, 112
        %v1404 = vpop.permute.xlu0 %1403
        %1405 = vrot.lane.b32.xlu0 %v1402, 112
        %v1406 = vpop.permute.xlu0 %1405
        %1409 = vrot.lane.b32.xlu0 %v1392, 112
        %v1410 = vpop.permute.xlu0 %1409
        %1412 = vmatprep.subr.bf16.mxu0 0
        %1413 = vmatpush1.bf16.msra.mxu0 0
        %1414 = vmatprep.subr.bf16.mxu0 0
        %1415 = vmatpush1.bf16.msra.mxu0 0
        %1416 = vmatprep.subr.bf16.mxu0 0
        %1417 = vmatpush1.bf16.msra.mxu0 0
        %1418 = vmatprep.subr.bf16.mxu0 0
        %1419 = vmatpush1.bf16.msra.mxu0 0
        %1420 = vmatprep.subr.bf16.mxu0 0
        %1421 = vmatpush1.bf16.msra.mxu0 0
        %1422 = vmatprep.subr.bf16.mxu0 0
        %1423 = vmatpush1.bf16.msra.mxu0 0
        %1424 = vmatprep.subr.bf16.mxu0 0
        %1425 = vmatpush1.bf16.msra.mxu0 %v1406
        %1426 = vmatprep.subr.bf16.mxu0 0
        %1427 = vmatpush1.bf16.msra.mxu0 %v1404
        %1428 = vmatprep.subr.bf16.mxu0 0
        %1429 = vmatpush2.bf16.msra.mxu0 0
        %1430 = vmatprep.subr.bf16.mxu0 0
        %1431 = vmatpush2.bf16.msra.mxu0 0
        %1432 = vmatprep.subr.bf16.mxu0 0
        %1433 = vmatpush2.bf16.msra.mxu0 0
        %1434 = vmatprep.subr.bf16.mxu0 0
        %1435 = vmatpush2.bf16.msra.mxu0 0
        %1436 = vmatprep.subr.bf16.mxu0 0
        %1437 = vmatpush2.bf16.msra.mxu0 0
        %1438 = vmatprep.subr.bf16.mxu0 0
        %1439 = vmatpush2.bf16.msra.mxu0 0
        %1440 = vmatprep.subr.bf16.mxu0 0
        %1441 = vmatpush2.bf16.msra.mxu0 0
        %1442 = vmatprep.subr.bf16.mxu0 0
        %1443 = vmatpush2.bf16.msra.mxu0 0
        %1444 = vmatprep.mubr.bf16.mxu0 0
        %1445 = vmatmul.mubr.bf16.gmra.mxu0 %v734
        %v1446 = vpop.f32.mrf.mxu0
        %v1447 = vadd.f32 %v1410, %v1446
        %v1448 = vpop.f32.mrf.mxu0
        %v1449 = vpop.f32.mrf.mxu0
        %v1450 = vadd.f32 %v1410, %v1449
        %v1451 = vpop.f32.mrf.mxu0
        %1452 = vdwg.mxu0
        %v1453 = vld [vmem:[%s777] sm:$0xf]
        %v1454 = vld [vmem:[%s777 + $0x4] sm:$0xf]
        %v1455 = vld [vmem:[%s777 + $0x8] sm:$0xf]
        %v1456 = vld [vmem:[%s777 + $0xc] sm:$0xf]
        %v1457 = vld [vmem:[%s782] sm:$0x1]
        %v1459 = vlaneseq
        %v1460 = vshrl.u32 %v1459, 7
        %v1461 = vsub.s32 0, %v1460
        %v1462 = vrot.slane %v1457, %v1461
        %v1467 = vunpack.c.l.b16 %v1453
        %v1468 = vunpack.c.l.b16 %v1454
        %v1469 = vunpack.c.l.b16 %v1455
        %v1470 = vunpack.c.l.b16 %v1456
        %v1471 = vpack.c.b16 %v1468, %v1467
        %v1472 = vpack.c.b16 %v1470, %v1469
        %1473 = vrot.lane.b32.xlu0 %v1471, 112
        %v1474 = vpop.permute.xlu0 %1473
        %1475 = vrot.lane.b32.xlu0 %v1472, 112
        %v1476 = vpop.permute.xlu0 %1475
        %1479 = vrot.lane.b32.xlu0 %v1462, 112
        %v1480 = vpop.permute.xlu0 %1479
        %1482 = vmatprep.subr.bf16.mxu0 0
        %1483 = vmatpush1.bf16.msra.mxu0 0
        %1484 = vmatprep.subr.bf16.mxu0 0
        %1485 = vmatpush1.bf16.msra.mxu0 0
        %1486 = vmatprep.subr.bf16.mxu0 0
        %1487 = vmatpush1.bf16.msra.mxu0 0
        %1488 = vmatprep.subr.bf16.mxu0 0
        %1489 = vmatpush1.bf16.msra.mxu0 0
        %1490 = vmatprep.subr.bf16.mxu0 0
        %1491 = vmatpush1.bf16.msra.mxu0 0
        %1492 = vmatprep.subr.bf16.mxu0 0
        %1493 = vmatpush1.bf16.msra.mxu0 0
        %1494 = vmatprep.subr.bf16.mxu0 0
        %1495 = vmatpush1.bf16.msra.mxu0 %v1476
        %1496 = vmatprep.subr.bf16.mxu0 0
        %1497 = vmatpush1.bf16.msra.mxu0 %v1474
        %1498 = vmatprep.subr.bf16.mxu0 0
        %1499 = vmatpush2.bf16.msra.mxu0 0
        %1500 = vmatprep.subr.bf16.mxu0 0
        %1501 = vmatpush2.bf16.msra.mxu0 0
        %1502 = vmatprep.subr.bf16.mxu0 0
        %1503 = vmatpush2.bf16.msra.mxu0 0
        %1504 = vmatprep.subr.bf16.mxu0 0
        %1505 = vmatpush2.bf16.msra.mxu0 0
        %1506 = vmatprep.subr.bf16.mxu0 0
        %1507 = vmatpush2.bf16.msra.mxu0 0
        %1508 = vmatprep.subr.bf16.mxu0 0
        %1509 = vmatpush2.bf16.msra.mxu0 0
        %1510 = vmatprep.subr.bf16.mxu0 0
        %1511 = vmatpush2.bf16.msra.mxu0 0
        %1512 = vmatprep.subr.bf16.mxu0 0
        %1513 = vmatpush2.bf16.msra.mxu0 0
        %1514 = vmatprep.mubr.bf16.mxu0 0
        %1515 = vmatmul.mubr.bf16.gmra.mxu0 %v803
        %v1516 = vpop.f32.mrf.mxu0
        %v1517 = vadd.f32 %v1480, %v1516
        %v1518 = vpop.f32.mrf.mxu0
        %v1519 = vpop.f32.mrf.mxu0
        %v1520 = vadd.f32 %v1480, %v1519
        %v1521 = vpop.f32.mrf.mxu0
        %1522 = vdwg.mxu0
        %v1523 = vpack.c.bf16 %v1380, %v1377
        %v1524 = vpack.c.bf16 %v1450, %v1447
        %v1526 = vsel %vm848, %v1523, 0
        %v1529 = vsel %vm848, %v1524, 0
        %1531 = vmatprep.subr.bf16.mxu0 0
        %1532 = vmatpush1.bf16.xpose.msra.mxu0 0
        %1533 = vmatprep.subr.bf16.mxu0 0
        %1534 = vmatpush1.bf16.xpose.msra.mxu0 0
        %1535 = vmatprep.subr.bf16.mxu0 0
        %1536 = vmatpush1.bf16.xpose.msra.mxu0 0
        %1537 = vmatprep.subr.bf16.mxu0 0
        %1538 = vmatpush1.bf16.xpose.msra.mxu0 0
        %1539 = vmatprep.subr.bf16.mxu0 0
        %1540 = vmatpush1.bf16.xpose.msra.mxu0 0
        %1541 = vmatprep.subr.bf16.mxu0 0
        %1542 = vmatpush1.bf16.xpose.msra.mxu0 0
        %1543 = vmatprep.subr.bf16.mxu0 0
        %1544 = vmatpush1.bf16.xpose.msra.mxu0 0
        %1545 = vmatprep.subr.bf16.mxu0 0
        %1546 = vmatpush1.bf16.xpose.msra.mxu0 %v1529
        %1547 = vmatprep.subr.bf16.mxu0 0
        %1548 = vmatpush2.bf16.xpose.msra.mxu0 0
        %1549 = vmatprep.subr.bf16.mxu0 0
        %1550 = vmatpush2.bf16.xpose.msra.mxu0 0
        %1551 = vmatprep.subr.bf16.mxu0 0
        %1552 = vmatpush2.bf16.xpose.msra.mxu0 0
        %1553 = vmatprep.subr.bf16.mxu0 0
        %1554 = vmatpush2.bf16.xpose.msra.mxu0 0
        %1555 = vmatprep.subr.bf16.mxu0 0
        %1556 = vmatpush2.bf16.xpose.msra.mxu0 0
        %1557 = vmatprep.subr.bf16.mxu0 0
        %1558 = vmatpush2.bf16.xpose.msra.mxu0 0
        %1559 = vmatprep.subr.bf16.mxu0 0
        %1560 = vmatpush2.bf16.xpose.msra.mxu0 0
        %1561 = vmatprep.subr.bf16.mxu0 0
        %1562 = vmatpush2.bf16.xpose.msra.mxu0 0
        %1563 = vmatprep.mubr.bf16.mxu0 0
        %1564 = vmatmul.mubr.bf16.gmra.mxu0 %v1526
        %v1565 = vpop.f32.mrf.mxu0
        %v1566 = vadd.f32 0.0, %v1565
        %v1567 = vpop.f32.mrf.mxu0
        %v1568 = vpop.f32.mrf.mxu0
        %v1569 = vadd.f32 0.0, %v1568
        %v1570 = vpop.f32.mrf.mxu0
        %1571 = vdwg.mxu0
        %v1572 = vmul.f32 %v1566, 0.35355338
        %v1573 = vmul.f32 %v1569, 0.35355338
        %v1574 = vsel %vm898, %v1572, -inf
        %1575 = vmax.xlane.f32.xlu0 %v1574
        %v1576 = vpop.xlane.xlu0 %1575
        %v1577 = vsel %vm898, %v1573, -inf
        %1578 = vmax.xlane.f32.xlu0 %v1577
        %v1579 = vpop.xlane.xlu0 %1578
        %v1580 = vsub.f32 %v1572, %v1576
        %v1581 = vsub.f32 %v1573, %v1579
        %v1582 = vmul.f32 %v1580, 1.442695
        %v1583 = vpow.pop %v1582
        %v1584 = vmul.f32 %v1581, 1.442695
        %v1585 = vpow.pop %v1584
        %v1586 = vsel %vm898, %v1583, 0.0
        %1587 = vadd.xlane.f32.xlu0 %v1586
        %v1588 = vpop.xlane.xlu0 %1587
        %v1589 = vsel %vm898, %v1585, 0.0
        %1590 = vadd.xlane.f32.xlu0 %v1589
        %v1591 = vpop.xlane.xlu0 %1590
        %v1592 = vrcp.pop %v1588
        %v1593 = vmul.f32 %v1583, %v1592
        %v1594 = vrcp.pop %v1591
        %v1595 = vmul.f32 %v1585, %v1594
        %1596 = vst.msk [vmem:[%s626 + $0x20] sm:$0xff] %vm898, %v1593
        %1597 = vst.msk [vmem:[%s626 + $0x28] sm:$0xff] %vm898, %v1595
        %v1598 = vpack.c.bf16 %v1595, %v1593
        %v1599 = vpack.c.bf16 %v1520, %v1517
        %v1601 = vsel %vm898, %v1598, 0
        %1603 = vmatprep.subr.bf16.mxu0 0
        %1604 = vmatpush1.bf16.msra.mxu0 0
        %1605 = vmatprep.subr.bf16.mxu0 0
        %1606 = vmatpush1.bf16.msra.mxu0 0
        %1607 = vmatprep.subr.bf16.mxu0 0
        %1608 = vmatpush1.bf16.msra.mxu0 0
        %1609 = vmatprep.subr.bf16.mxu0 0
        %1610 = vmatpush1.bf16.msra.mxu0 0
        %1611 = vmatprep.subr.bf16.mxu0 0
        %1612 = vmatpush1.bf16.msra.mxu0 0
        %1613 = vmatprep.subr.bf16.mxu0 0
        %1614 = vmatpush1.bf16.msra.mxu0 0
        %1615 = vmatprep.subr.bf16.mxu0 0
        %1616 = vmatpush1.bf16.msra.mxu0 0
        %1617 = vmatprep.subr.bf16.mxu0 0
        %1618 = vmatpush1.bf16.msra.mxu0 %v1599
        %1619 = vmatprep.subr.bf16.mxu0 0
        %1620 = vmatpush2.bf16.msra.mxu0 0
        %1621 = vmatprep.subr.bf16.mxu0 0
        %1622 = vmatpush2.bf16.msra.mxu0 0
        %1623 = vmatprep.subr.bf16.mxu0 0
        %1624 = vmatpush2.bf16.msra.mxu0 0
        %1625 = vmatprep.subr.bf16.mxu0 0
        %1626 = vmatpush2.bf16.msra.mxu0 0
        %1627 = vmatprep.subr.bf16.mxu0 0
        %1628 = vmatpush2.bf16.msra.mxu0 0
        %1629 = vmatprep.subr.bf16.mxu0 0
        %1630 = vmatpush2.bf16.msra.mxu0 0
        %1631 = vmatprep.subr.bf16.mxu0 0
        %1632 = vmatpush2.bf16.msra.mxu0 0
        %1633 = vmatprep.subr.bf16.mxu0 0
        %1634 = vmatpush2.bf16.msra.mxu0 0
        %1635 = vmatprep.mubr.bf16.mxu0 0
        %1636 = vmatmul.mubr.bf16.gmra.mxu0 %v1601
        %v1637 = vpop.f32.mrf.mxu0
        %v1638 = vadd.f32 0.0, %v1637
        %v1639 = vpop.f32.mrf.mxu0
        %v1640 = vpop.f32.mrf.mxu0
        %v1641 = vadd.f32 0.0, %v1640
        %v1642 = vpop.f32.mrf.mxu0
        %1643 = vdwg.mxu0
        %1646 = vrot.lane.b32.xlu0 %v1638, 16
        %v1647 = vpop.permute.xlu0 %1646
        %1648 = vrot.lane.b32.xlu0 %v1641, 16
        %v1649 = vpop.permute.xlu0 %1648
        %vm1652 = vcmask 195712
        %1653 = vst.msk [vmem:[#allocation2] sm:$0xff] %vm1652, %v1647
        %1654 = vst.msk [vmem:[#allocation2 + $0x8] sm:$0xff] %vm1652, %v1649
        %v1655 = vld [vmem:[#allocation9] sm:$0xf]
        %v1656 = vld [vmem:[#allocation9 + $0x4] sm:$0xf]
        %v1657 = vld [vmem:[#allocation9 + $0x8] sm:$0xf]
        %v1658 = vld [vmem:[#allocation9 + $0xc] sm:$0xf]
        %v1659 = vld [vmem:[#allocation11] sm:$0x1]
        %v1661 = vlaneseq
        %v1662 = vshrl.u32 %v1661, 7
        %v1663 = vsub.s32 0, %v1662
        %v1664 = vrot.slane %v1659, %v1663
        %v1669 = vunpack.c.l.b16 %v1655
        %v1670 = vunpack.c.l.b16 %v1656
        %v1671 = vunpack.c.l.b16 %v1657
        %v1672 = vunpack.c.l.b16 %v1658
        %v1673 = vpack.c.b16 %v1670, %v1669
        %v1674 = vpack.c.b16 %v1672, %v1671
        %1675 = vrot.lane.b32.xlu0 %v1673, 104
        %v1676 = vpop.permute.xlu0 %1675
        %1677 = vrot.lane.b32.xlu0 %v1674, 104
        %v1678 = vpop.permute.xlu0 %1677
        %1681 = vrot.lane.b32.xlu0 %v1664, 104
        %v1682 = vpop.permute.xlu0 %1681
        %1684 = vmatprep.subr.bf16.mxu0 0
        %1685 = vmatpush1.bf16.msra.mxu0 0
        %1686 = vmatprep.subr.bf16.mxu0 0
        %1687 = vmatpush1.bf16.msra.mxu0 0
        %1688 = vmatprep.subr.bf16.mxu0 0
        %1689 = vmatpush1.bf16.msra.mxu0 0
        %1690 = vmatprep.subr.bf16.mxu0 0
        %1691 = vmatpush1.bf16.msra.mxu0 0
        %1692 = vmatprep.subr.bf16.mxu0 0
        %1693 = vmatpush1.bf16.msra.mxu0 0
        %1694 = vmatprep.subr.bf16.mxu0 0
        %1695 = vmatpush1.bf16.msra.mxu0 0
        %1696 = vmatprep.subr.bf16.mxu0 0
        %1697 = vmatpush1.bf16.msra.mxu0 %v1678
        %1698 = vmatprep.subr.bf16.mxu0 0
        %1699 = vmatpush1.bf16.msra.mxu0 %v1676
        %1700 = vmatprep.subr.bf16.mxu0 0
        %1701 = vmatpush2.bf16.msra.mxu0 0
        %1702 = vmatprep.subr.bf16.mxu0 0
        %1703 = vmatpush2.bf16.msra.mxu0 0
        %1704 = vmatprep.subr.bf16.mxu0 0
        %1705 = vmatpush2.bf16.msra.mxu0 0
        %1706 = vmatprep.subr.bf16.mxu0 0
        %1707 = vmatpush2.bf16.msra.mxu0 0
        %1708 = vmatprep.subr.bf16.mxu0 0
        %1709 = vmatpush2.bf16.msra.mxu0 0
        %1710 = vmatprep.subr.bf16.mxu0 0
        %1711 = vmatpush2.bf16.msra.mxu0 0
        %1712 = vmatprep.subr.bf16.mxu0 0
        %1713 = vmatpush2.bf16.msra.mxu0 0
        %1714 = vmatprep.subr.bf16.mxu0 0
        %1715 = vmatpush2.bf16.msra.mxu0 0
        %1716 = vmatprep.mubr.bf16.mxu0 0
        %1717 = vmatmul.mubr.bf16.gmra.mxu0 %v665
        %v1718 = vpop.f32.mrf.mxu0
        %v1719 = vadd.f32 %v1682, %v1718
        %v1720 = vpop.f32.mrf.mxu0
        %v1721 = vpop.f32.mrf.mxu0
        %v1722 = vadd.f32 %v1682, %v1721
        %v1723 = vpop.f32.mrf.mxu0
        %1724 = vdwg.mxu0
        %v1725 = vld [vmem:[%s708] sm:$0xf]
        %v1726 = vld [vmem:[%s708 + $0x4] sm:$0xf]
        %v1727 = vld [vmem:[%s708 + $0x8] sm:$0xf]
        %v1728 = vld [vmem:[%s708 + $0xc] sm:$0xf]
        %v1729 = vld [vmem:[%s713] sm:$0x1]
        %v1731 = vlaneseq
        %v1732 = vshrl.u32 %v1731, 7
        %v1733 = vsub.s32 0, %v1732
        %v1734 = vrot.slane %v1729, %v1733
        %v1739 = vunpack.c.l.b16 %v1725
        %v1740 = vunpack.c.l.b16 %v1726
        %v1741 = vunpack.c.l.b16 %v1727
        %v1742 = vunpack.c.l.b16 %v1728
        %v1743 = vpack.c.b16 %v1740, %v1739
        %v1744 = vpack.c.b16 %v1742, %v1741
        %1745 = vrot.lane.b32.xlu0 %v1743, 104
        %v1746 = vpop.permute.xlu0 %1745
        %1747 = vrot.lane.b32.xlu0 %v1744, 104
        %v1748 = vpop.permute.xlu0 %1747
        %1751 = vrot.lane.b32.xlu0 %v1734, 104
        %v1752 = vpop.permute.xlu0 %1751
        %1754 = vmatprep.subr.bf16.mxu0 0
        %1755 = vmatpush1.bf16.msra.mxu0 0
        %1756 = vmatprep.subr.bf16.mxu0 0
        %1757 = vmatpush1.bf16.msra.mxu0 0
        %1758 = vmatprep.subr.bf16.mxu0 0
        %1759 = vmatpush1.bf16.msra.mxu0 0
        %1760 = vmatprep.subr.bf16.mxu0 0
        %1761 = vmatpush1.bf16.msra.mxu0 0
        %1762 = vmatprep.subr.bf16.mxu0 0
        %1763 = vmatpush1.bf16.msra.mxu0 0
        %1764 = vmatprep.subr.bf16.mxu0 0
        %1765 = vmatpush1.bf16.msra.mxu0 0
        %1766 = vmatprep.subr.bf16.mxu0 0
        %1767 = vmatpush1.bf16.msra.mxu0 %v1748
        %1768 = vmatprep.subr.bf16.mxu0 0
        %1769 = vmatpush1.bf16.msra.mxu0 %v1746
        %1770 = vmatprep.subr.bf16.mxu0 0
        %1771 = vmatpush2.bf16.msra.mxu0 0
        %1772 = vmatprep.subr.bf16.mxu0 0
        %1773 = vmatpush2.bf16.msra.mxu0 0
        %1774 = vmatprep.subr.bf16.mxu0 0
        %1775 = vmatpush2.bf16.msra.mxu0 0
        %1776 = vmatprep.subr.bf16.mxu0 0
        %1777 = vmatpush2.bf16.msra.mxu0 0
        %1778 = vmatprep.subr.bf16.mxu0 0
        %1779 = vmatpush2.bf16.msra.mxu0 0
        %1780 = vmatprep.subr.bf16.mxu0 0
        %1781 = vmatpush2.bf16.msra.mxu0 0
        %1782 = vmatprep.subr.bf16.mxu0 0
        %1783 = vmatpush2.bf16.msra.mxu0 0
        %1784 = vmatprep.subr.bf16.mxu0 0
        %1785 = vmatpush2.bf16.msra.mxu0 0
        %1786 = vmatprep.mubr.bf16.mxu0 0
        %1787 = vmatmul.mubr.bf16.gmra.mxu0 %v734
        %v1788 = vpop.f32.mrf.mxu0
        %v1789 = vadd.f32 %v1752, %v1788
        %v1790 = vpop.f32.mrf.mxu0
        %v1791 = vpop.f32.mrf.mxu0
        %v1792 = vadd.f32 %v1752, %v1791
        %v1793 = vpop.f32.mrf.mxu0
        %1794 = vdwg.mxu0
        %v1795 = vld [vmem:[%s777] sm:$0xf]
        %v1796 = vld [vmem:[%s777 + $0x4] sm:$0xf]
        %v1797 = vld [vmem:[%s777 + $0x8] sm:$0xf]
        %v1798 = vld [vmem:[%s777 + $0xc] sm:$0xf]
        %v1799 = vld [vmem:[%s782] sm:$0x1]
        %v1801 = vlaneseq
        %v1802 = vshrl.u32 %v1801, 7
        %v1803 = vsub.s32 0, %v1802
        %v1804 = vrot.slane %v1799, %v1803
        %v1809 = vunpack.c.l.b16 %v1795
        %v1810 = vunpack.c.l.b16 %v1796
        %v1811 = vunpack.c.l.b16 %v1797
        %v1812 = vunpack.c.l.b16 %v1798
        %v1813 = vpack.c.b16 %v1810, %v1809
        %v1814 = vpack.c.b16 %v1812, %v1811
        %1815 = vrot.lane.b32.xlu0 %v1813, 104
        %v1816 = vpop.permute.xlu0 %1815
        %1817 = vrot.lane.b32.xlu0 %v1814, 104
        %v1818 = vpop.permute.xlu0 %1817
        %1821 = vrot.lane.b32.xlu0 %v1804, 104
        %v1822 = vpop.permute.xlu0 %1821
        %1824 = vmatprep.subr.bf16.mxu0 0
        %1825 = vmatpush1.bf16.msra.mxu0 0
        %1826 = vmatprep.subr.bf16.mxu0 0
        %1827 = vmatpush1.bf16.msra.mxu0 0
        %1828 = vmatprep.subr.bf16.mxu0 0
        %1829 = vmatpush1.bf16.msra.mxu0 0
        %1830 = vmatprep.subr.bf16.mxu0 0
        %1831 = vmatpush1.bf16.msra.mxu0 0
        %1832 = vmatprep.subr.bf16.mxu0 0
        %1833 = vmatpush1.bf16.msra.mxu0 0
        %1834 = vmatprep.subr.bf16.mxu0 0
        %1835 = vmatpush1.bf16.msra.mxu0 0
        %1836 = vmatprep.subr.bf16.mxu0 0
        %1837 = vmatpush1.bf16.msra.mxu0 %v1818
        %1838 = vmatprep.subr.bf16.mxu0 0
        %1839 = vmatpush1.bf16.msra.mxu0 %v1816
        %1840 = vmatprep.subr.bf16.mxu0 0
        %1841 = vmatpush2.bf16.msra.mxu0 0
        %1842 = vmatprep.subr.bf16.mxu0 0
        %1843 = vmatpush2.bf16.msra.mxu0 0
        %1844 = vmatprep.subr.bf16.mxu0 0
        %1845 = vmatpush2.bf16.msra.mxu0 0
        %1846 = vmatprep.subr.bf16.mxu0 0
        %1847 = vmatpush2.bf16.msra.mxu0 0
        %1848 = vmatprep.subr.bf16.mxu0 0
        %1849 = vmatpush2.bf16.msra.mxu0 0
        %1850 = vmatprep.subr.bf16.mxu0 0
        %1851 = vmatpush2.bf16.msra.mxu0 0
        %1852 = vmatprep.subr.bf16.mxu0 0
        %1853 = vmatpush2.bf16.msra.mxu0 0
        %1854 = vmatprep.subr.bf16.mxu0 0
        %1855 = vmatpush2.bf16.msra.mxu0 0
        %1856 = vmatprep.mubr.bf16.mxu0 0
        %1857 = vmatmul.mubr.bf16.gmra.mxu0 %v803
        %v1858 = vpop.f32.mrf.mxu0
        %v1859 = vadd.f32 %v1822, %v1858
        %v1860 = vpop.f32.mrf.mxu0
        %v1861 = vpop.f32.mrf.mxu0
        %v1862 = vadd.f32 %v1822, %v1861
        %v1863 = vpop.f32.mrf.mxu0
        %1864 = vdwg.mxu0
        %v1865 = vpack.c.bf16 %v1722, %v1719
        %v1866 = vpack.c.bf16 %v1792, %v1789
        %v1868 = vsel %vm848, %v1865, 0
        %v1871 = vsel %vm848, %v1866, 0
        %1873 = vmatprep.subr.bf16.mxu0 0
        %1874 = vmatpush1.bf16.xpose.msra.mxu0 0
        %1875 = vmatprep.subr.bf16.mxu0 0
        %1876 = vmatpush1.bf16.xpose.msra.mxu0 0
        %1877 = vmatprep.subr.bf16.mxu0 0
        %1878 = vmatpush1.bf16.xpose.msra.mxu0 0
        %1879 = vmatprep.subr.bf16.mxu0 0
        %1880 = vmatpush1.bf16.xpose.msra.mxu0 0
        %1881 = vmatprep.subr.bf16.mxu0 0
        %1882 = vmatpush1.bf16.xpose.msra.mxu0 0
        %1883 = vmatprep.subr.bf16.mxu0 0
        %1884 = vmatpush1.bf16.xpose.msra.mxu0 0
        %1885 = vmatprep.subr.bf16.mxu0 0
        %1886 = vmatpush1.bf16.xpose.msra.mxu0 0
        %1887 = vmatprep.subr.bf16.mxu0 0
        %1888 = vmatpush1.bf16.xpose.msra.mxu0 %v1871
        %1889 = vmatprep.subr.bf16.mxu0 0
        %1890 = vmatpush2.bf16.xpose.msra.mxu0 0
        %1891 = vmatprep.subr.bf16.mxu0 0
        %1892 = vmatpush2.bf16.xpose.msra.mxu0 0
        %1893 = vmatprep.subr.bf16.mxu0 0
        %1894 = vmatpush2.bf16.xpose.msra.mxu0 0
        %1895 = vmatprep.subr.bf16.mxu0 0
        %1896 = vmatpush2.bf16.xpose.msra.mxu0 0
        %1897 = vmatprep.subr.bf16.mxu0 0
        %1898 = vmatpush2.bf16.xpose.msra.mxu0 0
        %1899 = vmatprep.subr.bf16.mxu0 0
        %1900 = vmatpush2.bf16.xpose.msra.mxu0 0
        %1901 = vmatprep.subr.bf16.mxu0 0
        %1902 = vmatpush2.bf16.xpose.msra.mxu0 0
        %1903 = vmatprep.subr.bf16.mxu0 0
        %1904 = vmatpush2.bf16.xpose.msra.mxu0 0
        %1905 = vmatprep.mubr.bf16.mxu0 0
        %1906 = vmatmul.mubr.bf16.gmra.mxu0 %v1868
        %v1907 = vpop.f32.mrf.mxu0
        %v1908 = vadd.f32 0.0, %v1907
        %v1909 = vpop.f32.mrf.mxu0
        %v1910 = vpop.f32.mrf.mxu0
        %v1911 = vadd.f32 0.0, %v1910
        %v1912 = vpop.f32.mrf.mxu0
        %1913 = vdwg.mxu0
        %v1914 = vmul.f32 %v1908, 0.35355338
        %v1915 = vmul.f32 %v1911, 0.35355338
        %v1916 = vsel %vm898, %v1914, -inf
        %1917 = vmax.xlane.f32.xlu0 %v1916
        %v1918 = vpop.xlane.xlu0 %1917
        %v1919 = vsel %vm898, %v1915, -inf
        %1920 = vmax.xlane.f32.xlu0 %v1919
        %v1921 = vpop.xlane.xlu0 %1920
        %v1922 = vsub.f32 %v1914, %v1918
        %v1923 = vsub.f32 %v1915, %v1921
        %v1924 = vmul.f32 %v1922, 1.442695
        %v1925 = vpow.pop %v1924
        %v1926 = vmul.f32 %v1923, 1.442695
        %v1927 = vpow.pop %v1926
        %v1928 = vsel %vm898, %v1925, 0.0
        %1929 = vadd.xlane.f32.xlu0 %v1928
        %v1930 = vpop.xlane.xlu0 %1929
        %v1931 = vsel %vm898, %v1927, 0.0
        %1932 = vadd.xlane.f32.xlu0 %v1931
        %v1933 = vpop.xlane.xlu0 %1932
        %v1934 = vrcp.pop %v1930
        %v1935 = vmul.f32 %v1925, %v1934
        %v1936 = vrcp.pop %v1933
        %v1937 = vmul.f32 %v1927, %v1936
        %1938 = vst.msk [vmem:[%s626 + $0x30] sm:$0xff] %vm898, %v1935
        %1939 = vst.msk [vmem:[%s626 + $0x38] sm:$0xff] %vm898, %v1937
        %v1940 = vpack.c.bf16 %v1937, %v1935
        %v1941 = vpack.c.bf16 %v1862, %v1859
        %v1943 = vsel %vm898, %v1940, 0
        %1945 = vmatprep.subr.bf16.mxu0 0
        %1946 = vmatpush1.bf16.msra.mxu0 0
        %1947 = vmatprep.subr.bf16.mxu0 0
        %1948 = vmatpush1.bf16.msra.mxu0 0
        %1949 = vmatprep.subr.bf16.mxu0 0
        %1950 = vmatpush1.bf16.msra.mxu0 0
        %1951 = vmatprep.subr.bf16.mxu0 0
        %1952 = vmatpush1.bf16.msra.mxu0 0
        %1953 = vmatprep.subr.bf16.mxu0 0
        %1954 = vmatpush1.bf16.msra.mxu0 0
        %1955 = vmatprep.subr.bf16.mxu0 0
        %1956 = vmatpush1.bf16.msra.mxu0 0
        %1957 = vmatprep.subr.bf16.mxu0 0
        %1958 = vmatpush1.bf16.msra.mxu0 0
        %1959 = vmatprep.subr.bf16.mxu0 0
        %1960 = vmatpush1.bf16.msra.mxu0 %v1941
        %1961 = vmatprep.subr.bf16.mxu0 0
        %1962 = vmatpush2.bf16.msra.mxu0 0
        %1963 = vmatprep.subr.bf16.mxu0 0
        %1964 = vmatpush2.bf16.msra.mxu0 0
        %1965 = vmatprep.subr.bf16.mxu0 0
        %1966 = vmatpush2.bf16.msra.mxu0 0
        %1967 = vmatprep.subr.bf16.mxu0 0
        %1968 = vmatpush2.bf16.msra.mxu0 0
        %1969 = vmatprep.subr.bf16.mxu0 0
        %1970 = vmatpush2.bf16.msra.mxu0 0
        %1971 = vmatprep.subr.bf16.mxu0 0
        %1972 = vmatpush2.bf16.msra.mxu0 0
        %1973 = vmatprep.subr.bf16.mxu0 0
        %1974 = vmatpush2.bf16.msra.mxu0 0
        %1975 = vmatprep.subr.bf16.mxu0 0
        %1976 = vmatpush2.bf16.msra.mxu0 0
        %1977 = vmatprep.mubr.bf16.mxu0 0
        %1978 = vmatmul.mubr.bf16.gmra.mxu0 %v1943
        %v1979 = vpop.f32.mrf.mxu0
        %v1980 = vadd.f32 0.0, %v1979
        %v1981 = vpop.f32.mrf.mxu0
        %v1982 = vpop.f32.mrf.mxu0
        %v1983 = vadd.f32 0.0, %v1982
        %v1984 = vpop.f32.mrf.mxu0
        %1985 = vdwg.mxu0
        %1988 = vrot.lane.b32.xlu0 %v1980, 24
        %v1989 = vpop.permute.xlu0 %1988
        %1990 = vrot.lane.b32.xlu0 %v1983, 24
        %v1991 = vpop.permute.xlu0 %1990
        %vm1994 = vcmask 261312
        %1995 = vst.msk [vmem:[#allocation2] sm:$0xff] %vm1994, %v1989
        %1996 = vst.msk [vmem:[#allocation2 + $0x8] sm:$0xff] %vm1994, %v1991
        %v1997 = vld [vmem:[#allocation2] sm:$0xff]
        %v1998 = vld [vmem:[#allocation2 + $0x8] sm:$0xff]
        %v1999 = vld [vmem:[%s621] sm:$0xff]
        %v2000 = vld [vmem:[%s621 + $0x8] sm:$0xff]
        %2002 = vset.pattern.permute.xlu0 0
        %2003 = vperm.xlu0 %2002, %v1999
        %v2004 = vpop.permute.xlu0 %2003
        %2007 = vset.pattern.permute.xlu0 0
        %2008 = vperm.xlu0 %2007, %v2000
        %v2009 = vpop.permute.xlu0 %2008
        %v2011 = vmul.f32 %v637, %v2004
        %v2012 = vmul.f32 %v638, %v2009
        %v2013 = vld [vmem:[%s7] sm:$0x1]
        %v2015 = vlaneseq
        %v2016 = vshrl.u32 %v2015, 7
        %v2017 = vsub.s32 0, %v2016
        %v2018 = vrot.slane %v2013, %v2017
        %v2020 = vadd.f32 %v2018, 0.0
        %v2021 = vpack.c.bf16 %v2012, %v2011
        %v2022 = vld [vmem:[#allocation12] sm:$0xf]
        %v2023 = vld [vmem:[#allocation12 + $0x4] sm:$0xf]
        %v2024 = vld [vmem:[#allocation12 + $0x8] sm:$0xf]
        %v2025 = vld [vmem:[#allocation12 + $0xc] sm:$0xf]
        %v2030 = vunpack.c.l.b16 %v2022
        %v2031 = vunpack.c.l.b16 %v2023
        %v2032 = vunpack.c.l.b16 %v2024
        %v2033 = vunpack.c.l.b16 %v2025
        %v2034 = vpack.c.b16 %v2031, %v2030
        %v2035 = vpack.c.b16 %v2033, %v2032
        %v2039 = vsel %vm663, %v2021, 0
        %2041 = vmatprep.subr.bf16.mxu0 0
        %2042 = vmatpush1.bf16.msra.mxu0 0
        %2043 = vmatprep.subr.bf16.mxu0 0
        %2044 = vmatpush1.bf16.msra.mxu0 0
        %2045 = vmatprep.subr.bf16.mxu0 0
        %2046 = vmatpush1.bf16.msra.mxu0 0
        %2047 = vmatprep.subr.bf16.mxu0 0
        %2048 = vmatpush1.bf16.msra.mxu0 0
        %2049 = vmatprep.subr.bf16.mxu0 0
        %2050 = vmatpush1.bf16.msra.mxu0 0
        %2051 = vmatprep.subr.bf16.mxu0 0
        %2052 = vmatpush1.bf16.msra.mxu0 0
        %2053 = vmatprep.subr.bf16.mxu0 0
        %2054 = vmatpush1.bf16.msra.mxu0 %v2035
        %2055 = vmatprep.subr.bf16.mxu0 0
        %2056 = vmatpush1.bf16.msra.mxu0 %v2034
        %2057 = vmatprep.subr.bf16.mxu0 0
        %2058 = vmatpush2.bf16.msra.mxu0 0
        %2059 = vmatprep.subr.bf16.mxu0 0
        %2060 = vmatpush2.bf16.msra.mxu0 0
        %2061 = vmatprep.subr.bf16.mxu0 0
        %2062 = vmatpush2.bf16.msra.mxu0 0
        %2063 = vmatprep.subr.bf16.mxu0 0
        %2064 = vmatpush2.bf16.msra.mxu0 0
        %2065 = vmatprep.subr.bf16.mxu0 0
        %2066 = vmatpush2.bf16.msra.mxu0 0
        %2067 = vmatprep.subr.bf16.mxu0 0
        %2068 = vmatpush2.bf16.msra.mxu0 0
        %2069 = vmatprep.subr.bf16.mxu0 0
        %2070 = vmatpush2.bf16.msra.mxu0 0
        %2071 = vmatprep.subr.bf16.mxu0 0
        %2072 = vmatpush2.bf16.msra.mxu0 0
        %2073 = vmatprep.mubr.bf16.mxu0 0
        %2074 = vmatmul.mubr.bf16.gmra.mxu0 %v2039
        %v2075 = vpop.f32.mrf.mxu0
        %v2076 = vadd.f32 0.0, %v2075
        %v2077 = vpop.f32.mrf.mxu0
        %v2078 = vpop.f32.mrf.mxu0
        %v2079 = vadd.f32 0.0, %v2078
        %v2080 = vpop.f32.mrf.mxu0
        %2081 = vdwg.mxu0
        %v2082 = vadd.f32 %v2020, %v2076
        %v2083 = vadd.f32 %v2020, %v2079
        %v2084 = vrot.slane %v2011, 3
        %v2085 = vrot.slane %v2012, 3
        %vm2086 = vcmp.lt.s32.totalorder %v629, 5
        %v2087 = vsel %vm2086, %v2084, %v2085
        %v2088 = vsel %vm2086, %v2085, %v2084
        %v2089 = vpack.c.bf16 %v2088, %v2087
        %s2090 = scalar_lea.vmem [#allocation12], 16
        %v2091 = vld [vmem:[%s2090] sm:$0xf]
        %v2092 = vld [vmem:[%s2090 + $0x4] sm:$0xf]
        %v2093 = vld [vmem:[%s2090 + $0x8] sm:$0xf]
        %v2094 = vld [vmem:[%s2090 + $0xc] sm:$0xf]
        %v2099 = vunpack.c.l.b16 %v2091
        %v2100 = vunpack.c.l.b16 %v2092
        %v2101 = vunpack.c.l.b16 %v2093
        %v2102 = vunpack.c.l.b16 %v2094
        %v2103 = vpack.c.b16 %v2100, %v2099
        %v2104 = vpack.c.b16 %v2102, %v2101
        %v2108 = vsel %vm663, %v2089, 0
        %2110 = vmatprep.subr.bf16.mxu0 0
        %2111 = vmatpush1.bf16.msra.mxu0 0
        %2112 = vmatprep.subr.bf16.mxu0 0
        %2113 = vmatpush1.bf16.msra.mxu0 0
        %2114 = vmatprep.subr.bf16.mxu0 0
        %2115 = vmatpush1.bf16.msra.mxu0 0
        %2116 = vmatprep.subr.bf16.mxu0 0
        %2117 = vmatpush1.bf16.msra.mxu0 0
        %2118 = vmatprep.subr.bf16.mxu0 0
        %2119 = vmatpush1.bf16.msra.mxu0 0
        %2120 = vmatprep.subr.bf16.mxu0 0
        %2121 = vmatpush1.bf16.msra.mxu0 0
        %2122 = vmatprep.subr.bf16.mxu0 0
        %2123 = vmatpush1.bf16.msra.mxu0 %v2104
        %2124 = vmatprep.subr.bf16.mxu0 0
        %2125 = vmatpush1.bf16.msra.mxu0 %v2103
        %2126 = vmatprep.subr.bf16.mxu0 0
        %2127 = vmatpush2.bf16.msra.mxu0 0
        %2128 = vmatprep.subr.bf16.mxu0 0
        %2129 = vmatpush2.bf16.msra.mxu0 0
        %2130 = vmatprep.subr.bf16.mxu0 0
        %2131 = vmatpush2.bf16.msra.mxu0 0
        %2132 = vmatprep.subr.bf16.mxu0 0
        %2133 = vmatpush2.bf16.msra.mxu0 0
        %2134 = vmatprep.subr.bf16.mxu0 0
        %2135 = vmatpush2.bf16.msra.mxu0 0
        %2136 = vmatprep.subr.bf16.mxu0 0
        %2137 = vmatpush2.bf16.msra.mxu0 0
        %2138 = vmatprep.subr.bf16.mxu0 0
        %2139 = vmatpush2.bf16.msra.mxu0 0
        %2140 = vmatprep.subr.bf16.mxu0 0
        %2141 = vmatpush2.bf16.msra.mxu0 0
        %2142 = vmatprep.mubr.bf16.mxu0 0
        %2143 = vmatmul.mubr.bf16.gmra.mxu0 %v2108
        %v2144 = vpop.f32.mrf.mxu0
        %v2145 = vadd.f32 0.0, %v2144
        %v2146 = vpop.f32.mrf.mxu0
        %v2147 = vpop.f32.mrf.mxu0
        %v2148 = vadd.f32 0.0, %v2147
        %v2149 = vpop.f32.mrf.mxu0
        %2150 = vdwg.mxu0
        %v2151 = vadd.f32 %v2082, %v2145
        %v2152 = vadd.f32 %v2083, %v2148
        %v2153 = vrot.slane %v2011, 6
        %v2154 = vrot.slane %v2012, 6
        %vm2155 = vcmp.lt.s32.totalorder %v629, 2
        %v2156 = vsel %vm2155, %v2153, %v2154
        %v2157 = vsel %vm2155, %v2154, %v2153
        %v2158 = vpack.c.bf16 %v2157, %v2156
        %s2159 = scalar_lea.vmem [#allocation12], 32
        %v2160 = vld [vmem:[%s2159] sm:$0xf]
        %v2161 = vld [vmem:[%s2159 + $0x4] sm:$0xf]
        %v2162 = vld [vmem:[%s2159 + $0x8] sm:$0xf]
        %v2163 = vld [vmem:[%s2159 + $0xc] sm:$0xf]
        %v2168 = vunpack.c.l.b16 %v2160
        %v2169 = vunpack.c.l.b16 %v2161
        %v2170 = vunpack.c.l.b16 %v2162
        %v2171 = vunpack.c.l.b16 %v2163
        %v2172 = vpack.c.b16 %v2169, %v2168
        %v2173 = vpack.c.b16 %v2171, %v2170
        %v2177 = vsel %vm663, %v2158, 0
        %2179 = vmatprep.subr.bf16.mxu0 0
        %2180 = vmatpush1.bf16.msra.mxu0 0
        %2181 = vmatprep.subr.bf16.mxu0 0
        %2182 = vmatpush1.bf16.msra.mxu0 0
        %2183 = vmatprep.subr.bf16.mxu0 0
        %2184 = vmatpush1.bf16.msra.mxu0 0
        %2185 = vmatprep.subr.bf16.mxu0 0
        %2186 = vmatpush1.bf16.msra.mxu0 0
        %2187 = vmatprep.subr.bf16.mxu0 0
        %2188 = vmatpush1.bf16.msra.mxu0 0
        %2189 = vmatprep.subr.bf16.mxu0 0
        %2190 = vmatpush1.bf16.msra.mxu0 0
        %2191 = vmatprep.subr.bf16.mxu0 0
        %2192 = vmatpush1.bf16.msra.mxu0 %v2173
        %2193 = vmatprep.subr.bf16.mxu0 0
        %2194 = vmatpush1.bf16.msra.mxu0 %v2172
        %2195 = vmatprep.subr.bf16.mxu0 0
        %2196 = vmatpush2.bf16.msra.mxu0 0
        %2197 = vmatprep.subr.bf16.mxu0 0
        %2198 = vmatpush2.bf16.msra.mxu0 0
        %2199 = vmatprep.subr.bf16.mxu0 0
        %2200 = vmatpush2.bf16.msra.mxu0 0
        %2201 = vmatprep.subr.bf16.mxu0 0
        %2202 = vmatpush2.bf16.msra.mxu0 0
        %2203 = vmatprep.subr.bf16.mxu0 0
        %2204 = vmatpush2.bf16.msra.mxu0 0
        %2205 = vmatprep.subr.bf16.mxu0 0
        %2206 = vmatpush2.bf16.msra.mxu0 0
        %2207 = vmatprep.subr.bf16.mxu0 0
        %2208 = vmatpush2.bf16.msra.mxu0 0
        %2209 = vmatprep.subr.bf16.mxu0 0
        %2210 = vmatpush2.bf16.msra.mxu0 0
        %2211 = vmatprep.mubr.bf16.mxu0 0
        %2212 = vmatmul.mubr.bf16.gmra.mxu0 %v2177
        %v2213 = vpop.f32.mrf.mxu0
        %v2214 = vadd.f32 0.0, %v2213
        %v2215 = vpop.f32.mrf.mxu0
        %v2216 = vpop.f32.mrf.mxu0
        %v2217 = vadd.f32 0.0, %v2216
        %v2218 = vpop.f32.mrf.mxu0
        %2219 = vdwg.mxu0
        %v2220 = vadd.f32 %v2151, %v2214
        %v2221 = vadd.f32 %v2152, %v2217
        %v2222 = vmax.f32 %v2220, 0.0
        %v2223 = vmax.f32 %v2221, 0.0
        %vm2224 = vcmp.lt.s32.totalorder %v629, 10
        %vm2225 = vcmp.lt.s32.totalorder %v630, 10
        %v2226 = vsel %vm2224, 1, 0
        %v2227 = vsel %vm2225, 1, 0
        %vm2228 = vcmp.eq.s32.totalorder %v2226, 1
        %vm2229 = vcmp.eq.s32.totalorder %v2227, 1
        %v2230 = vsel %vm2228, %v2222, 0.0
        %v2231 = vsel %vm2229, %v2223, 0.0
        %v2232 = vadd.f32 %v1997, %v2230
        %v2233 = vadd.f32 %v1998, %v2231
        %2234 = vset.pattern.permute.xlu0 1
        %2235 = vperm.xlu0 %2234, %v1999
        %v2236 = vpop.permute.xlu0 %2235
        %2238 = vset.pattern.permute.xlu0 1
        %2239 = vperm.xlu0 %2238, %v2000
        %v2240 = vpop.permute.xlu0 %2239
        %v2242 = vmul.f32 %v637, %v2236
        %v2243 = vmul.f32 %v638, %v2240
        %v2244 = vld [vmem:[%s9] sm:$0x1]
        %v2246 = vlaneseq
        %v2247 = vshrl.u32 %v2246, 7
        %v2248 = vsub.s32 0, %v2247
        %v2249 = vrot.slane %v2244, %v2248
        %v2251 = vadd.f32 %v2249, 0.0
        %v2252 = vpack.c.bf16 %v2243, %v2242
        %v2253 = vld [vmem:[%s8] sm:$0xf]
        %v2254 = vld [vmem:[%s8 + $0x4] sm:$0xf]
        %v2255 = vld [vmem:[%s8 + $0x8] sm:$0xf]
        %v2256 = vld [vmem:[%s8 + $0xc] sm:$0xf]
        %v2261 = vunpack.c.l.b16 %v2253
        %v2262 = vunpack.c.l.b16 %v2254
        %v2263 = vunpack.c.l.b16 %v2255
        %v2264 = vunpack.c.l.b16 %v2256
        %v2265 = vpack.c.b16 %v2262, %v2261
        %v2266 = vpack.c.b16 %v2264, %v2263
        %v2270 = vsel %vm663, %v2252, 0
        %2272 = vmatprep.subr.bf16.mxu0 0
        %2273 = vmatpush1.bf16.msra.mxu0 0
        %2274 = vmatprep.subr.bf16.mxu0 0
        %2275 = vmatpush1.bf16.msra.mxu0 0
        %2276 = vmatprep.subr.bf16.mxu0 0
        %2277 = vmatpush1.bf16.msra.mxu0 0
        %2278 = vmatprep.subr.bf16.mxu0 0
        %2279 = vmatpush1.bf16.msra.mxu0 0
        %2280 = vmatprep.subr.bf16.mxu0 0
        %2281 = vmatpush1.bf16.msra.mxu0 0
        %2282 = vmatprep.subr.bf16.mxu0 0
        %2283 = vmatpush1.bf16.msra.mxu0 0
        %2284 = vmatprep.subr.bf16.mxu0 0
        %2285 = vmatpush1.bf16.msra.mxu0 %v2266
        %2286 = vmatprep.subr.bf16.mxu0 0
        %2287 = vmatpush1.bf16.msra.mxu0 %v2265
        %2288 = vmatprep.subr.bf16.mxu0 0
        %2289 = vmatpush2.bf16.msra.mxu0 0
        %2290 = vmatprep.subr.bf16.mxu0 0
        %2291 = vmatpush2.bf16.msra.mxu0 0
        %2292 = vmatprep.subr.bf16.mxu0 0
        %2293 = vmatpush2.bf16.msra.mxu0 0
        %2294 = vmatprep.subr.bf16.mxu0 0
        %2295 = vmatpush2.bf16.msra.mxu0 0
        %2296 = vmatprep.subr.bf16.mxu0 0
        %2297 = vmatpush2.bf16.msra.mxu0 0
        %2298 = vmatprep.subr.bf16.mxu0 0
        %2299 = vmatpush2.bf16.msra.mxu0 0
        %2300 = vmatprep.subr.bf16.mxu0 0
        %2301 = vmatpush2.bf16.msra.mxu0 0
        %2302 = vmatprep.subr.bf16.mxu0 0
        %2303 = vmatpush2.bf16.msra.mxu0 0
        %2304 = vmatprep.mubr.bf16.mxu0 0
        %2305 = vmatmul.mubr.bf16.gmra.mxu0 %v2270
        %v2306 = vpop.f32.mrf.mxu0
        %v2307 = vadd.f32 0.0, %v2306
        %v2308 = vpop.f32.mrf.mxu0
        %v2309 = vpop.f32.mrf.mxu0
        %v2310 = vadd.f32 0.0, %v2309
        %v2311 = vpop.f32.mrf.mxu0
        %2312 = vdwg.mxu0
        %v2313 = vadd.f32 %v2251, %v2307
        %v2314 = vadd.f32 %v2251, %v2310
        %v2315 = vrot.slane %v2242, 3
        %v2316 = vrot.slane %v2243, 3
        %v2317 = vsel %vm2086, %v2315, %v2316
        %v2318 = vsel %vm2086, %v2316, %v2315
        %v2319 = vpack.c.bf16 %v2318, %v2317
        %s2320 = scalar_lea.vmem %s8, 16
        %v2321 = vld [vmem:[%s2320] sm:$0xf]
        %v2322 = vld [vmem:[%s2320 + $0x4] sm:$0xf]
        %v2323 = vld [vmem:[%s2320 + $0x8] sm:$0xf]
        %v2324 = vld [vmem:[%s2320 + $0xc] sm:$0xf]
        %v2329 = vunpack.c.l.b16 %v2321
        %v2330 = vunpack.c.l.b16 %v2322
        %v2331 = vunpack.c.l.b16 %v2323
        %v2332 = vunpack.c.l.b16 %v2324
        %v2333 = vpack.c.b16 %v2330, %v2329
        %v2334 = vpack.c.b16 %v2332, %v2331
        %v2338 = vsel %vm663, %v2319, 0
        %2340 = vmatprep.subr.bf16.mxu0 0
        %2341 = vmatpush1.bf16.msra.mxu0 0
        %2342 = vmatprep.subr.bf16.mxu0 0
        %2343 = vmatpush1.bf16.msra.mxu0 0
        %2344 = vmatprep.subr.bf16.mxu0 0
        %2345 = vmatpush1.bf16.msra.mxu0 0
        %2346 = vmatprep.subr.bf16.mxu0 0
        %2347 = vmatpush1.bf16.msra.mxu0 0
        %2348 = vmatprep.subr.bf16.mxu0 0
        %2349 = vmatpush1.bf16.msra.mxu0 0
        %2350 = vmatprep.subr.bf16.mxu0 0
        %2351 = vmatpush1.bf16.msra.mxu0 0
        %2352 = vmatprep.subr.bf16.mxu0 0
        %2353 = vmatpush1.bf16.msra.mxu0 %v2334
        %2354 = vmatprep.subr.bf16.mxu0 0
        %2355 = vmatpush1.bf16.msra.mxu0 %v2333
        %2356 = vmatprep.subr.bf16.mxu0 0
        %2357 = vmatpush2.bf16.msra.mxu0 0
        %2358 = vmatprep.subr.bf16.mxu0 0
        %2359 = vmatpush2.bf16.msra.mxu0 0
        %2360 = vmatprep.subr.bf16.mxu0 0
        %2361 = vmatpush2.bf16.msra.mxu0 0
        %2362 = vmatprep.subr.bf16.mxu0 0
        %2363 = vmatpush2.bf16.msra.mxu0 0
        %2364 = vmatprep.subr.bf16.mxu0 0
        %2365 = vmatpush2.bf16.msra.mxu0 0
        %2366 = vmatprep.subr.bf16.mxu0 0
        %2367 = vmatpush2.bf16.msra.mxu0 0
        %2368 = vmatprep.subr.bf16.mxu0 0
        %2369 = vmatpush2.bf16.msra.mxu0 0
        %2370 = vmatprep.subr.bf16.mxu0 0
        %2371 = vmatpush2.bf16.msra.mxu0 0
        %2372 = vmatprep.mubr.bf16.mxu0 0
        %2373 = vmatmul.mubr.bf16.gmra.mxu0 %v2338
        %v2374 = vpop.f32.mrf.mxu0
        %v2375 = vadd.f32 0.0, %v2374
        %v2376 = vpop.f32.mrf.mxu0
        %v2377 = vpop.f32.mrf.mxu0
        %v2378 = vadd.f32 0.0, %v2377
        %v2379 = vpop.f32.mrf.mxu0
        %2380 = vdwg.mxu0
        %v2381 = vadd.f32 %v2313, %v2375
        %v2382 = vadd.f32 %v2314, %v2378
        %v2383 = vrot.slane %v2242, 6
        %v2384 = vrot.slane %v2243, 6
        %v2385 = vsel %vm2155, %v2383, %v2384
        %v2386 = vsel %vm2155, %v2384, %v2383
        %v2387 = vpack.c.bf16 %v2386, %v2385
        %s2388 = scalar_lea.vmem %s8, 32
        %v2389 = vld [vmem:[%s2388] sm:$0xf]
        %v2390 = vld [vmem:[%s2388 + $0x4] sm:$0xf]
        %v2391 = vld [vmem:[%s2388 + $0x8] sm:$0xf]
        %v2392 = vld [vmem:[%s2388 + $0xc] sm:$0xf]
        %v2397 = vunpack.c.l.b16 %v2389
        %v2398 = vunpack.c.l.b16 %v2390
        %v2399 = vunpack.c.l.b16 %v2391
        %v2400 = vunpack.c.l.b16 %v2392
        %v2401 = vpack.c.b16 %v2398, %v2397
        %v2402 = vpack.c.b16 %v2400, %v2399
        %v2406 = vsel %vm663, %v2387, 0
        %2408 = vmatprep.subr.bf16.mxu0 0
        %2409 = vmatpush1.bf16.msra.mxu0 0
        %2410 = vmatprep.subr.bf16.mxu0 0
        %2411 = vmatpush1.bf16.msra.mxu0 0
        %2412 = vmatprep.subr.bf16.mxu0 0
        %2413 = vmatpush1.bf16.msra.mxu0 0
        %2414 = vmatprep.subr.bf16.mxu0 0
        %2415 = vmatpush1.bf16.msra.mxu0 0
        %2416 = vmatprep.subr.bf16.mxu0 0
        %2417 = vmatpush1.bf16.msra.mxu0 0
        %2418 = vmatprep.subr.bf16.mxu0 0
        %2419 = vmatpush1.bf16.msra.mxu0 0
        %2420 = vmatprep.subr.bf16.mxu0 0
        %2421 = vmatpush1.bf16.msra.mxu0 %v2402
        %2422 = vmatprep.subr.bf16.mxu0 0
        %2423 = vmatpush1.bf16.msra.mxu0 %v2401
        %2424 = vmatprep.subr.bf16.mxu0 0
        %2425 = vmatpush2.bf16.msra.mxu0 0
        %2426 = vmatprep.subr.bf16.mxu0 0
        %2427 = vmatpush2.bf16.msra.mxu0 0
        %2428 = vmatprep.subr.bf16.mxu0 0
        %2429 = vmatpush2.bf16.msra.mxu0 0
        %2430 = vmatprep.subr.bf16.mxu0 0
        %2431 = vmatpush2.bf16.msra.mxu0 0
        %2432 = vmatprep.subr.bf16.mxu0 0
        %2433 = vmatpush2.bf16.msra.mxu0 0
        %2434 = vmatprep.subr.bf16.mxu0 0
        %2435 = vmatpush2.bf16.msra.mxu0 0
        %2436 = vmatprep.subr.bf16.mxu0 0
        %2437 = vmatpush2.bf16.msra.mxu0 0
        %2438 = vmatprep.subr.bf16.mxu0 0
        %2439 = vmatpush2.bf16.msra.mxu0 0
        %2440 = vmatprep.mubr.bf16.mxu0 0
        %2441 = vmatmul.mubr.bf16.gmra.mxu0 %v2406
        %v2442 = vpop.f32.mrf.mxu0
        %v2443 = vadd.f32 0.0, %v2442
        %v2444 = vpop.f32.mrf.mxu0
        %v2445 = vpop.f32.mrf.mxu0
        %v2446 = vadd.f32 0.0, %v2445
        %v2447 = vpop.f32.mrf.mxu0
        %2448 = vdwg.mxu0
        %v2449 = vadd.f32 %v2381, %v2443
        %v2450 = vadd.f32 %v2382, %v2446
        %v2451 = vmax.f32 %v2449, 0.0
        %v2452 = vmax.f32 %v2450, 0.0
        %v2453 = vsel %vm2228, %v2451, 0.0
        %v2454 = vsel %vm2229, %v2452, 0.0
        %v2455 = vadd.f32 %v2232, %v2453
        %v2456 = vadd.f32 %v2233, %v2454
        %v2457 = vpack.c.bf16 %v2456, %v2455
        %v2458 = vld [vmem:[#allocation14] sm:$0xf]
        %v2459 = vld [vmem:[#allocation14 + $0x4] sm:$0xf]
        %v2460 = vld [vmem:[#allocation14 + $0x8] sm:$0xf]
        %v2461 = vld [vmem:[#allocation14 + $0xc] sm:$0xf]
        %v2462 = vld [vmem:[%s11] sm:$0x1]
        %v2464 = vlaneseq
        %v2465 = vshrl.u32 %v2464, 7
        %v2466 = vsub.s32 0, %v2465
        %v2467 = vrot.slane %v2462, %v2466
        %v2473 = vunpack.c.l.b16 %v2458
        %v2474 = vunpack.c.l.b16 %v2459
        %v2475 = vunpack.c.l.b16 %v2460
        %v2476 = vunpack.c.l.b16 %v2461
        %v2477 = vpack.c.b16 %v2474, %v2473
        %v2478 = vpack.c.b16 %v2476, %v2475
        %v2482 = vsel %vm663, %v2457, 0
        %2484 = vmatprep.subr.bf16.mxu0 0
        %2485 = vmatpush1.bf16.msra.mxu0 0
        %2486 = vmatprep.subr.bf16.mxu0 0
        %2487 = vmatpush1.bf16.msra.mxu0 0
        %2488 = vmatprep.subr.bf16.mxu0 0
        %2489 = vmatpush1.bf16.msra.mxu0 0
        %2490 = vmatprep.subr.bf16.mxu0 0
        %2491 = vmatpush1.bf16.msra.mxu0 0
        %2492 = vmatprep.subr.bf16.mxu0 0
        %2493 = vmatpush1.bf16.msra.mxu0 0
        %2494 = vmatprep.subr.bf16.mxu0 0
        %2495 = vmatpush1.bf16.msra.mxu0 0
        %2496 = vmatprep.subr.bf16.mxu0 0
        %2497 = vmatpush1.bf16.msra.mxu0 %v2478
        %2498 = vmatprep.subr.bf16.mxu0 0
        %2499 = vmatpush1.bf16.msra.mxu0 %v2477
        %2500 = vmatprep.subr.bf16.mxu0 0
        %2501 = vmatpush2.bf16.msra.mxu0 0
        %2502 = vmatprep.subr.bf16.mxu0 0
        %2503 = vmatpush2.bf16.msra.mxu0 0
        %2504 = vmatprep.subr.bf16.mxu0 0
        %2505 = vmatpush2.bf16.msra.mxu0 0
        %2506 = vmatprep.subr.bf16.mxu0 0
        %2507 = vmatpush2.bf16.msra.mxu0 0
        %2508 = vmatprep.subr.bf16.mxu0 0
        %2509 = vmatpush2.bf16.msra.mxu0 0
        %2510 = vmatprep.subr.bf16.mxu0 0
        %2511 = vmatpush2.bf16.msra.mxu0 0
        %2512 = vmatprep.subr.bf16.mxu0 0
        %2513 = vmatpush2.bf16.msra.mxu0 0
        %2514 = vmatprep.subr.bf16.mxu0 0
        %2515 = vmatpush2.bf16.msra.mxu0 0
        %2516 = vmatprep.mubr.bf16.mxu0 0
        %2517 = vmatmul.mubr.bf16.gmra.mxu0 %v2482
        %v2518 = vpop.f32.mrf.mxu0
        %v2519 = vadd.f32 %v2467, %v2518
        %v2520 = vpop.f32.mrf.mxu0
        %v2521 = vpop.f32.mrf.mxu0
        %v2522 = vadd.f32 %v2467, %v2521
        %v2523 = vpop.f32.mrf.mxu0
        %2524 = vdwg.mxu0
        %2525 = vst.msk [vmem:[%s609] sm:$0xff] %vm663, %v2519
        %2526 = vst.msk [vmem:[%s609 + $0x8] sm:$0xff] %vm663, %v2522
        %s2527 = sand.u32 %s316, 1
        %s2528 = scalar_lea.sflag [#allocation5], %s2527
        %s2529 = sand.u32 %s316, 1
        %s2530 = smul.addr %s2529, 16
        %s2531 = scalar_lea.vmem [#allocation15], %s2530
        %p2532 = scmp.lt.s32.totalorder %s36, 1
        %s2533 = scalar_select %p2532, %s36, 1
        %s2534 = smul.addr %s2533, 8
        %s2535 = smul.addr %s2534, 8
        %s2536 = scalar_lea.vmem %s13, %s2535
        // Predicated region
        $region97: #{tpu_custom_call.1} parent=67 // pred_check
          %p2537 = pneg %p326
        $region98: #{tpu_custom_call.1} parent=67 // pred_check_branch
          %2539 = sbr.rel (%p2537) target = $region100
        $region99: #{tpu_custom_call.1} parent=67 // pred_region
          %s2541 = ssub.s32 256, 256
          %2542 = vsyncadd %s2528, %s2541
          %s2543 = smul.addr %s36, 2
          %s2544 = smul.addr %s2543, 128
          %s2545 = scalar_lea.hbm %s12, %s2544
          %s2546 = sshll.u32 %s2531, 4
          %s2547 = int_to_ptr.vmem [resolvable:$true] %s2546
          %2552 = dma.vmem_to_hbm [thread:$0]  %s2547, 256, %s2545, %s2528, 128, 128, 8
        $region100: #{tpu_custom_call.1} parent=67 // pred_fallthru
          _
        // Predicated region
        $region101: #{tpu_custom_call.1} parent=67 // pred_check
          %p2553 = pneg %p352
        $region102: #{tpu_custom_call.1} parent=67 // pred_check_branch
          %2555 = sbr.rel (%p2553) target = $region104
        $region103: #{tpu_custom_call.1} parent=67 // pred_region
          _
        $region104: #{tpu_custom_call.1} parent=67 // pred_fallthru
          _
      $region68: #{tpu_custom_call.1} parent=5 // pred_fallthru
        _
      %p2556 = scmp.le.s32.totalorder 2, %s31
      // Predicated region
      $region105: #{tpu_custom_call.1} parent=5 // pred_check
        %p2557 = pneg %p2556
      $region106: #{tpu_custom_call.1} parent=5 // pred_check_branch
        %2559 = sbr.rel (%p2557) target = $region108
      $region107: #{tpu_custom_call.1} parent=5 // pred_region
        %s2560 = ssub.s32 %s31, 2
        // Predicated region
        $region109: #{tpu_custom_call.1} parent=107 // pred_check
          %p2561 = pneg %p332
        $region110: #{tpu_custom_call.1} parent=107 // pred_check_branch
          %2563 = sbr.rel (%p2561) target = $region112
        $region111: #{tpu_custom_call.1} parent=107 // pred_region
          %s2564 = sand.u32 %s317, 1
          %s2565 = scalar_lea.sflag [#allocation5], %s2564
          %s2566 = sand.u32 %s317, 1
          %s2567 = smul.addr %s2566, 16
          %s2568 = scalar_lea.vmem [#allocation15], %s2567
          %2569 = dma.done %s2565, 256
        $region112: #{tpu_custom_call.1} parent=107 // pred_fallthru
          _
        // Predicated region
        $region113: #{tpu_custom_call.1} parent=107 // pred_check
          %p2570 = pneg %p358
        $region114: #{tpu_custom_call.1} parent=107 // pred_check_branch
          %2572 = sbr.rel (%p2570) target = $region116
        $region115: #{tpu_custom_call.1} parent=107 // pred_region
          %p2573 = scmp.lt.s32.totalorder %s37, 1
          %s2574 = scalar_select %p2573, %s37, 1
          %s2575 = smul.addr %s2574, 8
          %s2576 = smul.addr %s2575, 8
          %s2577 = scalar_lea.vmem %s13, %s2576
        $region116: #{tpu_custom_call.1} parent=107 // pred_fallthru
          _
      $region108: #{tpu_custom_call.1} parent=5 // pred_fallthru
        _
    $region6: #{tpu_custom_call.1} parent=1 // loop_footer
      %s35 = sadd.s32 1, %s31
    $region7: #{tpu_custom_call.1} parent=1 // loop_footer_branch
      %30 = sbr.rel target = $region3
    $region8: #{tpu_custom_call.1} parent=1 // loop_exit
      _
    %2578 = vsyncpa [#allocation4], 1
    %s2579 = scalar_lea.sflag [#allocation4], 1
    %2580 = vsyncpa %s2579, 1
    %2581 = vsyncpa [#allocation7], 1
    %s2582 = scalar_lea.sflag [#allocation7], 1
    %2583 = vsyncpa %s2582, 1
    %2584 = vsyncpa [#allocation10], 1
    %2585 = vsyncpa [#allocation13], 1
    %2586 = vsyncpa [#allocation5], 1
    %s2587 = scalar_lea.sflag [#allocation5], 1
    %2588 = vsyncpa %s2587, 1

</llo_original>
